<compile_context>
chip_gen: v7x
topology: tpu7x:2x2x1
jax: 0.10.0
libtpu: 0.0.40
codegen_flags: <defaults>
</compile_context>

<pallas_src>
import functools
import math

import jax
import jax.numpy as jnp
from jax.experimental import pallas as pl
from jax.experimental.pallas import tpu as pltpu


def _round_up(x, m):
    return ((x + m - 1) // m) * m


def generator_kernel(dec0_ref, hid0_ref, enc_ref, mask_ref, story_ref, emb_ref, vmask_ref,
                     w_ir_ref, w_iz_ref, w_in_ref, w_hr_ref, w_hz_ref, w_hn_ref,
                     b_r_ref, b_z_ref, b_in_ref, b_hn_ref,
                     wr_h_ref, wr_c_ref, wr_x_ref, wr_b_ref, wg_ref, wgb_ref,
                     *rest, use_tf):
    if use_tf:
        tfemb_ref, point_ref, gate_ref, pred_ref, hid_scr, dec_scr = rest
    else:
        point_ref, gate_ref, pred_ref, hid_scr, dec_scr = rest

    f32 = jnp.float32
    wi = pl.program_id(0)
    B, Tp, Hp = enc_ref.shape
    R = dec0_ref.shape[0]
    Sp = R // B
    Vp = emb_ref.shape[0]

    # ---- step 0: load carried state (decoder input & GRU hidden) into scratch ----
    @pl.when(wi == 0)
    def _init():
        dec_scr[...] = dec0_ref[...]
        hid_scr[...] = hid0_ref[...]

    def mm(a, b):
        return jnp.dot(a, b, preferred_element_type=f32)

    # ---- single GRU step over all R = B*Sp rows (PyTorch gate order r, z, n) ----
    x = dec_scr[...]                       # (R, Hp) current decoder input
    h = hid_scr[...]                       # (R, Hp) previous hidden
    r = jax.nn.sigmoid(mm(x, w_ir_ref[...]) + mm(h, w_hr_ref[...]) + b_r_ref[...])
    z = jax.nn.sigmoid(mm(x, w_iz_ref[...]) + mm(h, w_hz_ref[...]) + b_z_ref[...])
    n = jnp.tanh(mm(x, w_in_ref[...]) + b_in_ref[...]
                 + r * (mm(h, w_hn_ref[...]) + b_hn_ref[...]))
    h_new = (1.0 - z) * n + z * h          # dec_state == new hidden
    hid_scr[...] = h_new

    # ---- attention, batched over batch elements (slots of one batch element
    #      share the same (Tp, Hp) encoder block) ----
    enc = enc_ref[...]                                                  # (B, Tp, Hp)
    h3 = h_new.reshape(B, Sp, Hp)
    scores = jnp.einsum('bsh,bth->bst', h3, enc,
                        preferred_element_type=f32) + mask_ref[...]     # (B, Sp, Tp)
    scores = scores - jnp.max(scores, axis=2, keepdims=True)
    e = jnp.exp(scores)
    prob = e / jnp.sum(e, axis=2, keepdims=True)                        # (B, Sp, Tp)
    ctx = jnp.einsum('bst,bth->bsh', prob, enc,
                     preferred_element_type=f32).reshape(R, Hp)         # (R, Hp)

    # ---- pointer scatter-add as ONE batched MXU matmul (no T-unrolled VPU loop):
    #      onehot[b, t, v] = (story[b, t] == v);  p_ctx = prob @ onehot ----
    iota_v3 = jax.lax.broadcasted_iota(jnp.int32, (1, 1, Vp), 2)
    onehot_story = (story_ref[...] == iota_v3).astype(f32)              # (B, Tp, Vp)
    p_ctx = jnp.einsum('bst,btv->bsv', prob, onehot_story,
                       preferred_element_type=f32).reshape(R, Vp)       # (R, Vp)

    # gate logits: only step 0 is kept; gate_ref has a constant index_map so its
    # block is VMEM-resident across the whole decode loop (no per-step copy).
    @pl.when(wi == 0)
    def _gate():
        gate_ref[...] = mm(ctx, wg_ref[...]) + wgb_ref[...]

    # ---- vocab distribution / switch / mix / argmax hoisted over ALL rows ----
    vs = jnp.einsum('rh,vh->rv', h_new, emb_ref[...],
                    preferred_element_type=f32) + vmask_ref[...]        # (R, Vp)
    vs = vs - jnp.max(vs, axis=1, keepdims=True)
    ev = jnp.exp(vs)
    p_vocab = ev / jnp.sum(ev, axis=1, keepdims=True)

    switch = jax.nn.sigmoid(mm(h_new, wr_h_ref[...]) + mm(ctx, wr_c_ref[...])
                            + mm(x, wr_x_ref[...]) + wr_b_ref[...])     # (R, 1)
    final_p = (1.0 - switch) * p_ctx + switch * p_vocab                 # (R, Vp)
    point_ref[0, :, :] = final_p

    # argmax over vocab (first index of the maximum, like torch.argmax)
    iota_rv = jax.lax.broadcasted_iota(jnp.int32, (R, Vp), 1)
    mx = jnp.max(final_p, axis=1, keepdims=True)
    pred = jnp.min(jnp.where(final_p == mx, iota_rv, Vp),
                   axis=1, keepdims=True)                               # (R, 1)
    pred_ref[0, :, :] = pred

    # ---- next decoder input ----
    @pl.when(wi + 1 < pl.num_programs(0))
    def _next():
        if use_tf:
            # pre-embedded on host, streamed one (1, R, Hp) block per step
            dec_scr[...] = tfemb_ref[0]
        else:
            onehot_tok = (pred == iota_rv).astype(f32)                  # (R, Vp)
            dec_scr[...] = mm(onehot_tok, emb_ref[...])                 # (R, Hp)


def make_generator_call(B, Sp, Tp, Hp, Vp, G, L, use_tf):
    R = B * Sp
    c2 = lambda wi: (0, 0)
    c3 = lambda wi: (0, 0, 0)
    f32, i32 = jnp.float32, jnp.int32

    in_blocks = ([((R, Hp), f32), ((R, Hp), f32), ((B, Tp, Hp), f32),
                  ((B, 1, Tp), f32), ((B, Tp, 1), i32), ((Vp, Hp), f32), ((1, Vp), f32)]
                 + [((Hp, Hp), f32)] * 6                  # w_ir, w_iz, w_in, w_hr, w_hz, w_hn
                 + [((1, Hp), f32)] * 4                   # b_r, b_z, b_in, b_hn
                 + [((Hp, 1), f32)] * 3                   # wr_h, wr_c, wr_x
                 + [((1, 1), f32)]                        # wr_b
                 + [((Hp, G), f32), ((1, G), f32)])       # W_gate (pre-T), bias
    in_specs = [pl.BlockSpec(s, c3 if len(s) == 3 else c2) for s, _ in in_blocks]
    if use_tf:
        in_blocks.append(((1, R, Hp), f32))
        in_specs.append(pl.BlockSpec((1, R, Hp), lambda wi: (wi, 0, 0)))

    out_blocks = [((1, R, Vp), f32), ((R, G), f32), ((1, R, 1), i32)]
    out_specs = [
        pl.BlockSpec((1, R, Vp), lambda wi: (wi, 0, 0)),  # final_p_vocab per step
        pl.BlockSpec((R, G), c2),                         # gate logits (step 0, resident)
        pl.BlockSpec((1, R, 1), lambda wi: (wi, 0, 0)),   # predicted token ids
    ]
    out_shape = [
        jax.ShapeDtypeStruct((L, R, Vp), f32),
        jax.ShapeDtypeStruct((R, G), f32),
        jax.ShapeDtypeStruct((L, R, 1), i32),
    ]
    scratch_blocks = [((R, Hp), f32), ((R, Hp), f32)]     # hidden carry, dec-input carry

    # VMEM budget derived from the actual resident set (double-buffered in/out
    # blocks + persistent scratch) instead of a hardcoded limit.
    def nbytes(shape, _dt):
        return math.prod(shape) * 4                       # all dtypes here are 4-byte
    resident = sum(2 * nbytes(s, d) for s, d in in_blocks)
    resident += sum(2 * nbytes(s, d) for s, d in out_blocks)
    resident += sum(nbytes(s, d) for s, d in scratch_blocks)
    vmem_limit = int(min(100 * 2**20, max(resident + (4 << 20), 8 << 20)))

    kernel = functools.partial(generator_kernel, use_tf=use_tf)
    return pl.pallas_call(
        kernel,
        grid=(L,),
        in_specs=in_specs,
        out_specs=out_specs,
        out_shape=out_shape,
        scratch_shapes=[pltpu.VMEM(s, d) for s, d in scratch_blocks],
        compiler_params=pltpu.CompilerParams(
            dimension_semantics=("arbitrary",),
            vmem_limit_bytes=vmem_limit),
    )


def generator_forward(params, encoded_hidden, encoded_outputs, encoded_lens, story,
                      max_res_len, target_batches, use_teacher_forcing,
                      slot_domain_idx, slot_slot_idx):
    """JAX wrapper reproducing Generator.forward (parallel_decode=True)."""
    B, T, H = encoded_outputs.shape
    S = int(slot_domain_idx.shape[0])
    V = params["emb"].shape[0]
    G = params["wg_w"].shape[0]
    L = int(max_res_len)

    # lane/sublane-aligned padded sizes
    Hp = _round_up(H, 128)
    Vp = _round_up(V, 128)
    Tp = _round_up(T, 128)
    Sp = _round_up(S, 8)
    R = B * Sp

    f32 = jnp.float32

    def pad2(a, rows, cols):
        return jnp.pad(a, ((0, rows - a.shape[0]), (0, cols - a.shape[1])))

    emb_p = pad2(params["emb"].astype(f32), Vp, Hp)                      # (Vp, Hp), pad rows = 0

    # slot/domain embedding -> initial decoder input, batch-major rows (row = b*Sp + s)
    slot_emb_p = jnp.pad(params["slot_emb"].astype(f32), ((0, 0), (0, Hp - H)))
    combined = slot_emb_p[slot_domain_idx] + slot_emb_p[slot_slot_idx]   # (S, Hp)
    combined = jnp.pad(combined, ((0, Sp - S), (0, 0)))                  # (Sp, Hp)
    dec_init = jnp.broadcast_to(combined[None], (B, Sp, Hp)).reshape(R, Hp)

    hid0 = jnp.pad(encoded_hidden[0].astype(f32), ((0, 0), (0, Hp - H)))  # (B, Hp)
    hid_init = jnp.broadcast_to(hid0[:, None, :], (B, Sp, Hp)).reshape(R, Hp)

    enc_p = jnp.pad(encoded_outputs.astype(f32), ((0, 0), (0, Tp - T), (0, Hp - H)))

    t_iota = jnp.arange(Tp)[None, :]
    mask = jnp.where(t_iota < encoded_lens[:, None], 0.0, -1e30).astype(f32)
    mask = mask[:, None, :]                                              # (B, 1, Tp)

    story_p = jnp.pad(story.astype(jnp.int32), ((0, 0), (0, Tp - T)))[:, :, None]  # (B, Tp, 1)

    v_iota = jnp.arange(Vp)[None, :]
    vmask = jnp.where(v_iota < V, 0.0, -1e30).astype(f32)                # (1, Vp) vocab pad mask

    # split + pre-transpose + pad GRU / projection weights: lane-aligned per-gate
    # (Hp, Hp) blocks, no .T and no (., 3H) slicing inside the kernel.
    w_ih, w_hh = params["w_ih"].astype(f32), params["w_hh"].astype(f32)  # (3H, H), order r,z,n
    w_ir, w_iz, w_in = [pad2(w_ih[i * H:(i + 1) * H].T, Hp, Hp) for i in range(3)]
    w_hr, w_hz, w_hn = [pad2(w_hh[i * H:(i + 1) * H].T, Hp, Hp) for i in range(3)]
    b_ih = params["b_ih"].reshape(3 * H).astype(f32)
    b_hh = params["b_hh"].reshape(3 * H).astype(f32)
    pad_row = lambda v: jnp.pad(v.reshape(1, H), ((0, 0), (0, Hp - H)))
    b_r = pad_row(b_ih[:H] + b_hh[:H])
    b_z = pad_row(b_ih[H:2 * H] + b_hh[H:2 * H])
    b_in = pad_row(b_ih[2 * H:])
    b_hn = pad_row(b_hh[2 * H:])

    wr = params["wr_w"].astype(f32)                                      # (1, 3H): [h_new, ctx, x]
    pad_col = lambda v: jnp.pad(v.reshape(H, 1), ((0, Hp - H), (0, 0)))
    wr_h, wr_c, wr_x = pad_col(wr[0, :H]), pad_col(wr[0, H:2 * H]), pad_col(wr[0, 2 * H:])
    wr_b = params["wr_b"].reshape(1, 1).astype(f32)
    wg_T = jnp.pad(params["wg_w"].astype(f32).T, ((0, Hp - H), (0, 0)))  # (Hp, G)
    wg_b = params["wg_b"].reshape(1, G).astype(f32)

    args = [dec_init, hid_init, enc_p, mask, story_p, emb_p, vmask,
            w_ir, w_iz, w_in, w_hr, w_hz, w_hn, b_r, b_z, b_in, b_hn,
            wr_h, wr_c, wr_x, wr_b, wg_T, wg_b]
    if use_teacher_forcing:
        # pre-embed teacher-forcing tokens on host; streamed one step-block at a time
        tgt = jnp.pad(target_batches.astype(jnp.int32), ((0, 0), (0, Sp - S), (0, 0)))  # (B,Sp,L)
        tf_tok = jnp.transpose(tgt, (2, 0, 1)).reshape(L, R)             # tf[l, b*Sp+s]
        args.append(emb_p[tf_tok])                                       # (L, R, Hp)

    call = make_generator_call(B, Sp, Tp, Hp, Vp, G, L, bool(use_teacher_forcing))
    point_bm, gate_bm, pred_bm = call(*args)

    # strip padding, reorder batch-major rows -> (slot, batch, ...) PyTorch layout
    point = point_bm.reshape(L, B, Sp, Vp)[:, :, :S, :V]
    all_point_outputs = jnp.transpose(point, (2, 1, 0, 3))               # (S, B, L, V)
    all_gate_outputs = jnp.transpose(gate_bm.reshape(B, Sp, G)[:, :S], (1, 0, 2))  # (S, B, G)
    # TODO(synk): lang.index2word string lookup has no JAX/Pallas equivalent;
    # words_point_out is returned as predicted token ids of shape (S, B, L).
    words_point_out = jnp.transpose(pred_bm.reshape(L, B, Sp)[:, :, :S], (2, 1, 0))
    return all_point_outputs, all_gate_outputs, words_point_out, []


def init_params(key, vocab_size, hidden_size, nb_gate, n_slot_words):
    ks = jax.random.split(key, 10)
    f = jnp.float32
    H = hidden_size
    return {
        "emb": 0.1 * jax.random.normal(ks[0], (vocab_size, H), f),       # shared embedding
        "slot_emb": 0.1 * jax.random.normal(ks[1], (n_slot_words, H), f),
        "w_ih": 0.1 * jax.random.normal(ks[2], (3 * H, H), f),           # GRU weight_ih_l0
        "w_hh": 0.1 * jax.random.normal(ks[3], (3 * H, H), f),           # GRU weight_hh_l0
        "b_ih": 0.1 * jax.random.normal(ks[4], (1, 3 * H), f),
        "b_hh": 0.1 * jax.random.normal(ks[5], (1, 3 * H), f),
        "wr_w": 0.1 * jax.random.normal(ks[6], (1, 3 * H), f),           # W_ratio
        "wr_b": 0.1 * jax.random.normal(ks[7], (1, 1), f),
        "wg_w": 0.1 * jax.random.normal(ks[8], (nb_gate, H), f),         # W_gate
        "wg_b": 0.1 * jax.random.normal(ks[9], (1, nb_gate), f),
    }


if __name__ == "__main__":
    key = jax.random.PRNGKey(0)

    # small, module-consistent shapes
    batch_size = 2
    hidden_size = 32
    vocab_size = 64
    nb_gate = 3
    seq_len = 8            # story / encoder length
    max_res_len = 4

    slots = ["hotel-pricerange", "hotel-type", "train-day"]
    slot_w2i = {}
    for s in slots:
        for part in s.split("-"):
            if part not in slot_w2i:
                slot_w2i[part] = len(slot_w2i)
    slot_domain_idx = jnp.array([slot_w2i[s.split("-")[0]] for s in slots], jnp.int32)
    slot_slot_idx = jnp.array([slot_w2i[s.split("-")[1]] for s in slots], jnp.int32)

    params = init_params(key, vocab_size, hidden_size, nb_gate, len(slot_w2i))

    k1, k2, k3, k4 = jax.random.split(jax.random.PRNGKey(1), 4)
    encoded_hidden = jax.random.normal(k1, (1, batch_size, hidden_size), jnp.float32)
    encoded_outputs = jax.random.normal(k2, (batch_size, seq_len, hidden_size), jnp.float32)
    encoded_lens = jnp.array([seq_len, 5], jnp.int32)
    story = jax.random.randint(k3, (batch_size, seq_len), 0, vocab_size, jnp.int32)
    target_batches = jax.random.randint(
        k4, (batch_size, len(slots), max_res_len), 0, vocab_size, jnp.int32)

    all_point, all_gate, words_idx, _ = generator_forward(
        params, encoded_hidden, encoded_outputs, encoded_lens, story,
        max_res_len, target_batches, use_teacher_forcing=False,
        slot_domain_idx=slot_domain_idx, slot_slot_idx=slot_slot_idx)
    jax.block_until_ready((all_point, all_gate, words_idx))

    assert all_point.shape == (len(slots), batch_size, max_res_len, vocab_size)
    assert all_gate.shape == (len(slots), batch_size, nb_gate)
    assert words_idx.shape == (len(slots), batch_size, max_res_len)
    # final_p is a convex mix of two probability distributions -> rows sum to ~1
    row_sums = jnp.sum(all_point, axis=-1)
    assert bool(jnp.all(jnp.abs(row_sums - 1.0) < 1e-2))

    # exercise the teacher-forcing variant as well
    tf_point, tf_gate, tf_words, _ = generator_forward(
        params, encoded_hidden, encoded_outputs, encoded_lens, story,
        max_res_len, target_batches, use_teacher_forcing=True,
        slot_domain_idx=slot_domain_idx, slot_slot_idx=slot_slot_idx)
    jax.block_until_ready((tf_point, tf_gate, tf_words))
    assert tf_point.shape == all_point.shape

    print("KERNEL_OK")
</pallas_src>

<mosaic_0001>
module attributes {stable_mosaic.version = 11 : i64} {
  func.func @generator_kernel(%arg0: i32, %arg1: memref<16x128xf32, #tpu.memory_space<vmem>>, %arg2: memref<16x128xf32, #tpu.memory_space<vmem>>, %arg3: memref<2x128x128xf32, #tpu.memory_space<vmem>>, %arg4: memref<2x1x128xf32, #tpu.memory_space<vmem>>, %arg5: memref<2x128x1xi32, #tpu.memory_space<vmem>>, %arg6: memref<128x128xf32, #tpu.memory_space<vmem>>, %arg7: memref<1x128xf32, #tpu.memory_space<vmem>>, %arg8: memref<128x128xf32, #tpu.memory_space<vmem>>, %arg9: memref<128x128xf32, #tpu.memory_space<vmem>>, %arg10: memref<128x128xf32, #tpu.memory_space<vmem>>, %arg11: memref<128x128xf32, #tpu.memory_space<vmem>>, %arg12: memref<128x128xf32, #tpu.memory_space<vmem>>, %arg13: memref<128x128xf32, #tpu.memory_space<vmem>>, %arg14: memref<1x128xf32, #tpu.memory_space<vmem>>, %arg15: memref<1x128xf32, #tpu.memory_space<vmem>>, %arg16: memref<1x128xf32, #tpu.memory_space<vmem>>, %arg17: memref<1x128xf32, #tpu.memory_space<vmem>>, %arg18: memref<128x1xf32, #tpu.memory_space<vmem>>, %arg19: memref<128x1xf32, #tpu.memory_space<vmem>>, %arg20: memref<128x1xf32, #tpu.memory_space<vmem>>, %arg21: memref<1x1xf32, #tpu.memory_space<vmem>>, %arg22: memref<128x3xf32, #tpu.memory_space<vmem>>, %arg23: memref<1x3xf32, #tpu.memory_space<vmem>>, %arg24: memref<1x16x128xf32, #tpu.memory_space<vmem>>, %arg25: memref<16x3xf32, #tpu.memory_space<vmem>>, %arg26: memref<1x16x1xi32, #tpu.memory_space<vmem>>, %arg27: memref<16x128xf32, #tpu.memory_space<vmem>>, %arg28: memref<16x128xf32, #tpu.memory_space<vmem>>) attributes {dimension_semantics = [#tpu.dimension_semantics<arbitrary>], iteration_bounds = array<i64: 4>, scalar_prefetch = 0 : i64, scratch_operands = 2 : i64, tpu.core_type = #tpu.core_type<tc>, window_params = [{pipeline_mode = #tpu.pipeline_mode<synchronous>, transform_indices = @transform_0, window_bounds = array<i64: 16, 128>}, {pipeline_mode = #tpu.pipeline_mode<synchronous>, transform_indices = @transform_1, window_bounds = array<i64: 16, 128>}, {pipeline_mode = #tpu.pipeline_mode<synchronous>, transform_indices = @transform_2, window_bounds = array<i64: 2, 128, 128>}, {pipeline_mode = #tpu.pipeline_mode<synchronous>, transform_indices = @transform_3, window_bounds = array<i64: 2, 1, 128>}, {pipeline_mode = #tpu.pipeline_mode<synchronous>, transform_indices = @transform_4, window_bounds = array<i64: 2, 128, 1>}, {pipeline_mode = #tpu.pipeline_mode<synchronous>, transform_indices = @transform_5, window_bounds = array<i64: 128, 128>}, {pipeline_mode = #tpu.pipeline_mode<synchronous>, transform_indices = @transform_6, window_bounds = array<i64: 1, 128>}, {pipeline_mode = #tpu.pipeline_mode<synchronous>, transform_indices = @transform_7, window_bounds = array<i64: 128, 128>}, {pipeline_mode = #tpu.pipeline_mode<synchronous>, transform_indices = @transform_8, window_bounds = array<i64: 128, 128>}, {pipeline_mode = #tpu.pipeline_mode<synchronous>, transform_indices = @transform_9, window_bounds = array<i64: 128, 128>}, {pipeline_mode = #tpu.pipeline_mode<synchronous>, transform_indices = @transform_10, window_bounds = array<i64: 128, 128>}, {pipeline_mode = #tpu.pipeline_mode<synchronous>, transform_indices = @transform_11, window_bounds = array<i64: 128, 128>}, {pipeline_mode = #tpu.pipeline_mode<synchronous>, transform_indices = @transform_12, window_bounds = array<i64: 128, 128>}, {pipeline_mode = #tpu.pipeline_mode<synchronous>, transform_indices = @transform_13, window_bounds = array<i64: 1, 128>}, {pipeline_mode = #tpu.pipeline_mode<synchronous>, transform_indices = @transform_14, window_bounds = array<i64: 1, 128>}, {pipeline_mode = #tpu.pipeline_mode<synchronous>, transform_indices = @transform_15, window_bounds = array<i64: 1, 128>}, {pipeline_mode = #tpu.pipeline_mode<synchronous>, transform_indices = @transform_16, window_bounds = array<i64: 1, 128>}, {pipeline_mode = #tpu.pipeline_mode<synchronous>, transform_indices = @transform_17, window_bounds = array<i64: 128, 1>}, {pipeline_mode = #tpu.pipeline_mode<synchronous>, transform_indices = @transform_18, window_bounds = array<i64: 128, 1>}, {pipeline_mode = #tpu.pipeline_mode<synchronous>, transform_indices = @transform_19, window_bounds = array<i64: 128, 1>}, {pipeline_mode = #tpu.pipeline_mode<synchronous>, transform_indices = @transform_20, window_bounds = array<i64: 1, 1>}, {pipeline_mode = #tpu.pipeline_mode<synchronous>, transform_indices = @transform_21, window_bounds = array<i64: 128, 3>}, {pipeline_mode = #tpu.pipeline_mode<synchronous>, transform_indices = @transform_22, window_bounds = array<i64: 1, 3>}, {transform_indices = @transform_23, window_bounds = array<i64: 1, 16, 128>}, {pipeline_mode = #tpu.pipeline_mode<synchronous>, transform_indices = @transform_24, window_bounds = array<i64: 16, 3>}, {transform_indices = @transform_25, window_bounds = array<i64: 1, 16, 1>}]} {
    %c0_i32 = arith.constant 0 : i32
    %0 = arith.cmpi eq, %arg0, %c0_i32 : i32
    %1 = arith.extui %0 : i1 to i32
    %c0_i32_0 = arith.constant 0 : i32
    %2 = arith.cmpi ne, %1, %c0_i32_0 : i32
    scf.if %2 {
      %c0_79 = arith.constant 0 : index
      %c0_80 = arith.constant 0 : index
      %135 = vector.load %arg1[%c0_79, %c0_80] : memref<16x128xf32, #tpu.memory_space<vmem>>, vector<16x128xf32>
      %c0_81 = arith.constant 0 : index
      %c0_82 = arith.constant 0 : index
      %136 = vector.load %arg28[%c0_81, %c0_82] : memref<16x128xf32, #tpu.memory_space<vmem>>, vector<16x128xf32>
      tpu.vector_store %arg28[%c0_81, %c0_82], %135 {strides = array<i32>} : memref<16x128xf32, #tpu.memory_space<vmem>>, vector<16x128xf32>,
      %c0_83 = arith.constant 0 : index
      %c0_84 = arith.constant 0 : index
      %137 = vector.load %arg2[%c0_83, %c0_84] : memref<16x128xf32, #tpu.memory_space<vmem>>, vector<16x128xf32>
      %c0_85 = arith.constant 0 : index
      %c0_86 = arith.constant 0 : index
      %138 = vector.load %arg27[%c0_85, %c0_86] : memref<16x128xf32, #tpu.memory_space<vmem>>, vector<16x128xf32>
      tpu.vector_store %arg27[%c0_85, %c0_86], %137 {strides = array<i32>} : memref<16x128xf32, #tpu.memory_space<vmem>>, vector<16x128xf32>,
    } else {
    }
    %c0 = arith.constant 0 : index
    %c0_1 = arith.constant 0 : index
    %3 = vector.load %arg28[%c0, %c0_1] : memref<16x128xf32, #tpu.memory_space<vmem>>, vector<16x128xf32>
    %c0_2 = arith.constant 0 : index
    %c0_3 = arith.constant 0 : index
    %4 = vector.load %arg27[%c0_2, %c0_3] : memref<16x128xf32, #tpu.memory_space<vmem>>, vector<16x128xf32>
    %c0_4 = arith.constant 0 : index
    %c0_5 = arith.constant 0 : index
    %5 = vector.load %arg8[%c0_4, %c0_5] : memref<128x128xf32, #tpu.memory_space<vmem>>, vector<128x128xf32>
    %cst = arith.constant dense<0.000000e+00> : vector<16x128xf32>
    %6 = tpu.matmul %3, %5, %cst {dimension_numbers = #tpu.dot_dimension_numbers<[1], [0], [0], [1], [0, 0, 1, 1], [], []>} : vector<16x128xf32>, vector<128x128xf32>, vector<16x128xf32> -> vector<16x128xf32>
    %c0_6 = arith.constant 0 : index
    %c0_7 = arith.constant 0 : index
    %7 = vector.load %arg11[%c0_6, %c0_7] : memref<128x128xf32, #tpu.memory_space<vmem>>, vector<128x128xf32>
    %cst_8 = arith.constant dense<0.000000e+00> : vector<16x128xf32>
    %8 = tpu.matmul %4, %7, %cst_8 {dimension_numbers = #tpu.dot_dimension_numbers<[1], [0], [0], [1], [0, 0, 1, 1], [], []>} : vector<16x128xf32>, vector<128x128xf32>, vector<16x128xf32> -> vector<16x128xf32>
    %9 = arith.addf %6, %8 : vector<16x128xf32>
    %c0_9 = arith.constant 0 : index
    %c0_10 = arith.constant 0 : index
    %10 = vector.load %arg14[%c0_9, %c0_10] : memref<1x128xf32, #tpu.memory_space<vmem>>, vector<1x128xf32>
    %11 = vector.broadcast %10 : vector<1x128xf32> to vector<16x128xf32>
    %12 = arith.addf %9, %11 : vector<16x128xf32>
    %13 = arith.negf %12 : vector<16x128xf32>
    %14 = math.exp %13 : vector<16x128xf32>
    %cst_11 = arith.constant 1.000000e+00 : f32
    %15 = vector.broadcast %cst_11 : f32 to vector<16x128xf32>
    %16 = arith.addf %15, %14 : vector<16x128xf32>
    %17 = arith.divf %15, %16 : vector<16x128xf32>
    %c0_12 = arith.constant 0 : index
    %c0_13 = arith.constant 0 : index
    %18 = vector.load %arg9[%c0_12, %c0_13] : memref<128x128xf32, #tpu.memory_space<vmem>>, vector<128x128xf32>
    %cst_14 = arith.constant dense<0.000000e+00> : vector<16x128xf32>
    %19 = tpu.matmul %3, %18, %cst_14 {dimension_numbers = #tpu.dot_dimension_numbers<[1], [0], [0], [1], [0, 0, 1, 1], [], []>} : vector<16x128xf32>, vector<128x128xf32>, vector<16x128xf32> -> vector<16x128xf32>
    %c0_15 = arith.constant 0 : index
    %c0_16 = arith.constant 0 : index
    %20 = vector.load %arg12[%c0_15, %c0_16] : memref<128x128xf32, #tpu.memory_space<vmem>>, vector<128x128xf32>
    %cst_17 = arith.constant dense<0.000000e+00> : vector<16x128xf32>
    %21 = tpu.matmul %4, %20, %cst_17 {dimension_numbers = #tpu.dot_dimension_numbers<[1], [0], [0], [1], [0, 0, 1, 1], [], []>} : vector<16x128xf32>, vector<128x128xf32>, vector<16x128xf32> -> vector<16x128xf32>
    %22 = arith.addf %19, %21 : vector<16x128xf32>
    %c0_18 = arith.constant 0 : index
    %c0_19 = arith.constant 0 : index
    %23 = vector.load %arg15[%c0_18, %c0_19] : memref<1x128xf32, #tpu.memory_space<vmem>>, vector<1x128xf32>
    %24 = vector.broadcast %23 : vector<1x128xf32> to vector<16x128xf32>
    %25 = arith.addf %22, %24 : vector<16x128xf32>
    %26 = arith.negf %25 : vector<16x128xf32>
    %27 = math.exp %26 : vector<16x128xf32>
    %cst_20 = arith.constant 1.000000e+00 : f32
    %28 = vector.broadcast %cst_20 : f32 to vector<16x128xf32>
    %29 = arith.addf %28, %27 : vector<16x128xf32>
    %30 = arith.divf %28, %29 : vector<16x128xf32>
    %c0_21 = arith.constant 0 : index
    %c0_22 = arith.constant 0 : index
    %31 = vector.load %arg10[%c0_21, %c0_22] : memref<128x128xf32, #tpu.memory_space<vmem>>, vector<128x128xf32>
    %cst_23 = arith.constant dense<0.000000e+00> : vector<16x128xf32>
    %32 = tpu.matmul %3, %31, %cst_23 {dimension_numbers = #tpu.dot_dimension_numbers<[1], [0], [0], [1], [0, 0, 1, 1], [], []>} : vector<16x128xf32>, vector<128x128xf32>, vector<16x128xf32> -> vector<16x128xf32>
    %c0_24 = arith.constant 0 : index
    %c0_25 = arith.constant 0 : index
    %33 = vector.load %arg16[%c0_24, %c0_25] : memref<1x128xf32, #tpu.memory_space<vmem>>, vector<1x128xf32>
    %34 = vector.broadcast %33 : vector<1x128xf32> to vector<16x128xf32>
    %35 = arith.addf %32, %34 : vector<16x128xf32>
    %c0_26 = arith.constant 0 : index
    %c0_27 = arith.constant 0 : index
    %36 = vector.load %arg13[%c0_26, %c0_27] : memref<128x128xf32, #tpu.memory_space<vmem>>, vector<128x128xf32>
    %cst_28 = arith.constant dense<0.000000e+00> : vector<16x128xf32>
    %37 = tpu.matmul %4, %36, %cst_28 {dimension_numbers = #tpu.dot_dimension_numbers<[1], [0], [0], [1], [0, 0, 1, 1], [], []>} : vector<16x128xf32>, vector<128x128xf32>, vector<16x128xf32> -> vector<16x128xf32>
    %c0_29 = arith.constant 0 : index
    %c0_30 = arith.constant 0 : index
    %38 = vector.load %arg17[%c0_29, %c0_30] : memref<1x128xf32, #tpu.memory_space<vmem>>, vector<1x128xf32>
    %39 = vector.broadcast %38 : vector<1x128xf32> to vector<16x128xf32>
    %40 = arith.addf %37, %39 : vector<16x128xf32>
    %41 = arith.mulf %17, %40 : vector<16x128xf32>
    %42 = arith.addf %35, %41 : vector<16x128xf32>
    %43 = math.tanh %42 : vector<16x128xf32>
    %cst_31 = arith.constant 1.000000e+00 : f32
    %44 = vector.broadcast %cst_31 : f32 to vector<16x128xf32>
    %45 = arith.subf %44, %30 : vector<16x128xf32>
    %46 = arith.mulf %45, %43 : vector<16x128xf32>
    %47 = arith.mulf %30, %4 : vector<16x128xf32>
    %48 = arith.addf %46, %47 : vector<16x128xf32>
    %c0_32 = arith.constant 0 : index
    %c0_33 = arith.constant 0 : index
    %49 = vector.load %arg27[%c0_32, %c0_33] : memref<16x128xf32, #tpu.memory_space<vmem>>, vector<16x128xf32>
    tpu.vector_store %arg27[%c0_32, %c0_33], %48 {strides = array<i32>} : memref<16x128xf32, #tpu.memory_space<vmem>>, vector<16x128xf32>,
    %c0_34 = arith.constant 0 : index
    %c0_35 = arith.constant 0 : index
    %c0_36 = arith.constant 0 : index
    %50 = vector.load %arg3[%c0_34, %c0_35, %c0_36] : memref<2x128x128xf32, #tpu.memory_space<vmem>>, vector<2x128x128xf32>
    %51 = vector.shape_cast %48 : vector<16x128xf32> to vector<2x8x128xf32>
    "tpu.trace_start"() <{level = 10 : i32, message = "bsh,bth->bst"}> : () -> ()
    %cst_37 = arith.constant dense<0.000000e+00> : vector<2x8x128xf32>
    %52 = tpu.matmul %51, %50, %cst_37 {dimension_numbers = #tpu.dot_dimension_numbers<[2], [2], [1], [1], [0, 0, 0, 1, 1, 1], [0], [0]>} : vector<2x8x128xf32>, vector<2x128x128xf32>, vector<2x8x128xf32> -> vector<2x8x128xf32>
    "tpu.trace_stop"() : () -> ()
    %c0_38 = arith.constant 0 : index
    %c0_39 = arith.constant 0 : index
    %c0_40 = arith.constant 0 : index
    %53 = vector.load %arg4[%c0_38, %c0_39, %c0_40] : memref<2x1x128xf32, #tpu.memory_space<vmem>>, vector<2x1x128xf32>
    %54 = vector.broadcast %53 : vector<2x1x128xf32> to vector<2x8x128xf32>
    %55 = arith.addf %52, %54 : vector<2x8x128xf32>
    %cst_41 = arith.constant dense<0xFF800000> : vector<2x8xf32>
    %56 = vector.multi_reduction <maximumf>, %55, %cst_41 [2] : vector<2x8x128xf32> to vector<2x8xf32>
    %57 = vector.shape_cast %56 : vector<2x8xf32> to vector<2x8x1xf32>
    %58 = vector.broadcast %57 : vector<2x8x1xf32> to vector<2x8x128xf32>
    %59 = arith.subf %55, %58 : vector<2x8x128xf32>
    %60 = math.exp %59 : vector<2x8x128xf32>
    %cst_42 = arith.constant dense<0.000000e+00> : vector<2x8xf32>
    %61 = vector.multi_reduction <add>, %60, %cst_42 [2] : vector<2x8x128xf32> to vector<2x8xf32>
    %62 = vector.shape_cast %61 : vector<2x8xf32> to vector<2x8x1xf32>
    %63 = vector.broadcast %62 : vector<2x8x1xf32> to vector<2x8x128xf32>
    %64 = arith.divf %60, %63 : vector<2x8x128xf32>
    "tpu.trace_start"() <{level = 10 : i32, message = "bst,bth->bsh"}> : () -> ()
    %cst_43 = arith.constant dense<0.000000e+00> : vector<2x8x128xf32>
    %65 = tpu.matmul %64, %50, %cst_43 {dimension_numbers = #tpu.dot_dimension_numbers<[2], [1], [1], [2], [0, 0, 0, 1, 1, 2], [0], [0]>} : vector<2x8x128xf32>, vector<2x128x128xf32>, vector<2x8x128xf32> -> vector<2x8x128xf32>
    "tpu.trace_stop"() : () -> ()
    %66 = vector.shape_cast %65 : vector<2x8x128xf32> to vector<16x128xf32>
    %67 = tpu.iota {dimensions = array<i32: 2>} : vector<1x1x128xi32>
    %c0_44 = arith.constant 0 : index
    %c0_45 = arith.constant 0 : index
    %c0_46 = arith.constant 0 : index
    %68 = vector.load %arg5[%c0_44, %c0_45, %c0_46] : memref<2x128x1xi32, #tpu.memory_space<vmem>>, vector<2x128x1xi32>
    %69 = vector.broadcast %68 : vector<2x128x1xi32> to vector<2x128x128xi32>
    %70 = vector.broadcast %67 : vector<1x1x128xi32> to vector<2x128x128xi32>
    %71 = arith.cmpi eq, %69, %70 : vector<2x128x128xi32>
    %72 = arith.extui %71 : vector<2x128x128xi1> to vector<2x128x128xi32>
    %73 = arith.sitofp %72 : vector<2x128x128xi32> to vector<2x128x128xf32>
    "tpu.trace_start"() <{level = 10 : i32, message = "bst,btv->bsv"}> : () -> ()
    %cst_47 = arith.constant dense<0.000000e+00> : vector<2x8x128xf32>
    %74 = tpu.matmul %64, %73, %cst_47 {dimension_numbers = #tpu.dot_dimension_numbers<[2], [1], [1], [2], [0, 0, 0, 1, 1, 2], [0], [0]>} : vector<2x8x128xf32>, vector<2x128x128xf32>, vector<2x8x128xf32> -> vector<2x8x128xf32>
    "tpu.trace_stop"() : () -> ()
    %75 = vector.shape_cast %74 : vector<2x8x128xf32> to vector<16x128xf32>
    %c0_i32_48 = arith.constant 0 : i32
    %76 = arith.cmpi eq, %arg0, %c0_i32_48 : i32
    %77 = arith.extui %76 : i1 to i32
    %c0_i32_49 = arith.constant 0 : i32
    %78 = arith.cmpi ne, %77, %c0_i32_49 : i32
    scf.if %78 {
      %c0_79 = arith.constant 0 : index
      %c0_80 = arith.constant 0 : index
      %135 = vector.load %arg22[%c0_79, %c0_80] : memref<128x3xf32, #tpu.memory_space<vmem>>, vector<128x3xf32>
      %cst_81 = arith.constant dense<0.000000e+00> : vector<16x3xf32>
      %136 = tpu.matmul %66, %135, %cst_81 {dimension_numbers = #tpu.dot_dimension_numbers<[1], [0], [0], [1], [0, 0, 1, 1], [], []>} : vector<16x128xf32>, vector<128x3xf32>, vector<16x3xf32> -> vector<16x3xf32>
      %c0_82 = arith.constant 0 : index
      %c0_83 = arith.constant 0 : index
      %137 = vector.load %arg23[%c0_82, %c0_83] : memref<1x3xf32, #tpu.memory_space<vmem>>, vector<1x3xf32>
      %138 = vector.broadcast %137 : vector<1x3xf32> to vector<16x3xf32>
      %139 = arith.addf %136, %138 : vector<16x3xf32>
      %c0_84 = arith.constant 0 : index
      %c0_85 = arith.constant 0 : index
      %140 = vector.load %arg25[%c0_84, %c0_85] : memref<16x3xf32, #tpu.memory_space<vmem>>, vector<16x3xf32>
      tpu.vector_store %arg25[%c0_84, %c0_85], %139 {strides = array<i32>} : memref<16x3xf32, #tpu.memory_space<vmem>>, vector<16x3xf32>,
    } else {
    }
    %c0_50 = arith.constant 0 : index
    %c0_51 = arith.constant 0 : index
    %79 = vector.load %arg6[%c0_50, %c0_51] : memref<128x128xf32, #tpu.memory_space<vmem>>, vector<128x128xf32>
    "tpu.trace_start"() <{level = 10 : i32, message = "rh,vh->rv"}> : () -> ()
    %cst_52 = arith.constant dense<0.000000e+00> : vector<16x128xf32>
    %80 = tpu.matmul %48, %79, %cst_52 {dimension_numbers = #tpu.dot_dimension_numbers<[1], [1], [0], [0], [0, 0, 1, 0], [], []>} : vector<16x128xf32>, vector<128x128xf32>, vector<16x128xf32> -> vector<16x128xf32>
    "tpu.trace_stop"() : () -> ()
    %c0_53 = arith.constant 0 : index
    %c0_54 = arith.constant 0 : index
    %81 = vector.load %arg7[%c0_53, %c0_54] : memref<1x128xf32, #tpu.memory_space<vmem>>, vector<1x128xf32>
    %82 = vector.broadcast %81 : vector<1x128xf32> to vector<16x128xf32>
    %83 = arith.addf %80, %82 : vector<16x128xf32>
    %cst_55 = arith.constant dense<0xFF800000> : vector<16xf32>
    %84 = vector.multi_reduction <maximumf>, %83, %cst_55 [1] : vector<16x128xf32> to vector<16xf32>
    %85 = vector.shape_cast %84 : vector<16xf32> to vector<16x1xf32>
    %86 = vector.broadcast %85 : vector<16x1xf32> to vector<16x128xf32>
    %87 = arith.subf %83, %86 : vector<16x128xf32>
    %88 = math.exp %87 : vector<16x128xf32>
    %cst_56 = arith.constant dense<0.000000e+00> : vector<16xf32>
    %89 = vector.multi_reduction <add>, %88, %cst_56 [1] : vector<16x128xf32> to vector<16xf32>
    %90 = vector.shape_cast %89 : vector<16xf32> to vector<16x1xf32>
    %91 = vector.broadcast %90 : vector<16x1xf32> to vector<16x128xf32>
    %92 = arith.divf %88, %91 : vector<16x128xf32>
    %c0_57 = arith.constant 0 : index
    %c0_58 = arith.constant 0 : index
    %93 = vector.load %arg18[%c0_57, %c0_58] : memref<128x1xf32, #tpu.memory_space<vmem>>, vector<128x1xf32>
    %cst_59 = arith.constant dense<0.000000e+00> : vector<16x1xf32>
    %94 = tpu.matmul %48, %93, %cst_59 {dimension_numbers = #tpu.dot_dimension_numbers<[1], [0], [0], [1], [0, 0, 1, 1], [], []>} : vector<16x128xf32>, vector<128x1xf32>, vector<16x1xf32> -> vector<16x1xf32>
    %c0_60 = arith.constant 0 : index
    %c0_61 = arith.constant 0 : index
    %95 = vector.load %arg19[%c0_60, %c0_61] : memref<128x1xf32, #tpu.memory_space<vmem>>, vector<128x1xf32>
    %cst_62 = arith.constant dense<0.000000e+00> : vector<16x1xf32>
    %96 = tpu.matmul %66, %95, %cst_62 {dimension_numbers = #tpu.dot_dimension_numbers<[1], [0], [0], [1], [0, 0, 1, 1], [], []>} : vector<16x128xf32>, vector<128x1xf32>, vector<16x1xf32> -> vector<16x1xf32>
    %97 = arith.addf %94, %96 : vector<16x1xf32>
    %c0_63 = arith.constant 0 : index
    %c0_64 = arith.constant 0 : index
    %98 = vector.load %arg20[%c0_63, %c0_64] : memref<128x1xf32, #tpu.memory_space<vmem>>, vector<128x1xf32>
    %cst_65 = arith.constant dense<0.000000e+00> : vector<16x1xf32>
    %99 = tpu.matmul %3, %98, %cst_65 {dimension_numbers = #tpu.dot_dimension_numbers<[1], [0], [0], [1], [0, 0, 1, 1], [], []>} : vector<16x128xf32>, vector<128x1xf32>, vector<16x1xf32> -> vector<16x1xf32>
    %100 = arith.addf %97, %99 : vector<16x1xf32>
    %c0_66 = arith.constant 0 : index
    %c0_67 = arith.constant 0 : index
    %101 = vector.load %arg21[%c0_66, %c0_67] : memref<1x1xf32, #tpu.memory_space<vmem>>, vector<1x1xf32>
    %102 = vector.broadcast %101 : vector<1x1xf32> to vector<16x1xf32>
    %103 = arith.addf %100, %102 : vector<16x1xf32>
    %104 = arith.negf %103 : vector<16x1xf32>
    %105 = math.exp %104 : vector<16x1xf32>
    %cst_68 = arith.constant 1.000000e+00 : f32
    %106 = vector.broadcast %cst_68 : f32 to vector<16x1xf32>
    %107 = arith.addf %106, %105 : vector<16x1xf32>
    %108 = arith.divf %106, %107 : vector<16x1xf32>
    %cst_69 = arith.constant 1.000000e+00 : f32
    %109 = vector.broadcast %cst_69 : f32 to vector<16x1xf32>
    %110 = arith.subf %109, %108 : vector<16x1xf32>
    %111 = vector.broadcast %110 : vector<16x1xf32> to vector<16x128xf32>
    %112 = arith.mulf %111, %75 : vector<16x128xf32>
    %113 = vector.broadcast %108 : vector<16x1xf32> to vector<16x128xf32>
    %114 = arith.mulf %113, %92 : vector<16x128xf32>
    %115 = arith.addf %112, %114 : vector<16x128xf32>
    %c0_70 = arith.constant 0 : index
    %c0_71 = arith.constant 0 : index
    %c0_72 = arith.constant 0 : index
    %116 = vector.load %arg24[%c0_70, %c0_71, %c0_72] : memref<1x16x128xf32, #tpu.memory_space<vmem>>, vector<1x16x128xf32>
    %117 = vector.shape_cast %116 : vector<1x16x128xf32> to vector<16x128xf32>
    %118 = vector.shape_cast %115 : vector<16x128xf32> to vector<1x16x128xf32>
    tpu.vector_store %arg24[%c0_70, %c0_71, %c0_72], %118 {strides = array<i32>} : memref<1x16x128xf32, #tpu.memory_space<vmem>>, vector<1x16x128xf32>,
    %119 = tpu.iota {dimensions = array<i32: 1>} : vector<16x128xi32>
    %cst_73 = arith.constant dense<0xFF800000> : vector<16xf32>
    %120 = vector.multi_reduction <maximumf>, %115, %cst_73 [1] : vector<16x128xf32> to vector<16xf32>
    %121 = vector.shape_cast %120 : vector<16xf32> to vector<16x1xf32>
    %122 = vector.broadcast %121 : vector<16x1xf32> to vector<16x128xf32>
    %123 = arith.cmpf oeq, %115, %122 : vector<16x128xf32>
    %c128_i32 = arith.constant 128 : i32
    %124 = vector.broadcast %c128_i32 : i32 to vector<16x128xi32>
    %125 = arith.select %123, %119, %124 : vector<16x128xi1>, vector<16x128xi32>
    %cst_74 = arith.constant dense<2147483647> : vector<16xi32>
    %126 = vector.multi_reduction <minsi>, %125, %cst_74 [1] : vector<16x128xi32> to vector<16xi32>
    %127 = vector.shape_cast %126 : vector<16xi32> to vector<16x1xi32>
    %c0_75 = arith.constant 0 : index
    %c0_76 = arith.constant 0 : index
    %c0_77 = arith.constant 0 : index
    %128 = vector.load %arg26[%c0_75, %c0_76, %c0_77] : memref<1x16x1xi32, #tpu.memory_space<vmem>>, vector<1x16x1xi32>
    %129 = vector.shape_cast %128 : vector<1x16x1xi32> to vector<16x1xi32>
    %130 = vector.shape_cast %127 : vector<16x1xi32> to vector<1x16x1xi32>
    tpu.vector_store %arg26[%c0_75, %c0_76, %c0_77], %130 {strides = array<i32>} : memref<1x16x1xi32, #tpu.memory_space<vmem>>, vector<1x16x1xi32>,
    %c1_i32 = arith.constant 1 : i32
    %131 = arith.addi %arg0, %c1_i32 : i32
    %c4_i32 = arith.constant 4 : i32
    %132 = arith.cmpi slt, %131, %c4_i32 : i32
    %133 = arith.extui %132 : i1 to i32
    %c0_i32_78 = arith.constant 0 : i32
    %134 = arith.cmpi ne, %133, %c0_i32_78 : i32
    scf.if %134 {
      %135 = vector.broadcast %127 : vector<16x1xi32> to vector<16x128xi32>
      %136 = arith.cmpi eq, %135, %119 : vector<16x128xi32>
      %137 = arith.extui %136 : vector<16x128xi1> to vector<16x128xi32>
      %138 = arith.sitofp %137 : vector<16x128xi32> to vector<16x128xf32>
      %c0_79 = arith.constant 0 : index
      %c0_80 = arith.constant 0 : index
      %139 = vector.load %arg6[%c0_79, %c0_80] : memref<128x128xf32, #tpu.memory_space<vmem>>, vector<128x128xf32>
      %cst_81 = arith.constant dense<0.000000e+00> : vector<16x128xf32>
      %140 = tpu.matmul %138, %139, %cst_81 {dimension_numbers = #tpu.dot_dimension_numbers<[1], [0], [0], [1], [0, 0, 1, 1], [], []>} : vector<16x128xf32>, vector<128x128xf32>, vector<16x128xf32> -> vector<16x128xf32>
      %c0_82 = arith.constant 0 : index
      %c0_83 = arith.constant 0 : index
      %141 = vector.load %arg28[%c0_82, %c0_83] : memref<16x128xf32, #tpu.memory_space<vmem>>, vector<16x128xf32>
      tpu.vector_store %arg28[%c0_82, %c0_83], %140 {strides = array<i32>} : memref<16x128xf32, #tpu.memory_space<vmem>>, vector<16x128xf32>,
    } else {
    }
    return
  }
  func.func @transform_0(%arg0: i32) -> (i32, i32) {
    %c0_i32 = arith.constant 0 : i32
    %c0_i32_0 = arith.constant 0 : i32
    %c0_i32_1 = arith.constant 0 : i32
    return %c0_i32, %c0_i32_0 : i32, i32
  }
  func.func @transform_1(%arg0: i32) -> (i32, i32) {
    %c0_i32 = arith.constant 0 : i32
    %c0_i32_0 = arith.constant 0 : i32
    %c0_i32_1 = arith.constant 0 : i32
    return %c0_i32, %c0_i32_0 : i32, i32
  }
  func.func @transform_2(%arg0: i32) -> (i32, i32, i32) {
    %c0_i32 = arith.constant 0 : i32
    %c0_i32_0 = arith.constant 0 : i32
    %c0_i32_1 = arith.constant 0 : i32
    %c0_i32_2 = arith.constant 0 : i32
    return %c0_i32, %c0_i32_0, %c0_i32_1 : i32, i32, i32
  }
  func.func @transform_3(%arg0: i32) -> (i32, i32, i32) {
    %c0_i32 = arith.constant 0 : i32
    %c0_i32_0 = arith.constant 0 : i32
    %c0_i32_1 = arith.constant 0 : i32
    %c0_i32_2 = arith.constant 0 : i32
    return %c0_i32, %c0_i32_0, %c0_i32_1 : i32, i32, i32
  }
  func.func @transform_4(%arg0: i32) -> (i32, i32, i32) {
    %c0_i32 = arith.constant 0 : i32
    %c0_i32_0 = arith.constant 0 : i32
    %c0_i32_1 = arith.constant 0 : i32
    %c0_i32_2 = arith.constant 0 : i32
    return %c0_i32, %c0_i32_0, %c0_i32_1 : i32, i32, i32
  }
  func.func @transform_5(%arg0: i32) -> (i32, i32) {
    %c0_i32 = arith.constant 0 : i32
    %c0_i32_0 = arith.constant 0 : i32
    %c0_i32_1 = arith.constant 0 : i32
    return %c0_i32, %c0_i32_0 : i32, i32
  }
  func.func @transform_6(%arg0: i32) -> (i32, i32) {
    %c0_i32 = arith.constant 0 : i32
    %c0_i32_0 = arith.constant 0 : i32
    %c0_i32_1 = arith.constant 0 : i32
    return %c0_i32, %c0_i32_0 : i32, i32
  }
  func.func @transform_7(%arg0: i32) -> (i32, i32) {
    %c0_i32 = arith.constant 0 : i32
    %c0_i32_0 = arith.constant 0 : i32
    %c0_i32_1 = arith.constant 0 : i32
    return %c0_i32, %c0_i32_0 : i32, i32
  }
  func.func @transform_8(%arg0: i32) -> (i32, i32) {
    %c0_i32 = arith.constant 0 : i32
    %c0_i32_0 = arith.constant 0 : i32
    %c0_i32_1 = arith.constant 0 : i32
    return %c0_i32, %c0_i32_0 : i32, i32
  }
  func.func @transform_9(%arg0: i32) -> (i32, i32) {
    %c0_i32 = arith.constant 0 : i32
    %c0_i32_0 = arith.constant 0 : i32
    %c0_i32_1 = arith.constant 0 : i32
    return %c0_i32, %c0_i32_0 : i32, i32
  }
  func.func @transform_10(%arg0: i32) -> (i32, i32) {
    %c0_i32 = arith.constant 0 : i32
    %c0_i32_0 = arith.constant 0 : i32
    %c0_i32_1 = arith.constant 0 : i32
    return %c0_i32, %c0_i32_0 : i32, i32
  }
  func.func @transform_11(%arg0: i32) -> (i32, i32) {
    %c0_i32 = arith.constant 0 : i32
    %c0_i32_0 = arith.constant 0 : i32
    %c0_i32_1 = arith.constant 0 : i32
    return %c0_i32, %c0_i32_0 : i32, i32
  }
  func.func @transform_12(%arg0: i32) -> (i32, i32) {
    %c0_i32 = arith.constant 0 : i32
    %c0_i32_0 = arith.constant 0 : i32
    %c0_i32_1 = arith.constant 0 : i32
    return %c0_i32, %c0_i32_0 : i32, i32
  }
  func.func @transform_13(%arg0: i32) -> (i32, i32) {
    %c0_i32 = arith.constant 0 : i32
    %c0_i32_0 = arith.constant 0 : i32
    %c0_i32_1 = arith.constant 0 : i32
    return %c0_i32, %c0_i32_0 : i32, i32
  }
  func.func @transform_14(%arg0: i32) -> (i32, i32) {
    %c0_i32 = arith.constant 0 : i32
    %c0_i32_0 = arith.constant 0 : i32
    %c0_i32_1 = arith.constant 0 : i32
    return %c0_i32, %c0_i32_0 : i32, i32
  }
  func.func @transform_15(%arg0: i32) -> (i32, i32) {
    %c0_i32 = arith.constant 0 : i32
    %c0_i32_0 = arith.constant 0 : i32
    %c0_i32_1 = arith.constant 0 : i32
    return %c0_i32, %c0_i32_0 : i32, i32
  }
  func.func @transform_16(%arg0: i32) -> (i32, i32) {
    %c0_i32 = arith.constant 0 : i32
    %c0_i32_0 = arith.constant 0 : i32
    %c0_i32_1 = arith.constant 0 : i32
    return %c0_i32, %c0_i32_0 : i32, i32
  }
  func.func @transform_17(%arg0: i32) -> (i32, i32) {
    %c0_i32 = arith.constant 0 : i32
    %c0_i32_0 = arith.constant 0 : i32
    %c0_i32_1 = arith.constant 0 : i32
    return %c0_i32, %c0_i32_0 : i32, i32
  }
  func.func @transform_18(%arg0: i32) -> (i32, i32) {
    %c0_i32 = arith.constant 0 : i32
    %c0_i32_0 = arith.constant 0 : i32
    %c0_i32_1 = arith.constant 0 : i32
    return %c0_i32, %c0_i32_0 : i32, i32
  }
  func.func @transform_19(%arg0: i32) -> (i32, i32) {
    %c0_i32 = arith.constant 0 : i32
    %c0_i32_0 = arith.constant 0 : i32
    %c0_i32_1 = arith.constant 0 : i32
    return %c0_i32, %c0_i32_0 : i32, i32
  }
  func.func @transform_20(%arg0: i32) -> (i32, i32) {
    %c0_i32 = arith.constant 0 : i32
    %c0_i32_0 = arith.constant 0 : i32
    %c0_i32_1 = arith.constant 0 : i32
    return %c0_i32, %c0_i32_0 : i32, i32
  }
  func.func @transform_21(%arg0: i32) -> (i32, i32) {
    %c0_i32 = arith.constant 0 : i32
    %c0_i32_0 = arith.constant 0 : i32
    %c0_i32_1 = arith.constant 0 : i32
    return %c0_i32, %c0_i32_0 : i32, i32
  }
  func.func @transform_22(%arg0: i32) -> (i32, i32) {
    %c0_i32 = arith.constant 0 : i32
    %c0_i32_0 = arith.constant 0 : i32
    %c0_i32_1 = arith.constant 0 : i32
    return %c0_i32, %c0_i32_0 : i32, i32
  }
  func.func @transform_23(%arg0: i32) -> (i32, i32, i32) {
    %c0_i32 = arith.constant 0 : i32
    %c0_i32_0 = arith.constant 0 : i32
    %c0_i32_1 = arith.constant 0 : i32
    return %arg0, %c0_i32, %c0_i32_0 : i32, i32, i32
  }
  func.func @transform_24(%arg0: i32) -> (i32, i32) {
    %c0_i32 = arith.constant 0 : i32
    %c0_i32_0 = arith.constant 0 : i32
    %c0_i32_1 = arith.constant 0 : i32
    return %c0_i32, %c0_i32_0 : i32, i32
  }
  func.func @transform_25(%arg0: i32) -> (i32, i32, i32) {
    %c0_i32 = arith.constant 0 : i32
    %c0_i32_0 = arith.constant 0 : i32
    %c0_i32_1 = arith.constant 0 : i32
    return %arg0, %c0_i32, %c0_i32_0 : i32, i32, i32
  }
}

</mosaic_0001>

<llo_original>
// kernel: tpu_custom_call.1
$region0: #{tpu_custom_call.1}
  #allocation0 [shape = 'u32[]', space=smem, size = 0x4, offset = 0x4, fixed_abs, tag = 'smem constant byte address 0x4 - core index']
  #allocation1 [shape = 'u32[144,128]{1,0:T(1,128)}', space=vmem, size = 0x12000, scoped, tag = 'internal scratch']
  #allocation2 [shape = 'f32[16,128]{1,0:T(8,128)}', space=vmem, size = 0x2000, scoped, tag = 'scratch operand']
  #allocation3 [shape = 'f32[16,128]{1,0:T(8,128)}', space=vmem, size = 0x2000, scoped, tag = 'scratch operand']
  #allocation4 [shape = 'f32[1,1]{1,0:T(1,128)S(1)}', space=vmem, size = 0x200, scoped, tag = 'scoped memory for tpu_custom_call.1']
  %s0 = inlined_call_operand.hbm [shape: f32[16,128], index: 0, kind: input, shape index: {}]
  %s1 = inlined_call_operand.hbm [shape: f32[16,128], index: 1, kind: input, shape index: {}]
  %s2 = inlined_call_operand.vmem [shape: f32[2,128,128], index: 2, kind: input, shape index: {}]
  %s3 = inlined_call_operand.vmem [shape: f32[2,1,128], index: 3, kind: input, shape index: {}]
  %s4 = inlined_call_operand.vmem [shape: s32[2,128,1], index: 4, kind: input, shape index: {}]
  %s5 = inlined_call_operand.vmem [shape: f32[128,128], index: 5, kind: input, shape index: {}]
  %s6 = inlined_call_operand.vmem [shape: f32[1,128], index: 6, kind: input, shape index: {}]
  %s7 = inlined_call_operand.vmem [shape: f32[128,128], index: 7, kind: input, shape index: {}]
  %s8 = inlined_call_operand.vmem [shape: f32[128,128], index: 8, kind: input, shape index: {}]
  %s9 = inlined_call_operand.vmem [shape: f32[128,128], index: 9, kind: input, shape index: {}]
  %s10 = inlined_call_operand.hbm [shape: f32[128,128], index: 10, kind: input, shape index: {}]
  %s11 = inlined_call_operand.hbm [shape: f32[128,128], index: 11, kind: input, shape index: {}]
  %s12 = inlined_call_operand.hbm [shape: f32[128,128], index: 12, kind: input, shape index: {}]
  %s13 = inlined_call_operand.vmem [shape: f32[1,128], index: 13, kind: input, shape index: {}]
  %s14 = inlined_call_operand.vmem [shape: f32[1,128], index: 14, kind: input, shape index: {}]
  %s15 = inlined_call_operand.vmem [shape: f32[1,128], index: 15, kind: input, shape index: {}]
  %s16 = inlined_call_operand.vmem [shape: f32[1,128], index: 16, kind: input, shape index: {}]
  %s17 = inlined_call_operand.vmem [shape: f32[128,1], index: 17, kind: input, shape index: {}]
  %s18 = inlined_call_operand.vmem [shape: f32[128,1], index: 18, kind: input, shape index: {}]
  %s19 = inlined_call_operand.vmem [shape: f32[128,1], index: 19, kind: input, shape index: {}]
  %s20 = inlined_call_operand.<no memory space> [shape: f32[1,1], index: 20, kind: input, shape index: {}]
  %s21 = inlined_call_operand.vmem [shape: f32[128,3], index: 21, kind: input, shape index: {}]
  %s22 = inlined_call_operand.vmem [shape: f32[1,3], index: 22, kind: input, shape index: {}]
  %s23 = inlined_call_operand.hbm [shape: f32[4,16,128], index: 23, kind: output, shape index: {0}]
  %s24 = inlined_call_operand.vmem [shape: f32[16,3], index: 24, kind: output, shape index: {1}]
  %s25 = inlined_call_operand.vmem [shape: s32[4,16,1], index: 25, kind: output, shape index: {2}]
  %26 = xla_tuple %s23, %s24, %s25
  %s27 = sld [smem:[#allocation0]]
  $region173: #{tpu_custom_call.1} parent=0
    _
  %s29 = ssub.s32 1, %s27
  %s30 = scalar_select 0, %s29, %s27
  %v31 = vstv %s20
  %32 = vst [vmem:[#allocation4] sm:$0x1] %v31
  $region1: #{tpu_custom_call.1} parent=0
    #allocation5 [shape = 'u8[8192]{0}', space=vmem, size = 0x2000, scoped, tag = 'input window, operand 0, single buffered']
    #allocation6 [shape = 's32[2]{0}', space=sflag, size = 0x8, scoped, tag = 'scoped memory for tpu_custom_call.1']
    #allocation7 [shape = 's32[2]{0}', space=sflag, size = 0x8, scoped, tag = 'scoped memory for tpu_custom_call.1']
    #allocation8 [shape = 'u8[8192]{0}', space=vmem, size = 0x2000, scoped, tag = 'input window, operand 1, single buffered']
    #allocation9 [shape = 's32[1]{0}', space=sflag, size = 0x4, scoped, tag = 'scoped memory for tpu_custom_call.1']
    #allocation10 [shape = 'u8[65536]{0}', space=vmem, size = 0x10000, scoped, tag = 'input window, operand 10, single buffered']
    #allocation11 [shape = 'u8[65536]{0}', space=vmem, size = 0x10000, scoped, tag = 'input window, operand 11, single buffered']
    #allocation12 [shape = 's32[1]{0}', space=sflag, size = 0x4, scoped, tag = 'scoped memory for tpu_custom_call.1']
    #allocation13 [shape = 'u8[65536]{0}', space=vmem, size = 0x10000, scoped, tag = 'input window, operand 12, single buffered']
    #allocation14 [shape = 'u8[16384]{0}', space=vmem, size = 0x4000, scoped, tag = 'output window, operand 0']
    %33 = vsyncpa [#allocation6], 0
    %34 = vsyncpa [#allocation9], 0
    %35 = vsyncpa [#allocation12], 0
    %36 = vsyncpa [#allocation7], 0
    %s37 = scalar_lea.sflag [#allocation7], 1
    %38 = vsyncpa %s37, 0
    loop: start=0, step=1, limit=6
    $region2: #{tpu_custom_call.1} parent=1 // loop_pre_header
      _
    $region3: #{tpu_custom_call.1} parent=1 // loop_header
      %s40 = sphi 0, %s44
      %p41 = scmp.ge.s32.totalorder %s40, 6
      %s48 = sphi 0, %s48
      %s50 = sphi 0, %s48
      %s51 = sphi 0, %s50
      %s65 = sphi 0, %s51
      %s69 = sphi 0, %s69
      %s71 = sphi 0, %s69
      %s72 = sphi 0, %s71
      %s86 = sphi 0, %s72
      %s90 = sphi 0, %s90
      %s92 = sphi 0, %s90
      %s93 = sphi 0, %s92
      %s107 = sphi 0, %s93
      %s111 = sphi 0, %s111
      %s113 = sphi 0, %s111
      %s114 = sphi 0, %s113
      %s128 = sphi 0, %s114
      %s132 = sphi 0, %s132
      %s134 = sphi 0, %s132
      %s135 = sphi 0, %s134
      %s149 = sphi 0, %s135
      %s153 = sphi 0, %s153
      %s155 = sphi 0, %s153
      %s156 = sphi 0, %s155
      %s170 = sphi 0, %s156
      %s174 = sphi 0, %s174
      %s176 = sphi 0, %s174
      %s177 = sphi 0, %s176
      %s191 = sphi 0, %s177
      %s195 = sphi 0, %s195
      %s197 = sphi 0, %s195
      %s198 = sphi 0, %s197
      %s212 = sphi 0, %s198
      %s216 = sphi 0, %s216
      %s218 = sphi 0, %s216
      %s219 = sphi 0, %s218
      %s233 = sphi 0, %s219
      %s237 = sphi 0, %s237
      %s239 = sphi 0, %s237
      %s240 = sphi 0, %s239
      %s254 = sphi 0, %s240
      %s258 = sphi 0, %s258
      %s260 = sphi 0, %s258
      %s261 = sphi 0, %s260
      %s275 = sphi 0, %s261
      %s279 = sphi 0, %s279
      %s281 = sphi 0, %s279
      %s282 = sphi 0, %s281
      %s296 = sphi 0, %s282
      %s300 = sphi 0, %s300
      %s302 = sphi 0, %s300
      %s303 = sphi 0, %s302
      %s317 = sphi 0, %s303
      %s321 = sphi 0, %s321
      %s323 = sphi 0, %s321
      %s324 = sphi 0, %s323
      %s338 = sphi 0, %s324
      %s342 = sphi 0, %s342
      %s344 = sphi 0, %s342
      %s345 = sphi 0, %s344
      %s359 = sphi 0, %s345
      %s363 = sphi 0, %s363
      %s365 = sphi 0, %s363
      %s366 = sphi 0, %s365
      %s380 = sphi 0, %s366
      %s384 = sphi 0, %s384
      %s386 = sphi 0, %s384
      %s387 = sphi 0, %s386
      %s401 = sphi 0, %s387
      %s405 = sphi 0, %s405
      %s407 = sphi 0, %s405
      %s408 = sphi 0, %s407
      %s422 = sphi 0, %s408
      %s426 = sphi 0, %s426
      %s428 = sphi 0, %s426
      %s429 = sphi 0, %s428
      %s443 = sphi 0, %s429
      %s447 = sphi 0, %s447
      %s449 = sphi 0, %s447
      %s450 = sphi 0, %s449
      %s464 = sphi 0, %s450
      %s468 = sphi 0, %s468
      %s470 = sphi 0, %s468
      %s471 = sphi 0, %s470
      %s485 = sphi 0, %s471
      %s489 = sphi 0, %s489
      %s491 = sphi 0, %s489
      %s492 = sphi 0, %s491
      %s506 = sphi 0, %s492
      %s510 = sphi 0, %s510
      %s512 = sphi 0, %s510
      %s513 = sphi 0, %s512
      %s527 = sphi 0, %s513
      %s533 = sphi 0, %s535
      %s536 = sphi 0, %s533
      %s537 = sphi 0, %s536
      %s553 = sphi 0, %s537
      %s557 = sphi 0, %s557
      %s559 = sphi 0, %s557
      %s560 = sphi 0, %s559
      %s574 = sphi 0, %s560
      %s580 = sphi 0, %s582
      %s583 = sphi 0, %s580
      %s584 = sphi 0, %s583
      %s600 = sphi 0, %s584
    $region4: #{tpu_custom_call.1} parent=1 // loop_header_branch
      %43 = sbr.rel (%p41) target = $region8
    $region5: #{tpu_custom_call.1} parent=1 // loop_body
      %s45 = ssub.s32 %s40, 1
      %s46 = ssub.s32 %s40, 2
      %s47 = sadd.s32 %s40, 1
      %s49 = sadd.s32 %s48, 1
      %p52 = scmp.eq.s32.totalorder %s40, 3
      %p53 = scmp.ne.s32.totalorder %s48, %s50
      %p54 = scmp.eq.s32.totalorder %s40, 0
      %p55 = por %p53, %p54
      %p56 = scmp.ne.s32.totalorder %s48, %s50
      %p57 = scmp.eq.s32.totalorder %s45, 3
      %p58 = por %p56, %p57
      %p59 = scmp.ne.s32.totalorder %s50, %s51
      %p60 = scmp.eq.s32.totalorder %s45, 0
      %p61 = por %p59, %p60
      %p62 = scmp.ne.s32.totalorder %s50, %s51
      %p63 = scmp.eq.s32.totalorder %s46, 3
      %p64 = por %p62, %p63
      %p66 = scmp.ne.s32.totalorder %s51, %s65
      %p67 = scmp.eq.s32.totalorder %s46, 0
      %p68 = por %p66, %p67
      %s70 = sadd.s32 %s69, 1
      %p73 = scmp.eq.s32.totalorder %s40, 3
      %p74 = scmp.ne.s32.totalorder %s69, %s71
      %p75 = scmp.eq.s32.totalorder %s40, 0
      %p76 = por %p74, %p75
      %p77 = scmp.ne.s32.totalorder %s69, %s71
      %p78 = scmp.eq.s32.totalorder %s45, 3
      %p79 = por %p77, %p78
      %p80 = scmp.ne.s32.totalorder %s71, %s72
      %p81 = scmp.eq.s32.totalorder %s45, 0
      %p82 = por %p80, %p81
      %p83 = scmp.ne.s32.totalorder %s71, %s72
      %p84 = scmp.eq.s32.totalorder %s46, 3
      %p85 = por %p83, %p84
      %p87 = scmp.ne.s32.totalorder %s72, %s86
      %p88 = scmp.eq.s32.totalorder %s46, 0
      %p89 = por %p87, %p88
      %s91 = sadd.s32 %s90, 1
      %p94 = scmp.eq.s32.totalorder %s40, 3
      %p95 = scmp.ne.s32.totalorder %s90, %s92
      %p96 = scmp.eq.s32.totalorder %s40, 0
      %p97 = por %p95, %p96
      %p98 = scmp.ne.s32.totalorder %s90, %s92
      %p99 = scmp.eq.s32.totalorder %s45, 3
      %p100 = por %p98, %p99
      %p101 = scmp.ne.s32.totalorder %s92, %s93
      %p102 = scmp.eq.s32.totalorder %s45, 0
      %p103 = por %p101, %p102
      %p104 = scmp.ne.s32.totalorder %s92, %s93
      %p105 = scmp.eq.s32.totalorder %s46, 3
      %p106 = por %p104, %p105
      %p108 = scmp.ne.s32.totalorder %s93, %s107
      %p109 = scmp.eq.s32.totalorder %s46, 0
      %p110 = por %p108, %p109
      %s112 = sadd.s32 %s111, 1
      %p115 = scmp.eq.s32.totalorder %s40, 3
      %p116 = scmp.ne.s32.totalorder %s111, %s113
      %p117 = scmp.eq.s32.totalorder %s40, 0
      %p118 = por %p116, %p117
      %p119 = scmp.ne.s32.totalorder %s111, %s113
      %p120 = scmp.eq.s32.totalorder %s45, 3
      %p121 = por %p119, %p120
      %p122 = scmp.ne.s32.totalorder %s113, %s114
      %p123 = scmp.eq.s32.totalorder %s45, 0
      %p124 = por %p122, %p123
      %p125 = scmp.ne.s32.totalorder %s113, %s114
      %p126 = scmp.eq.s32.totalorder %s46, 3
      %p127 = por %p125, %p126
      %p129 = scmp.ne.s32.totalorder %s114, %s128
      %p130 = scmp.eq.s32.totalorder %s46, 0
      %p131 = por %p129, %p130
      %s133 = sadd.s32 %s132, 1
      %p136 = scmp.eq.s32.totalorder %s40, 3
      %p137 = scmp.ne.s32.totalorder %s132, %s134
      %p138 = scmp.eq.s32.totalorder %s40, 0
      %p139 = por %p137, %p138
      %p140 = scmp.ne.s32.totalorder %s132, %s134
      %p141 = scmp.eq.s32.totalorder %s45, 3
      %p142 = por %p140, %p141
      %p143 = scmp.ne.s32.totalorder %s134, %s135
      %p144 = scmp.eq.s32.totalorder %s45, 0
      %p145 = por %p143, %p144
      %p146 = scmp.ne.s32.totalorder %s134, %s135
      %p147 = scmp.eq.s32.totalorder %s46, 3
      %p148 = por %p146, %p147
      %p150 = scmp.ne.s32.totalorder %s135, %s149
      %p151 = scmp.eq.s32.totalorder %s46, 0
      %p152 = por %p150, %p151
      %s154 = sadd.s32 %s153, 1
      %p157 = scmp.eq.s32.totalorder %s40, 3
      %p158 = scmp.ne.s32.totalorder %s153, %s155
      %p159 = scmp.eq.s32.totalorder %s40, 0
      %p160 = por %p158, %p159
      %p161 = scmp.ne.s32.totalorder %s153, %s155
      %p162 = scmp.eq.s32.totalorder %s45, 3
      %p163 = por %p161, %p162
      %p164 = scmp.ne.s32.totalorder %s155, %s156
      %p165 = scmp.eq.s32.totalorder %s45, 0
      %p166 = por %p164, %p165
      %p167 = scmp.ne.s32.totalorder %s155, %s156
      %p168 = scmp.eq.s32.totalorder %s46, 3
      %p169 = por %p167, %p168
      %p171 = scmp.ne.s32.totalorder %s156, %s170
      %p172 = scmp.eq.s32.totalorder %s46, 0
      %p173 = por %p171, %p172
      %s175 = sadd.s32 %s174, 1
      %p178 = scmp.eq.s32.totalorder %s40, 3
      %p179 = scmp.ne.s32.totalorder %s174, %s176
      %p180 = scmp.eq.s32.totalorder %s40, 0
      %p181 = por %p179, %p180
      %p182 = scmp.ne.s32.totalorder %s174, %s176
      %p183 = scmp.eq.s32.totalorder %s45, 3
      %p184 = por %p182, %p183
      %p185 = scmp.ne.s32.totalorder %s176, %s177
      %p186 = scmp.eq.s32.totalorder %s45, 0
      %p187 = por %p185, %p186
      %p188 = scmp.ne.s32.totalorder %s176, %s177
      %p189 = scmp.eq.s32.totalorder %s46, 3
      %p190 = por %p188, %p189
      %p192 = scmp.ne.s32.totalorder %s177, %s191
      %p193 = scmp.eq.s32.totalorder %s46, 0
      %p194 = por %p192, %p193
      %s196 = sadd.s32 %s195, 1
      %p199 = scmp.eq.s32.totalorder %s40, 3
      %p200 = scmp.ne.s32.totalorder %s195, %s197
      %p201 = scmp.eq.s32.totalorder %s40, 0
      %p202 = por %p200, %p201
      %p203 = scmp.ne.s32.totalorder %s195, %s197
      %p204 = scmp.eq.s32.totalorder %s45, 3
      %p205 = por %p203, %p204
      %p206 = scmp.ne.s32.totalorder %s197, %s198
      %p207 = scmp.eq.s32.totalorder %s45, 0
      %p208 = por %p206, %p207
      %p209 = scmp.ne.s32.totalorder %s197, %s198
      %p210 = scmp.eq.s32.totalorder %s46, 3
      %p211 = por %p209, %p210
      %p213 = scmp.ne.s32.totalorder %s198, %s212
      %p214 = scmp.eq.s32.totalorder %s46, 0
      %p215 = por %p213, %p214
      %s217 = sadd.s32 %s216, 1
      %p220 = scmp.eq.s32.totalorder %s40, 3
      %p221 = scmp.ne.s32.totalorder %s216, %s218
      %p222 = scmp.eq.s32.totalorder %s40, 0
      %p223 = por %p221, %p222
      %p224 = scmp.ne.s32.totalorder %s216, %s218
      %p225 = scmp.eq.s32.totalorder %s45, 3
      %p226 = por %p224, %p225
      %p227 = scmp.ne.s32.totalorder %s218, %s219
      %p228 = scmp.eq.s32.totalorder %s45, 0
      %p229 = por %p227, %p228
      %p230 = scmp.ne.s32.totalorder %s218, %s219
      %p231 = scmp.eq.s32.totalorder %s46, 3
      %p232 = por %p230, %p231
      %p234 = scmp.ne.s32.totalorder %s219, %s233
      %p235 = scmp.eq.s32.totalorder %s46, 0
      %p236 = por %p234, %p235
      %s238 = sadd.s32 %s237, 1
      %p241 = scmp.eq.s32.totalorder %s40, 3
      %p242 = scmp.ne.s32.totalorder %s237, %s239
      %p243 = scmp.eq.s32.totalorder %s40, 0
      %p244 = por %p242, %p243
      %p245 = scmp.ne.s32.totalorder %s237, %s239
      %p246 = scmp.eq.s32.totalorder %s45, 3
      %p247 = por %p245, %p246
      %p248 = scmp.ne.s32.totalorder %s239, %s240
      %p249 = scmp.eq.s32.totalorder %s45, 0
      %p250 = por %p248, %p249
      %p251 = scmp.ne.s32.totalorder %s239, %s240
      %p252 = scmp.eq.s32.totalorder %s46, 3
      %p253 = por %p251, %p252
      %p255 = scmp.ne.s32.totalorder %s240, %s254
      %p256 = scmp.eq.s32.totalorder %s46, 0
      %p257 = por %p255, %p256
      %s259 = sadd.s32 %s258, 1
      %p262 = scmp.eq.s32.totalorder %s40, 3
      %p263 = scmp.ne.s32.totalorder %s258, %s260
      %p264 = scmp.eq.s32.totalorder %s40, 0
      %p265 = por %p263, %p264
      %p266 = scmp.ne.s32.totalorder %s258, %s260
      %p267 = scmp.eq.s32.totalorder %s45, 3
      %p268 = por %p266, %p267
      %p269 = scmp.ne.s32.totalorder %s260, %s261
      %p270 = scmp.eq.s32.totalorder %s45, 0
      %p271 = por %p269, %p270
      %p272 = scmp.ne.s32.totalorder %s260, %s261
      %p273 = scmp.eq.s32.totalorder %s46, 3
      %p274 = por %p272, %p273
      %p276 = scmp.ne.s32.totalorder %s261, %s275
      %p277 = scmp.eq.s32.totalorder %s46, 0
      %p278 = por %p276, %p277
      %s280 = sadd.s32 %s279, 1
      %p283 = scmp.eq.s32.totalorder %s40, 3
      %p284 = scmp.ne.s32.totalorder %s279, %s281
      %p285 = scmp.eq.s32.totalorder %s40, 0
      %p286 = por %p284, %p285
      %p287 = scmp.ne.s32.totalorder %s279, %s281
      %p288 = scmp.eq.s32.totalorder %s45, 3
      %p289 = por %p287, %p288
      %p290 = scmp.ne.s32.totalorder %s281, %s282
      %p291 = scmp.eq.s32.totalorder %s45, 0
      %p292 = por %p290, %p291
      %p293 = scmp.ne.s32.totalorder %s281, %s282
      %p294 = scmp.eq.s32.totalorder %s46, 3
      %p295 = por %p293, %p294
      %p297 = scmp.ne.s32.totalorder %s282, %s296
      %p298 = scmp.eq.s32.totalorder %s46, 0
      %p299 = por %p297, %p298
      %s301 = sadd.s32 %s300, 1
      %p304 = scmp.eq.s32.totalorder %s40, 3
      %p305 = scmp.ne.s32.totalorder %s300, %s302
      %p306 = scmp.eq.s32.totalorder %s40, 0
      %p307 = por %p305, %p306
      %p308 = scmp.ne.s32.totalorder %s300, %s302
      %p309 = scmp.eq.s32.totalorder %s45, 3
      %p310 = por %p308, %p309
      %p311 = scmp.ne.s32.totalorder %s302, %s303
      %p312 = scmp.eq.s32.totalorder %s45, 0
      %p313 = por %p311, %p312
      %p314 = scmp.ne.s32.totalorder %s302, %s303
      %p315 = scmp.eq.s32.totalorder %s46, 3
      %p316 = por %p314, %p315
      %p318 = scmp.ne.s32.totalorder %s303, %s317
      %p319 = scmp.eq.s32.totalorder %s46, 0
      %p320 = por %p318, %p319
      %s322 = sadd.s32 %s321, 1
      %p325 = scmp.eq.s32.totalorder %s40, 3
      %p326 = scmp.ne.s32.totalorder %s321, %s323
      %p327 = scmp.eq.s32.totalorder %s40, 0
      %p328 = por %p326, %p327
      %p329 = scmp.ne.s32.totalorder %s321, %s323
      %p330 = scmp.eq.s32.totalorder %s45, 3
      %p331 = por %p329, %p330
      %p332 = scmp.ne.s32.totalorder %s323, %s324
      %p333 = scmp.eq.s32.totalorder %s45, 0
      %p334 = por %p332, %p333
      %p335 = scmp.ne.s32.totalorder %s323, %s324
      %p336 = scmp.eq.s32.totalorder %s46, 3
      %p337 = por %p335, %p336
      %p339 = scmp.ne.s32.totalorder %s324, %s338
      %p340 = scmp.eq.s32.totalorder %s46, 0
      %p341 = por %p339, %p340
      %s343 = sadd.s32 %s342, 1
      %p346 = scmp.eq.s32.totalorder %s40, 3
      %p347 = scmp.ne.s32.totalorder %s342, %s344
      %p348 = scmp.eq.s32.totalorder %s40, 0
      %p349 = por %p347, %p348
      %p350 = scmp.ne.s32.totalorder %s342, %s344
      %p351 = scmp.eq.s32.totalorder %s45, 3
      %p352 = por %p350, %p351
      %p353 = scmp.ne.s32.totalorder %s344, %s345
      %p354 = scmp.eq.s32.totalorder %s45, 0
      %p355 = por %p353, %p354
      %p356 = scmp.ne.s32.totalorder %s344, %s345
      %p357 = scmp.eq.s32.totalorder %s46, 3
      %p358 = por %p356, %p357
      %p360 = scmp.ne.s32.totalorder %s345, %s359
      %p361 = scmp.eq.s32.totalorder %s46, 0
      %p362 = por %p360, %p361
      %s364 = sadd.s32 %s363, 1
      %p367 = scmp.eq.s32.totalorder %s40, 3
      %p368 = scmp.ne.s32.totalorder %s363, %s365
      %p369 = scmp.eq.s32.totalorder %s40, 0
      %p370 = por %p368, %p369
      %p371 = scmp.ne.s32.totalorder %s363, %s365
      %p372 = scmp.eq.s32.totalorder %s45, 3
      %p373 = por %p371, %p372
      %p374 = scmp.ne.s32.totalorder %s365, %s366
      %p375 = scmp.eq.s32.totalorder %s45, 0
      %p376 = por %p374, %p375
      %p377 = scmp.ne.s32.totalorder %s365, %s366
      %p378 = scmp.eq.s32.totalorder %s46, 3
      %p379 = por %p377, %p378
      %p381 = scmp.ne.s32.totalorder %s366, %s380
      %p382 = scmp.eq.s32.totalorder %s46, 0
      %p383 = por %p381, %p382
      %s385 = sadd.s32 %s384, 1
      %p388 = scmp.eq.s32.totalorder %s40, 3
      %p389 = scmp.ne.s32.totalorder %s384, %s386
      %p390 = scmp.eq.s32.totalorder %s40, 0
      %p391 = por %p389, %p390
      %p392 = scmp.ne.s32.totalorder %s384, %s386
      %p393 = scmp.eq.s32.totalorder %s45, 3
      %p394 = por %p392, %p393
      %p395 = scmp.ne.s32.totalorder %s386, %s387
      %p396 = scmp.eq.s32.totalorder %s45, 0
      %p397 = por %p395, %p396
      %p398 = scmp.ne.s32.totalorder %s386, %s387
      %p399 = scmp.eq.s32.totalorder %s46, 3
      %p400 = por %p398, %p399
      %p402 = scmp.ne.s32.totalorder %s387, %s401
      %p403 = scmp.eq.s32.totalorder %s46, 0
      %p404 = por %p402, %p403
      %s406 = sadd.s32 %s405, 1
      %p409 = scmp.eq.s32.totalorder %s40, 3
      %p410 = scmp.ne.s32.totalorder %s405, %s407
      %p411 = scmp.eq.s32.totalorder %s40, 0
      %p412 = por %p410, %p411
      %p413 = scmp.ne.s32.totalorder %s405, %s407
      %p414 = scmp.eq.s32.totalorder %s45, 3
      %p415 = por %p413, %p414
      %p416 = scmp.ne.s32.totalorder %s407, %s408
      %p417 = scmp.eq.s32.totalorder %s45, 0
      %p418 = por %p416, %p417
      %p419 = scmp.ne.s32.totalorder %s407, %s408
      %p420 = scmp.eq.s32.totalorder %s46, 3
      %p421 = por %p419, %p420
      %p423 = scmp.ne.s32.totalorder %s408, %s422
      %p424 = scmp.eq.s32.totalorder %s46, 0
      %p425 = por %p423, %p424
      %s427 = sadd.s32 %s426, 1
      %p430 = scmp.eq.s32.totalorder %s40, 3
      %p431 = scmp.ne.s32.totalorder %s426, %s428
      %p432 = scmp.eq.s32.totalorder %s40, 0
      %p433 = por %p431, %p432
      %p434 = scmp.ne.s32.totalorder %s426, %s428
      %p435 = scmp.eq.s32.totalorder %s45, 3
      %p436 = por %p434, %p435
      %p437 = scmp.ne.s32.totalorder %s428, %s429
      %p438 = scmp.eq.s32.totalorder %s45, 0
      %p439 = por %p437, %p438
      %p440 = scmp.ne.s32.totalorder %s428, %s429
      %p441 = scmp.eq.s32.totalorder %s46, 3
      %p442 = por %p440, %p441
      %p444 = scmp.ne.s32.totalorder %s429, %s443
      %p445 = scmp.eq.s32.totalorder %s46, 0
      %p446 = por %p444, %p445
      %s448 = sadd.s32 %s447, 1
      %p451 = scmp.eq.s32.totalorder %s40, 3
      %p452 = scmp.ne.s32.totalorder %s447, %s449
      %p453 = scmp.eq.s32.totalorder %s40, 0
      %p454 = por %p452, %p453
      %p455 = scmp.ne.s32.totalorder %s447, %s449
      %p456 = scmp.eq.s32.totalorder %s45, 3
      %p457 = por %p455, %p456
      %p458 = scmp.ne.s32.totalorder %s449, %s450
      %p459 = scmp.eq.s32.totalorder %s45, 0
      %p460 = por %p458, %p459
      %p461 = scmp.ne.s32.totalorder %s449, %s450
      %p462 = scmp.eq.s32.totalorder %s46, 3
      %p463 = por %p461, %p462
      %p465 = scmp.ne.s32.totalorder %s450, %s464
      %p466 = scmp.eq.s32.totalorder %s46, 0
      %p467 = por %p465, %p466
      %s469 = sadd.s32 %s468, 1
      %p472 = scmp.eq.s32.totalorder %s40, 3
      %p473 = scmp.ne.s32.totalorder %s468, %s470
      %p474 = scmp.eq.s32.totalorder %s40, 0
      %p475 = por %p473, %p474
      %p476 = scmp.ne.s32.totalorder %s468, %s470
      %p477 = scmp.eq.s32.totalorder %s45, 3
      %p478 = por %p476, %p477
      %p479 = scmp.ne.s32.totalorder %s470, %s471
      %p480 = scmp.eq.s32.totalorder %s45, 0
      %p481 = por %p479, %p480
      %p482 = scmp.ne.s32.totalorder %s470, %s471
      %p483 = scmp.eq.s32.totalorder %s46, 3
      %p484 = por %p482, %p483
      %p486 = scmp.ne.s32.totalorder %s471, %s485
      %p487 = scmp.eq.s32.totalorder %s46, 0
      %p488 = por %p486, %p487
      %s490 = sadd.s32 %s489, 1
      %p493 = scmp.eq.s32.totalorder %s40, 3
      %p494 = scmp.ne.s32.totalorder %s489, %s491
      %p495 = scmp.eq.s32.totalorder %s40, 0
      %p496 = por %p494, %p495
      %p497 = scmp.ne.s32.totalorder %s489, %s491
      %p498 = scmp.eq.s32.totalorder %s45, 3
      %p499 = por %p497, %p498
      %p500 = scmp.ne.s32.totalorder %s491, %s492
      %p501 = scmp.eq.s32.totalorder %s45, 0
      %p502 = por %p500, %p501
      %p503 = scmp.ne.s32.totalorder %s491, %s492
      %p504 = scmp.eq.s32.totalorder %s46, 3
      %p505 = por %p503, %p504
      %p507 = scmp.ne.s32.totalorder %s492, %s506
      %p508 = scmp.eq.s32.totalorder %s46, 0
      %p509 = por %p507, %p508
      %s511 = sadd.s32 %s510, 1
      %p514 = scmp.eq.s32.totalorder %s40, 3
      %p515 = scmp.ne.s32.totalorder %s510, %s512
      %p516 = scmp.eq.s32.totalorder %s40, 0
      %p517 = por %p515, %p516
      %p518 = scmp.ne.s32.totalorder %s510, %s512
      %p519 = scmp.eq.s32.totalorder %s45, 3
      %p520 = por %p518, %p519
      %p521 = scmp.ne.s32.totalorder %s512, %s513
      %p522 = scmp.eq.s32.totalorder %s45, 0
      %p523 = por %p521, %p522
      %p524 = scmp.ne.s32.totalorder %s512, %s513
      %p525 = scmp.eq.s32.totalorder %s46, 3
      %p526 = por %p524, %p525
      %p528 = scmp.ne.s32.totalorder %s513, %s527
      %p529 = scmp.eq.s32.totalorder %s46, 0
      %p530 = por %p528, %p529
      %s531 = ssub.s32 %s40, %s47
      %p532 = scmp.eq.s32.totalorder %s531, 0
      %s534 = sadd.s32 %s533, 1
      %s535 = scalar_select %p532, %s533, %s534
      %p538 = pneg %p532
      %p539 = scmp.eq.s32.totalorder %s40, 3
      %p540 = por %p538, %p539
      %p541 = scmp.ne.s32.totalorder %s533, %s536
      %p542 = scmp.eq.s32.totalorder %s40, 0
      %p543 = por %p541, %p542
      %p544 = scmp.ne.s32.totalorder %s533, %s536
      %p545 = scmp.eq.s32.totalorder %s45, 3
      %p546 = por %p544, %p545
      %p547 = scmp.ne.s32.totalorder %s536, %s537
      %p548 = scmp.eq.s32.totalorder %s45, 0
      %p549 = por %p547, %p548
      %p550 = scmp.ne.s32.totalorder %s536, %s537
      %p551 = scmp.eq.s32.totalorder %s46, 3
      %p552 = por %p550, %p551
      %p554 = scmp.ne.s32.totalorder %s537, %s553
      %p555 = scmp.eq.s32.totalorder %s46, 0
      %p556 = por %p554, %p555
      %s558 = sadd.s32 %s557, 1
      %p561 = scmp.eq.s32.totalorder %s40, 3
      %p562 = scmp.ne.s32.totalorder %s557, %s559
      %p563 = scmp.eq.s32.totalorder %s40, 0
      %p564 = por %p562, %p563
      %p565 = scmp.ne.s32.totalorder %s557, %s559
      %p566 = scmp.eq.s32.totalorder %s45, 3
      %p567 = por %p565, %p566
      %p568 = scmp.ne.s32.totalorder %s559, %s560
      %p569 = scmp.eq.s32.totalorder %s45, 0
      %p570 = por %p568, %p569
      %p571 = scmp.ne.s32.totalorder %s559, %s560
      %p572 = scmp.eq.s32.totalorder %s46, 3
      %p573 = por %p571, %p572
      %p575 = scmp.ne.s32.totalorder %s560, %s574
      %p576 = scmp.eq.s32.totalorder %s46, 0
      %p577 = por %p575, %p576
      %s578 = ssub.s32 %s40, %s47
      %p579 = scmp.eq.s32.totalorder %s578, 0
      %s581 = sadd.s32 %s580, 1
      %s582 = scalar_select %p579, %s580, %s581
      %p585 = pneg %p579
      %p586 = scmp.eq.s32.totalorder %s40, 3
      %p587 = por %p585, %p586
      %p588 = scmp.ne.s32.totalorder %s580, %s583
      %p589 = scmp.eq.s32.totalorder %s40, 0
      %p590 = por %p588, %p589
      %p591 = scmp.ne.s32.totalorder %s580, %s583
      %p592 = scmp.eq.s32.totalorder %s45, 3
      %p593 = por %p591, %p592
      %p594 = scmp.ne.s32.totalorder %s583, %s584
      %p595 = scmp.eq.s32.totalorder %s45, 0
      %p596 = por %p594, %p595
      %p597 = scmp.ne.s32.totalorder %s583, %s584
      %p598 = scmp.eq.s32.totalorder %s46, 3
      %p599 = por %p597, %p598
      %p601 = scmp.ne.s32.totalorder %s584, %s600
      %p602 = scmp.eq.s32.totalorder %s46, 0
      %p603 = por %p601, %p602
      %p604 = scmp.le.s32.totalorder 1, %s40
      %p605 = scmp.lt.s32.totalorder %s40, 5
      %p606 = pnand %p604, %p605
      %p607 = pneg %p606
      // Predicated region
      $region9: #{tpu_custom_call.1} parent=5 // pred_check
        _
      $region10: #{tpu_custom_call.1} parent=5 // pred_check_branch
        %609 = sbr.rel (%p606) target = $region12
      $region11: #{tpu_custom_call.1} parent=5 // pred_region
        %s610 = ssub.s32 %s40, 1
        // Predicated region
        $region13: #{tpu_custom_call.1} parent=11 // pred_check
          %p611 = pneg %p61
        $region14: #{tpu_custom_call.1} parent=11 // pred_check_branch
          %613 = sbr.rel (%p611) target = $region16
        $region15: #{tpu_custom_call.1} parent=11 // pred_region
          %s615 = ssub.s32 256, 256
          %616 = vsyncadd [#allocation6], %s615
          %s617 = sshll.u32 [#allocation5], 4
          %s618 = int_to_ptr.vmem [resolvable:$true] %s617
          %623 = dma.hbm_to_vmem [thread:$0]  %s0, 256, %s618, [#allocation6], 128, 128, 8
        $region16: #{tpu_custom_call.1} parent=11 // pred_fallthru
          _
        // Predicated region
        $region17: #{tpu_custom_call.1} parent=11 // pred_check
          %p624 = pneg %p82
        $region18: #{tpu_custom_call.1} parent=11 // pred_check_branch
          %626 = sbr.rel (%p624) target = $region20
        $region19: #{tpu_custom_call.1} parent=11 // pred_region
          %s628 = ssub.s32 256, 256
          %629 = vsyncadd [#allocation9], %s628
          %s630 = sshll.u32 [#allocation8], 4
          %s631 = int_to_ptr.vmem [resolvable:$true] %s630
          %636 = dma.hbm_to_vmem [thread:$0]  %s1, 256, %s631, [#allocation9], 128, 128, 8
        $region20: #{tpu_custom_call.1} parent=11 // pred_fallthru
          _
        // Predicated region
        $region21: #{tpu_custom_call.1} parent=11 // pred_check
          %p637 = pneg %p103
        $region22: #{tpu_custom_call.1} parent=11 // pred_check_branch
          %639 = sbr.rel (%p637) target = $region24
        $region23: #{tpu_custom_call.1} parent=11 // pred_region
          _
        $region24: #{tpu_custom_call.1} parent=11 // pred_fallthru
          _
        // Predicated region
        $region25: #{tpu_custom_call.1} parent=11 // pred_check
          %p640 = pneg %p124
        $region26: #{tpu_custom_call.1} parent=11 // pred_check_branch
          %642 = sbr.rel (%p640) target = $region28
        $region27: #{tpu_custom_call.1} parent=11 // pred_region
          _
        $region28: #{tpu_custom_call.1} parent=11 // pred_fallthru
          _
        // Predicated region
        $region29: #{tpu_custom_call.1} parent=11 // pred_check
          %p643 = pneg %p145
        $region30: #{tpu_custom_call.1} parent=11 // pred_check_branch
          %645 = sbr.rel (%p643) target = $region32
        $region31: #{tpu_custom_call.1} parent=11 // pred_region
          _
        $region32: #{tpu_custom_call.1} parent=11 // pred_fallthru
          _
        // Predicated region
        $region33: #{tpu_custom_call.1} parent=11 // pred_check
          %p646 = pneg %p166
        $region34: #{tpu_custom_call.1} parent=11 // pred_check_branch
          %648 = sbr.rel (%p646) target = $region36
        $region35: #{tpu_custom_call.1} parent=11 // pred_region
          _
        $region36: #{tpu_custom_call.1} parent=11 // pred_fallthru
          _
        // Predicated region
        $region37: #{tpu_custom_call.1} parent=11 // pred_check
          %p649 = pneg %p187
        $region38: #{tpu_custom_call.1} parent=11 // pred_check_branch
          %651 = sbr.rel (%p649) target = $region40
        $region39: #{tpu_custom_call.1} parent=11 // pred_region
          _
        $region40: #{tpu_custom_call.1} parent=11 // pred_fallthru
          _
        // Predicated region
        $region41: #{tpu_custom_call.1} parent=11 // pred_check
          %p652 = pneg %p208
        $region42: #{tpu_custom_call.1} parent=11 // pred_check_branch
          %654 = sbr.rel (%p652) target = $region44
        $region43: #{tpu_custom_call.1} parent=11 // pred_region
          _
        $region44: #{tpu_custom_call.1} parent=11 // pred_fallthru
          _
        // Predicated region
        $region45: #{tpu_custom_call.1} parent=11 // pred_check
          %p655 = pneg %p229
        $region46: #{tpu_custom_call.1} parent=11 // pred_check_branch
          %657 = sbr.rel (%p655) target = $region48
        $region47: #{tpu_custom_call.1} parent=11 // pred_region
          _
        $region48: #{tpu_custom_call.1} parent=11 // pred_fallthru
          _
        // Predicated region
        $region49: #{tpu_custom_call.1} parent=11 // pred_check
          %p658 = pneg %p250
        $region50: #{tpu_custom_call.1} parent=11 // pred_check_branch
          %660 = sbr.rel (%p658) target = $region52
        $region51: #{tpu_custom_call.1} parent=11 // pred_region
          _
        $region52: #{tpu_custom_call.1} parent=11 // pred_fallthru
          _
        // Predicated region
        $region53: #{tpu_custom_call.1} parent=11 // pred_check
          %p661 = pneg %p271
        $region54: #{tpu_custom_call.1} parent=11 // pred_check_branch
          %663 = sbr.rel (%p661) target = $region56
        $region55: #{tpu_custom_call.1} parent=11 // pred_region
          %s665 = ssub.s32 2048, 2048
          %666 = vsyncadd [#allocation9], %s665
          %s667 = sshll.u32 [#allocation10], 4
          %s668 = int_to_ptr.vmem [resolvable:$true] %s667
          %673 = dma.hbm_to_vmem [thread:$0]  %s10, 2048, %s668, [#allocation9], 128, 128, 8
        $region56: #{tpu_custom_call.1} parent=11 // pred_fallthru
          _
        // Predicated region
        $region57: #{tpu_custom_call.1} parent=11 // pred_check
          %p674 = pneg %p292
        $region58: #{tpu_custom_call.1} parent=11 // pred_check_branch
          %676 = sbr.rel (%p674) target = $region60
        $region59: #{tpu_custom_call.1} parent=11 // pred_region
          %s678 = ssub.s32 2048, 2048
          %679 = vsyncadd [#allocation12], %s678
          %s680 = sshll.u32 [#allocation11], 4
          %s681 = int_to_ptr.vmem [resolvable:$true] %s680
          %686 = dma.hbm_to_vmem [thread:$0]  %s11, 2048, %s681, [#allocation12], 128, 128, 8
        $region60: #{tpu_custom_call.1} parent=11 // pred_fallthru
          _
        // Predicated region
        $region61: #{tpu_custom_call.1} parent=11 // pred_check
          %p687 = pneg %p313
        $region62: #{tpu_custom_call.1} parent=11 // pred_check_branch
          %689 = sbr.rel (%p687) target = $region64
        $region63: #{tpu_custom_call.1} parent=11 // pred_region
          %s691 = ssub.s32 2048, 2048
          %692 = vsyncadd [#allocation12], %s691
          %s693 = sshll.u32 [#allocation13], 4
          %s694 = int_to_ptr.vmem [resolvable:$true] %s693
          %699 = dma.hbm_to_vmem [thread:$0]  %s12, 2048, %s694, [#allocation12], 128, 128, 8
        $region64: #{tpu_custom_call.1} parent=11 // pred_fallthru
          _
        // Predicated region
        $region65: #{tpu_custom_call.1} parent=11 // pred_check
          %p700 = pneg %p334
        $region66: #{tpu_custom_call.1} parent=11 // pred_check_branch
          %702 = sbr.rel (%p700) target = $region68
        $region67: #{tpu_custom_call.1} parent=11 // pred_region
          _
        $region68: #{tpu_custom_call.1} parent=11 // pred_fallthru
          _
        // Predicated region
        $region69: #{tpu_custom_call.1} parent=11 // pred_check
          %p703 = pneg %p355
        $region70: #{tpu_custom_call.1} parent=11 // pred_check_branch
          %705 = sbr.rel (%p703) target = $region72
        $region71: #{tpu_custom_call.1} parent=11 // pred_region
          _
        $region72: #{tpu_custom_call.1} parent=11 // pred_fallthru
          _
        // Predicated region
        $region73: #{tpu_custom_call.1} parent=11 // pred_check
          %p706 = pneg %p376
        $region74: #{tpu_custom_call.1} parent=11 // pred_check_branch
          %708 = sbr.rel (%p706) target = $region76
        $region75: #{tpu_custom_call.1} parent=11 // pred_region
          _
        $region76: #{tpu_custom_call.1} parent=11 // pred_fallthru
          _
        // Predicated region
        $region77: #{tpu_custom_call.1} parent=11 // pred_check
          %p709 = pneg %p397
        $region78: #{tpu_custom_call.1} parent=11 // pred_check_branch
          %711 = sbr.rel (%p709) target = $region80
        $region79: #{tpu_custom_call.1} parent=11 // pred_region
          _
        $region80: #{tpu_custom_call.1} parent=11 // pred_fallthru
          _
        // Predicated region
        $region81: #{tpu_custom_call.1} parent=11 // pred_check
          %p712 = pneg %p418
        $region82: #{tpu_custom_call.1} parent=11 // pred_check_branch
          %714 = sbr.rel (%p712) target = $region84
        $region83: #{tpu_custom_call.1} parent=11 // pred_region
          _
        $region84: #{tpu_custom_call.1} parent=11 // pred_fallthru
          _
        // Predicated region
        $region85: #{tpu_custom_call.1} parent=11 // pred_check
          %p715 = pneg %p439
        $region86: #{tpu_custom_call.1} parent=11 // pred_check_branch
          %717 = sbr.rel (%p715) target = $region88
        $region87: #{tpu_custom_call.1} parent=11 // pred_region
          _
        $region88: #{tpu_custom_call.1} parent=11 // pred_fallthru
          _
        // Predicated region
        $region89: #{tpu_custom_call.1} parent=11 // pred_check
          %p718 = pneg %p460
        $region90: #{tpu_custom_call.1} parent=11 // pred_check_branch
          %720 = sbr.rel (%p718) target = $region92
        $region91: #{tpu_custom_call.1} parent=11 // pred_region
          _
        $region92: #{tpu_custom_call.1} parent=11 // pred_fallthru
          _
        // Predicated region
        $region93: #{tpu_custom_call.1} parent=11 // pred_check
          %p721 = pneg %p481
        $region94: #{tpu_custom_call.1} parent=11 // pred_check_branch
          %723 = sbr.rel (%p721) target = $region96
        $region95: #{tpu_custom_call.1} parent=11 // pred_region
          _
        $region96: #{tpu_custom_call.1} parent=11 // pred_fallthru
          _
        // Predicated region
        $region97: #{tpu_custom_call.1} parent=11 // pred_check
          %p724 = pneg %p502
        $region98: #{tpu_custom_call.1} parent=11 // pred_check_branch
          %726 = sbr.rel (%p724) target = $region100
        $region99: #{tpu_custom_call.1} parent=11 // pred_region
          _
        $region100: #{tpu_custom_call.1} parent=11 // pred_fallthru
          _
        // Predicated region
        $region101: #{tpu_custom_call.1} parent=11 // pred_check
          %p727 = pneg %p523
        $region102: #{tpu_custom_call.1} parent=11 // pred_check_branch
          %729 = sbr.rel (%p727) target = $region104
        $region103: #{tpu_custom_call.1} parent=11 // pred_region
          _
        $region104: #{tpu_custom_call.1} parent=11 // pred_fallthru
          _
      $region12: #{tpu_custom_call.1} parent=5 // pred_fallthru
        _
      %p730 = scmp.lt.s32.totalorder %s40, 4
      // Predicated region
      $region105: #{tpu_custom_call.1} parent=5 // pred_check
        %p731 = pneg %p730
      $region106: #{tpu_custom_call.1} parent=5 // pred_check_branch
        %733 = sbr.rel (%p731) target = $region108
      $region107: #{tpu_custom_call.1} parent=5 // pred_region
        _
      $region108: #{tpu_custom_call.1} parent=5 // pred_fallthru
        _
      %p734 = scmp.le.s32.totalorder 1, %s40
      %p735 = scmp.lt.s32.totalorder %s40, 5
      %p736 = pnand %p734, %p735
      %p737 = pneg %p736
      // Predicated region
      $region109: #{tpu_custom_call.1} parent=5 // pred_check
        _
      $region110: #{tpu_custom_call.1} parent=5 // pred_check_branch
        %739 = sbr.rel (%p736) target = $region112
      $region111: #{tpu_custom_call.1} parent=5 // pred_region
        %s740 = ssub.s32 %s40, 1
        // Predicated region
        $region113: #{tpu_custom_call.1} parent=111 // pred_check
          %p741 = pneg %p61
        $region114: #{tpu_custom_call.1} parent=111 // pred_check_branch
          %743 = sbr.rel (%p741) target = $region116
        $region115: #{tpu_custom_call.1} parent=111 // pred_region
          %744 = dma.done [#allocation6], 256
        $region116: #{tpu_custom_call.1} parent=111 // pred_fallthru
          _
        // Predicated region
        $region117: #{tpu_custom_call.1} parent=111 // pred_check
          %p745 = pneg %p82
        $region118: #{tpu_custom_call.1} parent=111 // pred_check_branch
          %747 = sbr.rel (%p745) target = $region120
        $region119: #{tpu_custom_call.1} parent=111 // pred_region
          %748 = dma.done [#allocation9], 256
        $region120: #{tpu_custom_call.1} parent=111 // pred_fallthru
          _
        // Predicated region
        $region121: #{tpu_custom_call.1} parent=111 // pred_check
          %p749 = pneg %p271
        $region122: #{tpu_custom_call.1} parent=111 // pred_check_branch
          %751 = sbr.rel (%p749) target = $region124
        $region123: #{tpu_custom_call.1} parent=111 // pred_region
          %752 = dma.done [#allocation9], 2048
        $region124: #{tpu_custom_call.1} parent=111 // pred_fallthru
          _
        // Predicated region
        $region125: #{tpu_custom_call.1} parent=111 // pred_check
          %p753 = pneg %p292
        $region126: #{tpu_custom_call.1} parent=111 // pred_check_branch
          %755 = sbr.rel (%p753) target = $region128
        $region127: #{tpu_custom_call.1} parent=111 // pred_region
          %756 = dma.done [#allocation12], 2048
        $region128: #{tpu_custom_call.1} parent=111 // pred_fallthru
          _
        // Predicated region
        $region129: #{tpu_custom_call.1} parent=111 // pred_check
          %p757 = pneg %p313
        $region130: #{tpu_custom_call.1} parent=111 // pred_check_branch
          %759 = sbr.rel (%p757) target = $region132
        $region131: #{tpu_custom_call.1} parent=111 // pred_region
          %760 = dma.done [#allocation12], 2048
        $region132: #{tpu_custom_call.1} parent=111 // pred_fallthru
          _
        %p761 = pneg %p61
        %p762 = pneg %p58
        %p763 = pneg %p82
        %p764 = pneg %p79
        %p765 = pneg %p103
        %p766 = pneg %p100
        %p767 = pneg %p124
        %p768 = pneg %p121
        %p769 = pneg %p145
        %p770 = pneg %p142
        %p771 = pneg %p166
        %p772 = pneg %p163
        %p773 = pneg %p187
        %p774 = pneg %p184
        %p775 = pneg %p208
        %p776 = pneg %p205
        %p777 = pneg %p229
        %p778 = pneg %p226
        %p779 = pneg %p250
        %p780 = pneg %p247
        %p781 = pneg %p271
        %p782 = pneg %p268
        %p783 = pneg %p292
        %p784 = pneg %p289
        %p785 = pneg %p313
        %p786 = pneg %p310
        %p787 = pneg %p334
        %p788 = pneg %p331
        %p789 = pneg %p355
        %p790 = pneg %p352
        %p791 = pneg %p376
        %p792 = pneg %p373
        %p793 = pneg %p397
        %p794 = pneg %p394
        %p795 = pneg %p418
        %p796 = pneg %p415
        %p797 = pneg %p439
        %p798 = pneg %p436
        %p799 = pneg %p460
        %p800 = pneg %p457
        %p801 = pneg %p481
        %p802 = pneg %p478
        %p803 = pneg %p502
        %p804 = pneg %p499
        %p805 = pneg %p523
        %p806 = pneg %p520
        %p807 = pneg %p549
        %p808 = pneg %p546
        %s809 = sand.u32 %s536, 1
        %s810 = scalar_lea.sflag [#allocation7], %s809
        %s811 = sand.u32 %s536, 1
        %s812 = smul.addr %s811, 16
        %s813 = scalar_lea.vmem [#allocation14], %s812
        %p814 = pneg %p570
        %p815 = pneg %p567
        %p816 = pneg %p596
        %p817 = pneg %p593
        %p818 = scmp.lt.s32.totalorder %s45, 3
        %s819 = scalar_select %p818, %s45, 3
        %s820 = smul.addr %s819, 2
        %s821 = smul.addr %s820, 8
        %s822 = scalar_lea.vmem %s25, %s821
        %p823 = scmp.lt.s32.totalorder %s45, 3
        %s824 = scalar_select %p823, %s45, 3
        %s825 = smul.addr %s824, 2
        %s826 = smul.addr %s825, 8
        %s827 = scalar_lea.vmem %s25, %s826
        %p828 = scmp.eq.s32.totalorder %s45, 0
        // Predicated region
        $region133: #{tpu_custom_call.1} parent=111 // pred_check
          %p829 = pneg %p828
        $region134: #{tpu_custom_call.1} parent=111 // pred_check_branch
          %831 = sbr.rel (%p829) target = $region136
        $region135: #{tpu_custom_call.1} parent=111 // pred_region
          %v832 = vld [vmem:[#allocation5] sm:$0xff]
          %v833 = vld [vmem:[#allocation5 + $0x8] sm:$0xff]
          %834 = vst [vmem:[#allocation3] sm:$0xff] %v832
          %835 = vst [vmem:[#allocation3 + $0x8] sm:$0xff] %v833
          %v836 = vld [vmem:[#allocation8] sm:$0xff]
          %v837 = vld [vmem:[#allocation8 + $0x8] sm:$0xff]
          %838 = vst [vmem:[#allocation2] sm:$0xff] %v836
          %839 = vst [vmem:[#allocation2 + $0x8] sm:$0xff] %v837
        $region136: #{tpu_custom_call.1} parent=111 // pred_fallthru
          _
        %v840 = vld [vmem:[#allocation3] sm:$0xff]
        %v841 = vld [vmem:[#allocation3 + $0x8] sm:$0xff]
        %v842 = vld [vmem:[#allocation2] sm:$0xff]
        %v843 = vld [vmem:[#allocation2 + $0x8] sm:$0xff]
        %v844 = vld [vmem:[%s7] sm:$0xff]
        %v845 = vld [vmem:[%s7 + $0x8] sm:$0xff]
        %v846 = vld [vmem:[%s7 + $0x10] sm:$0xff]
        %v847 = vld [vmem:[%s7 + $0x18] sm:$0xff]
        %v848 = vld [vmem:[%s7 + $0x20] sm:$0xff]
        %v849 = vld [vmem:[%s7 + $0x28] sm:$0xff]
        %v850 = vld [vmem:[%s7 + $0x30] sm:$0xff]
        %v851 = vld [vmem:[%s7 + $0x38] sm:$0xff]
        %v852 = vld [vmem:[%s7 + $0x40] sm:$0xff]
        %v853 = vld [vmem:[%s7 + $0x48] sm:$0xff]
        %v854 = vld [vmem:[%s7 + $0x50] sm:$0xff]
        %v855 = vld [vmem:[%s7 + $0x58] sm:$0xff]
        %v856 = vld [vmem:[%s7 + $0x60] sm:$0xff]
        %v857 = vld [vmem:[%s7 + $0x68] sm:$0xff]
        %v858 = vld [vmem:[%s7 + $0x70] sm:$0xff]
        %v859 = vld [vmem:[%s7 + $0x78] sm:$0xff]
        %v860 = vld [vmem:[#allocation10] sm:$0xff]
        %v861 = vld [vmem:[#allocation10 + $0x8] sm:$0xff]
        %v862 = vld [vmem:[#allocation10 + $0x10] sm:$0xff]
        %v863 = vld [vmem:[#allocation10 + $0x18] sm:$0xff]
        %v864 = vld [vmem:[#allocation10 + $0x20] sm:$0xff]
        %v865 = vld [vmem:[#allocation10 + $0x28] sm:$0xff]
        %v866 = vld [vmem:[#allocation10 + $0x30] sm:$0xff]
        %v867 = vld [vmem:[#allocation10 + $0x38] sm:$0xff]
        %v868 = vld [vmem:[#allocation10 + $0x40] sm:$0xff]
        %v869 = vld [vmem:[#allocation10 + $0x48] sm:$0xff]
        %v870 = vld [vmem:[#allocation10 + $0x50] sm:$0xff]
        %v871 = vld [vmem:[#allocation10 + $0x58] sm:$0xff]
        %v872 = vld [vmem:[#allocation10 + $0x60] sm:$0xff]
        %v873 = vld [vmem:[#allocation10 + $0x68] sm:$0xff]
        %v874 = vld [vmem:[#allocation10 + $0x70] sm:$0xff]
        %v875 = vld [vmem:[#allocation10 + $0x78] sm:$0xff]
        %876 = vmatprep.subr.mxu0 0.0
        %877 = vmatpush1.msra.mxu0 %v860
        %878 = vmatprep.subr.mxu0 0.0
        %879 = vmatpush1.msra.mxu0 %v861
        %880 = vmatprep.subr.mxu0 0.0
        %881 = vmatpush1.msra.mxu0 %v862
        %882 = vmatprep.subr.mxu0 0.0
        %883 = vmatpush1.msra.mxu0 %v863
        %884 = vmatprep.subr.mxu0 0.0
        %885 = vmatpush1.msra.mxu0 %v864
        %886 = vmatprep.subr.mxu0 0.0
        %887 = vmatpush1.msra.mxu0 %v865
        %888 = vmatprep.subr.mxu0 0.0
        %889 = vmatpush1.msra.mxu0 %v866
        %890 = vmatprep.subr.mxu0 0.0
        %891 = vmatpush1.msra.mxu0 %v867
        %892 = vmatprep.subr.mxu0 0.0
        %893 = vmatpush1.msra.mxu0 %v868
        %894 = vmatprep.subr.mxu0 0.0
        %895 = vmatpush1.msra.mxu0 %v869
        %896 = vmatprep.subr.mxu0 0.0
        %897 = vmatpush1.msra.mxu0 %v870
        %898 = vmatprep.subr.mxu0 0.0
        %899 = vmatpush1.msra.mxu0 %v871
        %900 = vmatprep.subr.mxu0 0.0
        %901 = vmatpush1.msra.mxu0 %v872
        %902 = vmatprep.subr.mxu0 0.0
        %903 = vmatpush1.msra.mxu0 %v873
        %904 = vmatprep.subr.mxu0 0.0
        %905 = vmatpush1.msra.mxu0 %v874
        %906 = vmatprep.subr.mxu0 0.0
        %907 = vmatpush1.msra.mxu0 %v875
        %908 = vmatprep.subr.mxu0 0.0
        %909 = vmatpush1.msra.mxu0 0.0
        %910 = vmatprep.subr.mxu0 0.0
        %911 = vmatpush1.msra.mxu0 0.0
        %912 = vmatprep.subr.mxu0 0.0
        %913 = vmatpush1.msra.mxu0 0.0
        %914 = vmatprep.subr.mxu0 0.0
        %915 = vmatpush1.msra.mxu0 0.0
        %916 = vmatprep.subr.mxu0 0.0
        %917 = vmatpush1.msra.mxu0 0.0
        %918 = vmatprep.subr.mxu0 0.0
        %919 = vmatpush1.msra.mxu0 0.0
        %920 = vmatprep.subr.mxu0 0.0
        %921 = vmatpush1.msra.mxu0 0.0
        %922 = vmatprep.subr.mxu0 0.0
        %923 = vmatpush1.msra.mxu0 0.0
        %924 = vmatprep.subr.mxu0 0.0
        %925 = vmatpush1.msra.mxu0 0.0
        %926 = vmatprep.subr.mxu0 0.0
        %927 = vmatpush1.msra.mxu0 0.0
        %928 = vmatprep.subr.mxu0 0.0
        %929 = vmatpush1.msra.mxu0 0.0
        %930 = vmatprep.subr.mxu0 0.0
        %931 = vmatpush1.msra.mxu0 0.0
        %932 = vmatprep.subr.mxu0 0.0
        %933 = vmatpush1.msra.mxu0 0.0
        %934 = vmatprep.subr.mxu0 0.0
        %935 = vmatpush1.msra.mxu0 0.0
        %936 = vmatprep.subr.mxu0 0.0
        %937 = vmatpush1.msra.mxu0 0.0
        %938 = vmatprep.subr.mxu0 0.0
        %939 = vmatpush1.msra.mxu0 0.0
        %940 = vmatprep.mubr.f32.mxu0 0.0
        %941 = vmatmul.mubr.f32.gmra.mrb[0].mxu0 %v842
        %v942 = vpop.f32.mrb[0].mxu0
        %v943 = vadd.f32 0.0, %v942
        %v944 = vpop.f32.mrb[0].mxu0
        %945 = vmatprep.mubr.f32.mxu0 0.0
        %946 = vmatmul.mubr.f32.gmra.mrb[0].mxu0 %v843
        %v947 = vpop.f32.mrb[0].mxu0
        %v948 = vadd.f32 0.0, %v947
        %v949 = vpop.f32.mrb[0].mxu0
        %950 = vdwg.mxu0
        %951 = vmatprep.subr.mxu0 0.0
        %952 = vmatpush1.msra.mxu0 %v844
        %953 = vmatprep.subr.mxu0 0.0
        %954 = vmatpush1.msra.mxu0 %v845
        %955 = vmatprep.subr.mxu0 0.0
        %956 = vmatpush1.msra.mxu0 %v846
        %957 = vmatprep.subr.mxu0 0.0
        %958 = vmatpush1.msra.mxu0 %v847
        %959 = vmatprep.subr.mxu0 0.0
        %960 = vmatpush1.msra.mxu0 %v848
        %961 = vmatprep.subr.mxu0 0.0
        %962 = vmatpush1.msra.mxu0 %v849
        %963 = vmatprep.subr.mxu0 0.0
        %964 = vmatpush1.msra.mxu0 %v850
        %965 = vmatprep.subr.mxu0 0.0
        %966 = vmatpush1.msra.mxu0 %v851
        %967 = vmatprep.subr.mxu0 0.0
        %968 = vmatpush1.msra.mxu0 %v852
        %969 = vmatprep.subr.mxu0 0.0
        %970 = vmatpush1.msra.mxu0 %v853
        %971 = vmatprep.subr.mxu0 0.0
        %972 = vmatpush1.msra.mxu0 %v854
        %973 = vmatprep.subr.mxu0 0.0
        %974 = vmatpush1.msra.mxu0 %v855
        %975 = vmatprep.subr.mxu0 0.0
        %976 = vmatpush1.msra.mxu0 %v856
        %977 = vmatprep.subr.mxu0 0.0
        %978 = vmatpush1.msra.mxu0 %v857
        %979 = vmatprep.subr.mxu0 0.0
        %980 = vmatpush1.msra.mxu0 %v858
        %981 = vmatprep.subr.mxu0 0.0
        %982 = vmatpush1.msra.mxu0 %v859
        %983 = vmatprep.subr.mxu0 0.0
        %984 = vmatpush1.msra.mxu0 0.0
        %985 = vmatprep.subr.mxu0 0.0
        %986 = vmatpush1.msra.mxu0 0.0
        %987 = vmatprep.subr.mxu0 0.0
        %988 = vmatpush1.msra.mxu0 0.0
        %989 = vmatprep.subr.mxu0 0.0
        %990 = vmatpush1.msra.mxu0 0.0
        %991 = vmatprep.subr.mxu0 0.0
        %992 = vmatpush1.msra.mxu0 0.0
        %993 = vmatprep.subr.mxu0 0.0
        %994 = vmatpush1.msra.mxu0 0.0
        %995 = vmatprep.subr.mxu0 0.0
        %996 = vmatpush1.msra.mxu0 0.0
        %997 = vmatprep.subr.mxu0 0.0
        %998 = vmatpush1.msra.mxu0 0.0
        %999 = vmatprep.subr.mxu0 0.0
        %1000 = vmatpush1.msra.mxu0 0.0
        %1001 = vmatprep.subr.mxu0 0.0
        %1002 = vmatpush1.msra.mxu0 0.0
        %1003 = vmatprep.subr.mxu0 0.0
        %1004 = vmatpush1.msra.mxu0 0.0
        %1005 = vmatprep.subr.mxu0 0.0
        %1006 = vmatpush1.msra.mxu0 0.0
        %1007 = vmatprep.subr.mxu0 0.0
        %1008 = vmatpush1.msra.mxu0 0.0
        %1009 = vmatprep.subr.mxu0 0.0
        %1010 = vmatpush1.msra.mxu0 0.0
        %1011 = vmatprep.subr.mxu0 0.0
        %1012 = vmatpush1.msra.mxu0 0.0
        %1013 = vmatprep.subr.mxu0 0.0
        %1014 = vmatpush1.msra.mxu0 0.0
        %1015 = vmatprep.mubr.f32.mxu0 0.0
        %1016 = vmatmul.mubr.f32.gmra.mrb[0].mxu0 %v840
        %v1017 = vpop.f32.mrb[0].mxu0
        %v1018 = vadd.f32 %v943, %v1017
        %v1019 = vpop.f32.mrb[0].mxu0
        %1020 = vmatprep.mubr.f32.mxu0 0.0
        %1021 = vmatmul.mubr.f32.gmra.mrb[0].mxu0 %v841
        %v1022 = vpop.f32.mrb[0].mxu0
        %v1023 = vadd.f32 %v948, %v1022
        %v1024 = vpop.f32.mrb[0].mxu0
        %1025 = vdwg.mxu0
        %v1026 = vld [vmem:[%s13] sm:$0x1]
        %v1028 = vlaneseq
        %v1029 = vshrl.u32 %v1028, 7
        %v1030 = vsub.s32 0, %v1029
        %v1031 = vrot.slane %v1026, %v1030
        %v1033 = vadd.f32 %v1018, %v1031
        %v1034 = vadd.f32 %v1023, %v1031
        %v1035 = vxor.u32 %v1033, 2147483648
        %v1036 = vxor.u32 %v1034, 2147483648
        %v1037 = vmul.f32 %v1035, 1.442695
        %v1038 = vpow.pop %v1037
        %v1039 = vmul.f32 %v1036, 1.442695
        %v1040 = vpow.pop %v1039
        %v1041 = vadd.f32 %v1038, 1.0
        %v1042 = vadd.f32 %v1040, 1.0
        %v1043 = vrcp.pop %v1041
        %v1044 = vmul.f32 1.0, %v1043
        %v1045 = vrcp.pop %v1042
        %v1046 = vmul.f32 1.0, %v1045
        %v1047 = vld [vmem:[%s8] sm:$0xff]
        %v1048 = vld [vmem:[%s8 + $0x8] sm:$0xff]
        %v1049 = vld [vmem:[%s8 + $0x10] sm:$0xff]
        %v1050 = vld [vmem:[%s8 + $0x18] sm:$0xff]
        %v1051 = vld [vmem:[%s8 + $0x20] sm:$0xff]
        %v1052 = vld [vmem:[%s8 + $0x28] sm:$0xff]
        %v1053 = vld [vmem:[%s8 + $0x30] sm:$0xff]
        %v1054 = vld [vmem:[%s8 + $0x38] sm:$0xff]
        %v1055 = vld [vmem:[%s8 + $0x40] sm:$0xff]
        %v1056 = vld [vmem:[%s8 + $0x48] sm:$0xff]
        %v1057 = vld [vmem:[%s8 + $0x50] sm:$0xff]
        %v1058 = vld [vmem:[%s8 + $0x58] sm:$0xff]
        %v1059 = vld [vmem:[%s8 + $0x60] sm:$0xff]
        %v1060 = vld [vmem:[%s8 + $0x68] sm:$0xff]
        %v1061 = vld [vmem:[%s8 + $0x70] sm:$0xff]
        %v1062 = vld [vmem:[%s8 + $0x78] sm:$0xff]
        %v1063 = vld [vmem:[#allocation11] sm:$0xff]
        %v1064 = vld [vmem:[#allocation11 + $0x8] sm:$0xff]
        %v1065 = vld [vmem:[#allocation11 + $0x10] sm:$0xff]
        %v1066 = vld [vmem:[#allocation11 + $0x18] sm:$0xff]
        %v1067 = vld [vmem:[#allocation11 + $0x20] sm:$0xff]
        %v1068 = vld [vmem:[#allocation11 + $0x28] sm:$0xff]
        %v1069 = vld [vmem:[#allocation11 + $0x30] sm:$0xff]
        %v1070 = vld [vmem:[#allocation11 + $0x38] sm:$0xff]
        %v1071 = vld [vmem:[#allocation11 + $0x40] sm:$0xff]
        %v1072 = vld [vmem:[#allocation11 + $0x48] sm:$0xff]
        %v1073 = vld [vmem:[#allocation11 + $0x50] sm:$0xff]
        %v1074 = vld [vmem:[#allocation11 + $0x58] sm:$0xff]
        %v1075 = vld [vmem:[#allocation11 + $0x60] sm:$0xff]
        %v1076 = vld [vmem:[#allocation11 + $0x68] sm:$0xff]
        %v1077 = vld [vmem:[#allocation11 + $0x70] sm:$0xff]
        %v1078 = vld [vmem:[#allocation11 + $0x78] sm:$0xff]
        %1079 = vmatprep.subr.mxu0 0.0
        %1080 = vmatpush1.msra.mxu0 %v1063
        %1081 = vmatprep.subr.mxu0 0.0
        %1082 = vmatpush1.msra.mxu0 %v1064
        %1083 = vmatprep.subr.mxu0 0.0
        %1084 = vmatpush1.msra.mxu0 %v1065
        %1085 = vmatprep.subr.mxu0 0.0
        %1086 = vmatpush1.msra.mxu0 %v1066
        %1087 = vmatprep.subr.mxu0 0.0
        %1088 = vmatpush1.msra.mxu0 %v1067
        %1089 = vmatprep.subr.mxu0 0.0
        %1090 = vmatpush1.msra.mxu0 %v1068
        %1091 = vmatprep.subr.mxu0 0.0
        %1092 = vmatpush1.msra.mxu0 %v1069
        %1093 = vmatprep.subr.mxu0 0.0
        %1094 = vmatpush1.msra.mxu0 %v1070
        %1095 = vmatprep.subr.mxu0 0.0
        %1096 = vmatpush1.msra.mxu0 %v1071
        %1097 = vmatprep.subr.mxu0 0.0
        %1098 = vmatpush1.msra.mxu0 %v1072
        %1099 = vmatprep.subr.mxu0 0.0
        %1100 = vmatpush1.msra.mxu0 %v1073
        %1101 = vmatprep.subr.mxu0 0.0
        %1102 = vmatpush1.msra.mxu0 %v1074
        %1103 = vmatprep.subr.mxu0 0.0
        %1104 = vmatpush1.msra.mxu0 %v1075
        %1105 = vmatprep.subr.mxu0 0.0
        %1106 = vmatpush1.msra.mxu0 %v1076
        %1107 = vmatprep.subr.mxu0 0.0
        %1108 = vmatpush1.msra.mxu0 %v1077
        %1109 = vmatprep.subr.mxu0 0.0
        %1110 = vmatpush1.msra.mxu0 %v1078
        %1111 = vmatprep.subr.mxu0 0.0
        %1112 = vmatpush1.msra.mxu0 0.0
        %1113 = vmatprep.subr.mxu0 0.0
        %1114 = vmatpush1.msra.mxu0 0.0
        %1115 = vmatprep.subr.mxu0 0.0
        %1116 = vmatpush1.msra.mxu0 0.0
        %1117 = vmatprep.subr.mxu0 0.0
        %1118 = vmatpush1.msra.mxu0 0.0
        %1119 = vmatprep.subr.mxu0 0.0
        %1120 = vmatpush1.msra.mxu0 0.0
        %1121 = vmatprep.subr.mxu0 0.0
        %1122 = vmatpush1.msra.mxu0 0.0
        %1123 = vmatprep.subr.mxu0 0.0
        %1124 = vmatpush1.msra.mxu0 0.0
        %1125 = vmatprep.subr.mxu0 0.0
        %1126 = vmatpush1.msra.mxu0 0.0
        %1127 = vmatprep.subr.mxu0 0.0
        %1128 = vmatpush1.msra.mxu0 0.0
        %1129 = vmatprep.subr.mxu0 0.0
        %1130 = vmatpush1.msra.mxu0 0.0
        %1131 = vmatprep.subr.mxu0 0.0
        %1132 = vmatpush1.msra.mxu0 0.0
        %1133 = vmatprep.subr.mxu0 0.0
        %1134 = vmatpush1.msra.mxu0 0.0
        %1135 = vmatprep.subr.mxu0 0.0
        %1136 = vmatpush1.msra.mxu0 0.0
        %1137 = vmatprep.subr.mxu0 0.0
        %1138 = vmatpush1.msra.mxu0 0.0
        %1139 = vmatprep.subr.mxu0 0.0
        %1140 = vmatpush1.msra.mxu0 0.0
        %1141 = vmatprep.subr.mxu0 0.0
        %1142 = vmatpush1.msra.mxu0 0.0
        %1143 = vmatprep.mubr.f32.mxu0 0.0
        %1144 = vmatmul.mubr.f32.gmra.mrb[0].mxu0 %v842
        %v1145 = vpop.f32.mrb[0].mxu0
        %v1146 = vadd.f32 0.0, %v1145
        %v1147 = vpop.f32.mrb[0].mxu0
        %1148 = vmatprep.mubr.f32.mxu0 0.0
        %1149 = vmatmul.mubr.f32.gmra.mrb[0].mxu0 %v843
        %v1150 = vpop.f32.mrb[0].mxu0
        %v1151 = vadd.f32 0.0, %v1150
        %v1152 = vpop.f32.mrb[0].mxu0
        %1153 = vdwg.mxu0
        %1154 = vmatprep.subr.mxu0 0.0
        %1155 = vmatpush1.msra.mxu0 %v1047
        %1156 = vmatprep.subr.mxu0 0.0
        %1157 = vmatpush1.msra.mxu0 %v1048
        %1158 = vmatprep.subr.mxu0 0.0
        %1159 = vmatpush1.msra.mxu0 %v1049
        %1160 = vmatprep.subr.mxu0 0.0
        %1161 = vmatpush1.msra.mxu0 %v1050
        %1162 = vmatprep.subr.mxu0 0.0
        %1163 = vmatpush1.msra.mxu0 %v1051
        %1164 = vmatprep.subr.mxu0 0.0
        %1165 = vmatpush1.msra.mxu0 %v1052
        %1166 = vmatprep.subr.mxu0 0.0
        %1167 = vmatpush1.msra.mxu0 %v1053
        %1168 = vmatprep.subr.mxu0 0.0
        %1169 = vmatpush1.msra.mxu0 %v1054
        %1170 = vmatprep.subr.mxu0 0.0
        %1171 = vmatpush1.msra.mxu0 %v1055
        %1172 = vmatprep.subr.mxu0 0.0
        %1173 = vmatpush1.msra.mxu0 %v1056
        %1174 = vmatprep.subr.mxu0 0.0
        %1175 = vmatpush1.msra.mxu0 %v1057
        %1176 = vmatprep.subr.mxu0 0.0
        %1177 = vmatpush1.msra.mxu0 %v1058
        %1178 = vmatprep.subr.mxu0 0.0
        %1179 = vmatpush1.msra.mxu0 %v1059
        %1180 = vmatprep.subr.mxu0 0.0
        %1181 = vmatpush1.msra.mxu0 %v1060
        %1182 = vmatprep.subr.mxu0 0.0
        %1183 = vmatpush1.msra.mxu0 %v1061
        %1184 = vmatprep.subr.mxu0 0.0
        %1185 = vmatpush1.msra.mxu0 %v1062
        %1186 = vmatprep.subr.mxu0 0.0
        %1187 = vmatpush1.msra.mxu0 0.0
        %1188 = vmatprep.subr.mxu0 0.0
        %1189 = vmatpush1.msra.mxu0 0.0
        %1190 = vmatprep.subr.mxu0 0.0
        %1191 = vmatpush1.msra.mxu0 0.0
        %1192 = vmatprep.subr.mxu0 0.0
        %1193 = vmatpush1.msra.mxu0 0.0
        %1194 = vmatprep.subr.mxu0 0.0
        %1195 = vmatpush1.msra.mxu0 0.0
        %1196 = vmatprep.subr.mxu0 0.0
        %1197 = vmatpush1.msra.mxu0 0.0
        %1198 = vmatprep.subr.mxu0 0.0
        %1199 = vmatpush1.msra.mxu0 0.0
        %1200 = vmatprep.subr.mxu0 0.0
        %1201 = vmatpush1.msra.mxu0 0.0
        %1202 = vmatprep.subr.mxu0 0.0
        %1203 = vmatpush1.msra.mxu0 0.0
        %1204 = vmatprep.subr.mxu0 0.0
        %1205 = vmatpush1.msra.mxu0 0.0
        %1206 = vmatprep.subr.mxu0 0.0
        %1207 = vmatpush1.msra.mxu0 0.0
        %1208 = vmatprep.subr.mxu0 0.0
        %1209 = vmatpush1.msra.mxu0 0.0
        %1210 = vmatprep.subr.mxu0 0.0
        %1211 = vmatpush1.msra.mxu0 0.0
        %1212 = vmatprep.subr.mxu0 0.0
        %1213 = vmatpush1.msra.mxu0 0.0
        %1214 = vmatprep.subr.mxu0 0.0
        %1215 = vmatpush1.msra.mxu0 0.0
        %1216 = vmatprep.subr.mxu0 0.0
        %1217 = vmatpush1.msra.mxu0 0.0
        %1218 = vmatprep.mubr.f32.mxu0 0.0
        %1219 = vmatmul.mubr.f32.gmra.mrb[0].mxu0 %v840
        %v1220 = vpop.f32.mrb[0].mxu0
        %v1221 = vadd.f32 %v1146, %v1220
        %v1222 = vpop.f32.mrb[0].mxu0
        %1223 = vmatprep.mubr.f32.mxu0 0.0
        %1224 = vmatmul.mubr.f32.gmra.mrb[0].mxu0 %v841
        %v1225 = vpop.f32.mrb[0].mxu0
        %v1226 = vadd.f32 %v1151, %v1225
        %v1227 = vpop.f32.mrb[0].mxu0
        %1228 = vdwg.mxu0
        %v1229 = vld [vmem:[%s14] sm:$0x1]
        %v1231 = vlaneseq
        %v1232 = vshrl.u32 %v1231, 7
        %v1233 = vsub.s32 0, %v1232
        %v1234 = vrot.slane %v1229, %v1233
        %v1236 = vadd.f32 %v1221, %v1234
        %v1237 = vadd.f32 %v1226, %v1234
        %v1238 = vxor.u32 %v1236, 2147483648
        %v1239 = vxor.u32 %v1237, 2147483648
        %v1240 = vmul.f32 %v1238, 1.442695
        %v1241 = vpow.pop %v1240
        %v1242 = vmul.f32 %v1239, 1.442695
        %v1243 = vpow.pop %v1242
        %v1244 = vadd.f32 %v1241, 1.0
        %v1245 = vadd.f32 %v1243, 1.0
        %v1246 = vrcp.pop %v1244
        %v1247 = vmul.f32 1.0, %v1246
        %v1248 = vrcp.pop %v1245
        %v1249 = vmul.f32 1.0, %v1248
        %v1250 = vld [vmem:[%s9] sm:$0xff]
        %v1251 = vld [vmem:[%s9 + $0x8] sm:$0xff]
        %v1252 = vld [vmem:[%s9 + $0x10] sm:$0xff]
        %v1253 = vld [vmem:[%s9 + $0x18] sm:$0xff]
        %v1254 = vld [vmem:[%s9 + $0x20] sm:$0xff]
        %v1255 = vld [vmem:[%s9 + $0x28] sm:$0xff]
        %v1256 = vld [vmem:[%s9 + $0x30] sm:$0xff]
        %v1257 = vld [vmem:[%s9 + $0x38] sm:$0xff]
        %v1258 = vld [vmem:[%s9 + $0x40] sm:$0xff]
        %v1259 = vld [vmem:[%s9 + $0x48] sm:$0xff]
        %v1260 = vld [vmem:[%s9 + $0x50] sm:$0xff]
        %v1261 = vld [vmem:[%s9 + $0x58] sm:$0xff]
        %v1262 = vld [vmem:[%s9 + $0x60] sm:$0xff]
        %v1263 = vld [vmem:[%s9 + $0x68] sm:$0xff]
        %v1264 = vld [vmem:[%s9 + $0x70] sm:$0xff]
        %v1265 = vld [vmem:[%s9 + $0x78] sm:$0xff]
        %v1266 = vld [vmem:[%s15] sm:$0x1]
        %v1268 = vlaneseq
        %v1269 = vshrl.u32 %v1268, 7
        %v1270 = vsub.s32 0, %v1269
        %v1271 = vrot.slane %v1266, %v1270
        %1273 = vmatprep.subr.mxu0 0.0
        %1274 = vmatpush1.msra.mxu0 %v1250
        %1275 = vmatprep.subr.mxu0 0.0
        %1276 = vmatpush1.msra.mxu0 %v1251
        %1277 = vmatprep.subr.mxu0 0.0
        %1278 = vmatpush1.msra.mxu0 %v1252
        %1279 = vmatprep.subr.mxu0 0.0
        %1280 = vmatpush1.msra.mxu0 %v1253
        %1281 = vmatprep.subr.mxu0 0.0
        %1282 = vmatpush1.msra.mxu0 %v1254
        %1283 = vmatprep.subr.mxu0 0.0
        %1284 = vmatpush1.msra.mxu0 %v1255
        %1285 = vmatprep.subr.mxu0 0.0
        %1286 = vmatpush1.msra.mxu0 %v1256
        %1287 = vmatprep.subr.mxu0 0.0
        %1288 = vmatpush1.msra.mxu0 %v1257
        %1289 = vmatprep.subr.mxu0 0.0
        %1290 = vmatpush1.msra.mxu0 %v1258
        %1291 = vmatprep.subr.mxu0 0.0
        %1292 = vmatpush1.msra.mxu0 %v1259
        %1293 = vmatprep.subr.mxu0 0.0
        %1294 = vmatpush1.msra.mxu0 %v1260
        %1295 = vmatprep.subr.mxu0 0.0
        %1296 = vmatpush1.msra.mxu0 %v1261
        %1297 = vmatprep.subr.mxu0 0.0
        %1298 = vmatpush1.msra.mxu0 %v1262
        %1299 = vmatprep.subr.mxu0 0.0
        %1300 = vmatpush1.msra.mxu0 %v1263
        %1301 = vmatprep.subr.mxu0 0.0
        %1302 = vmatpush1.msra.mxu0 %v1264
        %1303 = vmatprep.subr.mxu0 0.0
        %1304 = vmatpush1.msra.mxu0 %v1265
        %1305 = vmatprep.subr.mxu0 0.0
        %1306 = vmatpush1.msra.mxu0 0.0
        %1307 = vmatprep.subr.mxu0 0.0
        %1308 = vmatpush1.msra.mxu0 0.0
        %1309 = vmatprep.subr.mxu0 0.0
        %1310 = vmatpush1.msra.mxu0 0.0
        %1311 = vmatprep.subr.mxu0 0.0
        %1312 = vmatpush1.msra.mxu0 0.0
        %1313 = vmatprep.subr.mxu0 0.0
        %1314 = vmatpush1.msra.mxu0 0.0
        %1315 = vmatprep.subr.mxu0 0.0
        %1316 = vmatpush1.msra.mxu0 0.0
        %1317 = vmatprep.subr.mxu0 0.0
        %1318 = vmatpush1.msra.mxu0 0.0
        %1319 = vmatprep.subr.mxu0 0.0
        %1320 = vmatpush1.msra.mxu0 0.0
        %1321 = vmatprep.subr.mxu0 0.0
        %1322 = vmatpush1.msra.mxu0 0.0
        %1323 = vmatprep.subr.mxu0 0.0
        %1324 = vmatpush1.msra.mxu0 0.0
        %1325 = vmatprep.subr.mxu0 0.0
        %1326 = vmatpush1.msra.mxu0 0.0
        %1327 = vmatprep.subr.mxu0 0.0
        %1328 = vmatpush1.msra.mxu0 0.0
        %1329 = vmatprep.subr.mxu0 0.0
        %1330 = vmatpush1.msra.mxu0 0.0
        %1331 = vmatprep.subr.mxu0 0.0
        %1332 = vmatpush1.msra.mxu0 0.0
        %1333 = vmatprep.subr.mxu0 0.0
        %1334 = vmatpush1.msra.mxu0 0.0
        %1335 = vmatprep.subr.mxu0 0.0
        %1336 = vmatpush1.msra.mxu0 0.0
        %1337 = vmatprep.mubr.f32.mxu0 0.0
        %1338 = vmatmul.mubr.f32.gmra.mrb[0].mxu0 %v840
        %v1339 = vpop.f32.mrb[0].mxu0
        %v1340 = vadd.f32 %v1271, %v1339
        %v1341 = vpop.f32.mrb[0].mxu0
        %1342 = vmatprep.mubr.f32.mxu0 0.0
        %1343 = vmatmul.mubr.f32.gmra.mrb[0].mxu0 %v841
        %v1344 = vpop.f32.mrb[0].mxu0
        %v1345 = vadd.f32 %v1271, %v1344
        %v1346 = vpop.f32.mrb[0].mxu0
        %1347 = vdwg.mxu0
        %v1348 = vld [vmem:[#allocation13] sm:$0xff]
        %v1349 = vld [vmem:[#allocation13 + $0x8] sm:$0xff]
        %v1350 = vld [vmem:[#allocation13 + $0x10] sm:$0xff]
        %v1351 = vld [vmem:[#allocation13 + $0x18] sm:$0xff]
        %v1352 = vld [vmem:[#allocation13 + $0x20] sm:$0xff]
        %v1353 = vld [vmem:[#allocation13 + $0x28] sm:$0xff]
        %v1354 = vld [vmem:[#allocation13 + $0x30] sm:$0xff]
        %v1355 = vld [vmem:[#allocation13 + $0x38] sm:$0xff]
        %v1356 = vld [vmem:[#allocation13 + $0x40] sm:$0xff]
        %v1357 = vld [vmem:[#allocation13 + $0x48] sm:$0xff]
        %v1358 = vld [vmem:[#allocation13 + $0x50] sm:$0xff]
        %v1359 = vld [vmem:[#allocation13 + $0x58] sm:$0xff]
        %v1360 = vld [vmem:[#allocation13 + $0x60] sm:$0xff]
        %v1361 = vld [vmem:[#allocation13 + $0x68] sm:$0xff]
        %v1362 = vld [vmem:[#allocation13 + $0x70] sm:$0xff]
        %v1363 = vld [vmem:[#allocation13 + $0x78] sm:$0xff]
        %v1364 = vld [vmem:[%s16] sm:$0x1]
        %v1366 = vlaneseq
        %v1367 = vshrl.u32 %v1366, 7
        %v1368 = vsub.s32 0, %v1367
        %v1369 = vrot.slane %v1364, %v1368
        %1371 = vmatprep.subr.mxu0 0.0
        %1372 = vmatpush1.msra.mxu0 %v1348
        %1373 = vmatprep.subr.mxu0 0.0
        %1374 = vmatpush1.msra.mxu0 %v1349
        %1375 = vmatprep.subr.mxu0 0.0
        %1376 = vmatpush1.msra.mxu0 %v1350
        %1377 = vmatprep.subr.mxu0 0.0
        %1378 = vmatpush1.msra.mxu0 %v1351
        %1379 = vmatprep.subr.mxu0 0.0
        %1380 = vmatpush1.msra.mxu0 %v1352
        %1381 = vmatprep.subr.mxu0 0.0
        %1382 = vmatpush1.msra.mxu0 %v1353
        %1383 = vmatprep.subr.mxu0 0.0
        %1384 = vmatpush1.msra.mxu0 %v1354
        %1385 = vmatprep.subr.mxu0 0.0
        %1386 = vmatpush1.msra.mxu0 %v1355
        %1387 = vmatprep.subr.mxu0 0.0
        %1388 = vmatpush1.msra.mxu0 %v1356
        %1389 = vmatprep.subr.mxu0 0.0
        %1390 = vmatpush1.msra.mxu0 %v1357
        %1391 = vmatprep.subr.mxu0 0.0
        %1392 = vmatpush1.msra.mxu0 %v1358
        %1393 = vmatprep.subr.mxu0 0.0
        %1394 = vmatpush1.msra.mxu0 %v1359
        %1395 = vmatprep.subr.mxu0 0.0
        %1396 = vmatpush1.msra.mxu0 %v1360
        %1397 = vmatprep.subr.mxu0 0.0
        %1398 = vmatpush1.msra.mxu0 %v1361
        %1399 = vmatprep.subr.mxu0 0.0
        %1400 = vmatpush1.msra.mxu0 %v1362
        %1401 = vmatprep.subr.mxu0 0.0
        %1402 = vmatpush1.msra.mxu0 %v1363
        %1403 = vmatprep.subr.mxu0 0.0
        %1404 = vmatpush1.msra.mxu0 0.0
        %1405 = vmatprep.subr.mxu0 0.0
        %1406 = vmatpush1.msra.mxu0 0.0
        %1407 = vmatprep.subr.mxu0 0.0
        %1408 = vmatpush1.msra.mxu0 0.0
        %1409 = vmatprep.subr.mxu0 0.0
        %1410 = vmatpush1.msra.mxu0 0.0
        %1411 = vmatprep.subr.mxu0 0.0
        %1412 = vmatpush1.msra.mxu0 0.0
        %1413 = vmatprep.subr.mxu0 0.0
        %1414 = vmatpush1.msra.mxu0 0.0
        %1415 = vmatprep.subr.mxu0 0.0
        %1416 = vmatpush1.msra.mxu0 0.0
        %1417 = vmatprep.subr.mxu0 0.0
        %1418 = vmatpush1.msra.mxu0 0.0
        %1419 = vmatprep.subr.mxu0 0.0
        %1420 = vmatpush1.msra.mxu0 0.0
        %1421 = vmatprep.subr.mxu0 0.0
        %1422 = vmatpush1.msra.mxu0 0.0
        %1423 = vmatprep.subr.mxu0 0.0
        %1424 = vmatpush1.msra.mxu0 0.0
        %1425 = vmatprep.subr.mxu0 0.0
        %1426 = vmatpush1.msra.mxu0 0.0
        %1427 = vmatprep.subr.mxu0 0.0
        %1428 = vmatpush1.msra.mxu0 0.0
        %1429 = vmatprep.subr.mxu0 0.0
        %1430 = vmatpush1.msra.mxu0 0.0
        %1431 = vmatprep.subr.mxu0 0.0
        %1432 = vmatpush1.msra.mxu0 0.0
        %1433 = vmatprep.subr.mxu0 0.0
        %1434 = vmatpush1.msra.mxu0 0.0
        %1435 = vmatprep.mubr.f32.mxu0 0.0
        %1436 = vmatmul.mubr.f32.gmra.mrb[0].mxu0 %v842
        %v1437 = vpop.f32.mrb[0].mxu0
        %v1438 = vadd.f32 %v1369, %v1437
        %v1439 = vpop.f32.mrb[0].mxu0
        %1440 = vmatprep.mubr.f32.mxu0 0.0
        %1441 = vmatmul.mubr.f32.gmra.mrb[0].mxu0 %v843
        %v1442 = vpop.f32.mrb[0].mxu0
        %v1443 = vadd.f32 %v1369, %v1442
        %v1444 = vpop.f32.mrb[0].mxu0
        %1445 = vdwg.mxu0
        %v1446 = vmul.f32 %v1044, %v1438
        %v1447 = vmul.f32 %v1046, %v1443
        %v1448 = vadd.f32 %v1340, %v1446
        %v1449 = vadd.f32 %v1345, %v1447
        %v1450 = vtanh.pop %v1448
        %v1451 = vtanh.pop %v1449
        %v1452 = vsub.f32 1.0, %v1247
        %v1453 = vsub.f32 1.0, %v1249
        %v1454 = vmul.f32 %v1452, %v1450
        %v1455 = vmul.f32 %v1453, %v1451
        %v1456 = vmul.f32 %v1247, %v842
        %v1457 = vmul.f32 %v1249, %v843
        %v1458 = vadd.f32 %v1454, %v1456
        %v1459 = vadd.f32 %v1455, %v1457
        %1460 = vst [vmem:[#allocation2] sm:$0xff] %v1458
        %1461 = vst [vmem:[#allocation2 + $0x8] sm:$0xff] %v1459
        %v1462 = vld [vmem:[%s2] sm:$0xff]
        %v1463 = vld [vmem:[%s2 + $0x8] sm:$0xff]
        %v1464 = vld [vmem:[%s2 + $0x10] sm:$0xff]
        %v1465 = vld [vmem:[%s2 + $0x18] sm:$0xff]
        %v1466 = vld [vmem:[%s2 + $0x20] sm:$0xff]
        %v1467 = vld [vmem:[%s2 + $0x28] sm:$0xff]
        %v1468 = vld [vmem:[%s2 + $0x30] sm:$0xff]
        %v1469 = vld [vmem:[%s2 + $0x38] sm:$0xff]
        %v1470 = vld [vmem:[%s2 + $0x40] sm:$0xff]
        %v1471 = vld [vmem:[%s2 + $0x48] sm:$0xff]
        %v1472 = vld [vmem:[%s2 + $0x50] sm:$0xff]
        %v1473 = vld [vmem:[%s2 + $0x58] sm:$0xff]
        %v1474 = vld [vmem:[%s2 + $0x60] sm:$0xff]
        %v1475 = vld [vmem:[%s2 + $0x68] sm:$0xff]
        %v1476 = vld [vmem:[%s2 + $0x70] sm:$0xff]
        %v1477 = vld [vmem:[%s2 + $0x78] sm:$0xff]
        %v1478 = vld [vmem:[%s2 + $0x80] sm:$0xff]
        %v1479 = vld [vmem:[%s2 + $0x88] sm:$0xff]
        %v1480 = vld [vmem:[%s2 + $0x90] sm:$0xff]
        %v1481 = vld [vmem:[%s2 + $0x98] sm:$0xff]
        %v1482 = vld [vmem:[%s2 + $0xa0] sm:$0xff]
        %v1483 = vld [vmem:[%s2 + $0xa8] sm:$0xff]
        %v1484 = vld [vmem:[%s2 + $0xb0] sm:$0xff]
        %v1485 = vld [vmem:[%s2 + $0xb8] sm:$0xff]
        %v1486 = vld [vmem:[%s2 + $0xc0] sm:$0xff]
        %v1487 = vld [vmem:[%s2 + $0xc8] sm:$0xff]
        %v1488 = vld [vmem:[%s2 + $0xd0] sm:$0xff]
        %v1489 = vld [vmem:[%s2 + $0xd8] sm:$0xff]
        %v1490 = vld [vmem:[%s2 + $0xe0] sm:$0xff]
        %v1491 = vld [vmem:[%s2 + $0xe8] sm:$0xff]
        %v1492 = vld [vmem:[%s2 + $0xf0] sm:$0xff]
        %v1493 = vld [vmem:[%s2 + $0xf8] sm:$0xff]
        %v1494 = vld [vmem:[%s3] sm:$0x1]
        %v1495 = vld [vmem:[%s3 + $0x1] sm:$0x1]
        %v1498 = vlaneseq
        %v1499 = vshrl.u32 %v1498, 7
        %v1500 = vsub.s32 0, %v1499
        %v1501 = vrot.slane %v1494, %v1500
        %v1502 = vlaneseq
        %v1503 = vshrl.u32 %v1502, 7
        %v1504 = vsub.s32 0, %v1503
        %v1505 = vrot.slane %v1495, %v1504
        %1508 = vmatprep.subr.mxu0 0.0
        %1509 = vmatpush1.xpose.msra.mxu0 %v1462
        %1510 = vmatprep.subr.mxu0 0.0
        %1511 = vmatpush1.xpose.msra.mxu0 %v1463
        %1512 = vmatprep.subr.mxu0 0.0
        %1513 = vmatpush1.xpose.msra.mxu0 %v1464
        %1514 = vmatprep.subr.mxu0 0.0
        %1515 = vmatpush1.xpose.msra.mxu0 %v1465
        %1516 = vmatprep.subr.mxu0 0.0
        %1517 = vmatpush1.xpose.msra.mxu0 %v1466
        %1518 = vmatprep.subr.mxu0 0.0
        %1519 = vmatpush1.xpose.msra.mxu0 %v1467
        %1520 = vmatprep.subr.mxu0 0.0
        %1521 = vmatpush1.xpose.msra.mxu0 %v1468
        %1522 = vmatprep.subr.mxu0 0.0
        %1523 = vmatpush1.xpose.msra.mxu0 %v1469
        %1524 = vmatprep.subr.mxu0 0.0
        %1525 = vmatpush1.xpose.msra.mxu0 %v1470
        %1526 = vmatprep.subr.mxu0 0.0
        %1527 = vmatpush1.xpose.msra.mxu0 %v1471
        %1528 = vmatprep.subr.mxu0 0.0
        %1529 = vmatpush1.xpose.msra.mxu0 %v1472
        %1530 = vmatprep.subr.mxu0 0.0
        %1531 = vmatpush1.xpose.msra.mxu0 %v1473
        %1532 = vmatprep.subr.mxu0 0.0
        %1533 = vmatpush1.xpose.msra.mxu0 %v1474
        %1534 = vmatprep.subr.mxu0 0.0
        %1535 = vmatpush1.xpose.msra.mxu0 %v1475
        %1536 = vmatprep.subr.mxu0 0.0
        %1537 = vmatpush1.xpose.msra.mxu0 %v1476
        %1538 = vmatprep.subr.mxu0 0.0
        %1539 = vmatpush1.xpose.msra.mxu0 %v1477
        %1540 = vmatprep.subr.mxu0 0.0
        %1541 = vmatpush1.xpose.msra.mxu0 0.0
        %1542 = vmatprep.subr.mxu0 0.0
        %1543 = vmatpush1.xpose.msra.mxu0 0.0
        %1544 = vmatprep.subr.mxu0 0.0
        %1545 = vmatpush1.xpose.msra.mxu0 0.0
        %1546 = vmatprep.subr.mxu0 0.0
        %1547 = vmatpush1.xpose.msra.mxu0 0.0
        %1548 = vmatprep.subr.mxu0 0.0
        %1549 = vmatpush1.xpose.msra.mxu0 0.0
        %1550 = vmatprep.subr.mxu0 0.0
        %1551 = vmatpush1.xpose.msra.mxu0 0.0
        %1552 = vmatprep.subr.mxu0 0.0
        %1553 = vmatpush1.xpose.msra.mxu0 0.0
        %1554 = vmatprep.subr.mxu0 0.0
        %1555 = vmatpush1.xpose.msra.mxu0 0.0
        %1556 = vmatprep.subr.mxu0 0.0
        %1557 = vmatpush1.xpose.msra.mxu0 0.0
        %1558 = vmatprep.subr.mxu0 0.0
        %1559 = vmatpush1.xpose.msra.mxu0 0.0
        %1560 = vmatprep.subr.mxu0 0.0
        %1561 = vmatpush1.xpose.msra.mxu0 0.0
        %1562 = vmatprep.subr.mxu0 0.0
        %1563 = vmatpush1.xpose.msra.mxu0 0.0
        %1564 = vmatprep.subr.mxu0 0.0
        %1565 = vmatpush1.xpose.msra.mxu0 0.0
        %1566 = vmatprep.subr.mxu0 0.0
        %1567 = vmatpush1.xpose.msra.mxu0 0.0
        %1568 = vmatprep.subr.mxu0 0.0
        %1569 = vmatpush1.xpose.msra.mxu0 0.0
        %1570 = vmatprep.subr.mxu0 0.0
        %1571 = vmatpush1.xpose.msra.mxu0 0.0
        %1572 = vmatprep.mubr.f32.mxu0 0.0
        %1573 = vmatmul.mubr.f32.gmra.mrb[0].mxu0 %v1458
        %v1574 = vpop.f32.mrb[0].mxu0
        %v1575 = vadd.f32 %v1501, %v1574
        %v1576 = vpop.f32.mrb[0].mxu0
        %1577 = vdwg.mxu0
        %1578 = vmatprep.subr.mxu0 0.0
        %1579 = vmatpush1.xpose.msra.mxu0 %v1478
        %1580 = vmatprep.subr.mxu0 0.0
        %1581 = vmatpush1.xpose.msra.mxu0 %v1479
        %1582 = vmatprep.subr.mxu0 0.0
        %1583 = vmatpush1.xpose.msra.mxu0 %v1480
        %1584 = vmatprep.subr.mxu0 0.0
        %1585 = vmatpush1.xpose.msra.mxu0 %v1481
        %1586 = vmatprep.subr.mxu0 0.0
        %1587 = vmatpush1.xpose.msra.mxu0 %v1482
        %1588 = vmatprep.subr.mxu0 0.0
        %1589 = vmatpush1.xpose.msra.mxu0 %v1483
        %1590 = vmatprep.subr.mxu0 0.0
        %1591 = vmatpush1.xpose.msra.mxu0 %v1484
        %1592 = vmatprep.subr.mxu0 0.0
        %1593 = vmatpush1.xpose.msra.mxu0 %v1485
        %1594 = vmatprep.subr.mxu0 0.0
        %1595 = vmatpush1.xpose.msra.mxu0 %v1486
        %1596 = vmatprep.subr.mxu0 0.0
        %1597 = vmatpush1.xpose.msra.mxu0 %v1487
        %1598 = vmatprep.subr.mxu0 0.0
        %1599 = vmatpush1.xpose.msra.mxu0 %v1488
        %1600 = vmatprep.subr.mxu0 0.0
        %1601 = vmatpush1.xpose.msra.mxu0 %v1489
        %1602 = vmatprep.subr.mxu0 0.0
        %1603 = vmatpush1.xpose.msra.mxu0 %v1490
        %1604 = vmatprep.subr.mxu0 0.0
        %1605 = vmatpush1.xpose.msra.mxu0 %v1491
        %1606 = vmatprep.subr.mxu0 0.0
        %1607 = vmatpush1.xpose.msra.mxu0 %v1492
        %1608 = vmatprep.subr.mxu0 0.0
        %1609 = vmatpush1.xpose.msra.mxu0 %v1493
        %1610 = vmatprep.subr.mxu0 0.0
        %1611 = vmatpush1.xpose.msra.mxu0 0.0
        %1612 = vmatprep.subr.mxu0 0.0
        %1613 = vmatpush1.xpose.msra.mxu0 0.0
        %1614 = vmatprep.subr.mxu0 0.0
        %1615 = vmatpush1.xpose.msra.mxu0 0.0
        %1616 = vmatprep.subr.mxu0 0.0
        %1617 = vmatpush1.xpose.msra.mxu0 0.0
        %1618 = vmatprep.subr.mxu0 0.0
        %1619 = vmatpush1.xpose.msra.mxu0 0.0
        %1620 = vmatprep.subr.mxu0 0.0
        %1621 = vmatpush1.xpose.msra.mxu0 0.0
        %1622 = vmatprep.subr.mxu0 0.0
        %1623 = vmatpush1.xpose.msra.mxu0 0.0
        %1624 = vmatprep.subr.mxu0 0.0
        %1625 = vmatpush1.xpose.msra.mxu0 0.0
        %1626 = vmatprep.subr.mxu0 0.0
        %1627 = vmatpush1.xpose.msra.mxu0 0.0
        %1628 = vmatprep.subr.mxu0 0.0
        %1629 = vmatpush1.xpose.msra.mxu0 0.0
        %1630 = vmatprep.subr.mxu0 0.0
        %1631 = vmatpush1.xpose.msra.mxu0 0.0
        %1632 = vmatprep.subr.mxu0 0.0
        %1633 = vmatpush1.xpose.msra.mxu0 0.0
        %1634 = vmatprep.subr.mxu0 0.0
        %1635 = vmatpush1.xpose.msra.mxu0 0.0
        %1636 = vmatprep.subr.mxu0 0.0
        %1637 = vmatpush1.xpose.msra.mxu0 0.0
        %1638 = vmatprep.subr.mxu0 0.0
        %1639 = vmatpush1.xpose.msra.mxu0 0.0
        %1640 = vmatprep.subr.mxu0 0.0
        %1641 = vmatpush1.xpose.msra.mxu0 0.0
        %1642 = vmatprep.mubr.f32.mxu0 0.0
        %1643 = vmatmul.mubr.f32.gmra.mrb[0].mxu0 %v1459
        %v1644 = vpop.f32.mrb[0].mxu0
        %v1645 = vadd.f32 %v1505, %v1644
        %v1646 = vpop.f32.mrb[0].mxu0
        %1647 = vdwg.mxu0
        %1648 = vmax.xlane.f32.xlu0 %v1575
        %v1649 = vpop.xlane.xlu0 %1648
        %1650 = vmax.xlane.f32.xlu0 %v1645
        %v1651 = vpop.xlane.xlu0 %1650
        %v1652 = vsub.f32 %v1575, %v1649
        %v1653 = vsub.f32 %v1645, %v1651
        %v1654 = vmul.f32 %v1652, 1.442695
        %v1655 = vpow.pop %v1654
        %v1656 = vmul.f32 %v1653, 1.442695
        %v1657 = vpow.pop %v1656
        %1658 = vadd.xlane.f32.xlu0 %v1655
        %v1659 = vpop.xlane.xlu0 %1658
        %1660 = vadd.xlane.f32.xlu0 %v1657
        %v1661 = vpop.xlane.xlu0 %1660
        %v1662 = vrcp.pop %v1659
        %v1663 = vmul.f32 %v1655, %v1662
        %v1664 = vrcp.pop %v1661
        %v1665 = vmul.f32 %v1657, %v1664
        %1666 = vmatprep.subr.mxu0 0.0
        %1667 = vmatpush1.msra.mxu0 %v1462
        %1668 = vmatprep.subr.mxu0 0.0
        %1669 = vmatpush1.msra.mxu0 %v1463
        %1670 = vmatprep.subr.mxu0 0.0
        %1671 = vmatpush1.msra.mxu0 %v1464
        %1672 = vmatprep.subr.mxu0 0.0
        %1673 = vmatpush1.msra.mxu0 %v1465
        %1674 = vmatprep.subr.mxu0 0.0
        %1675 = vmatpush1.msra.mxu0 %v1466
        %1676 = vmatprep.subr.mxu0 0.0
        %1677 = vmatpush1.msra.mxu0 %v1467
        %1678 = vmatprep.subr.mxu0 0.0
        %1679 = vmatpush1.msra.mxu0 %v1468
        %1680 = vmatprep.subr.mxu0 0.0
        %1681 = vmatpush1.msra.mxu0 %v1469
        %1682 = vmatprep.subr.mxu0 0.0
        %1683 = vmatpush1.msra.mxu0 %v1470
        %1684 = vmatprep.subr.mxu0 0.0
        %1685 = vmatpush1.msra.mxu0 %v1471
        %1686 = vmatprep.subr.mxu0 0.0
        %1687 = vmatpush1.msra.mxu0 %v1472
        %1688 = vmatprep.subr.mxu0 0.0
        %1689 = vmatpush1.msra.mxu0 %v1473
        %1690 = vmatprep.subr.mxu0 0.0
        %1691 = vmatpush1.msra.mxu0 %v1474
        %1692 = vmatprep.subr.mxu0 0.0
        %1693 = vmatpush1.msra.mxu0 %v1475
        %1694 = vmatprep.subr.mxu0 0.0
        %1695 = vmatpush1.msra.mxu0 %v1476
        %1696 = vmatprep.subr.mxu0 0.0
        %1697 = vmatpush1.msra.mxu0 %v1477
        %1698 = vmatprep.subr.mxu0 0.0
        %1699 = vmatpush1.msra.mxu0 0.0
        %1700 = vmatprep.subr.mxu0 0.0
        %1701 = vmatpush1.msra.mxu0 0.0
        %1702 = vmatprep.subr.mxu0 0.0
        %1703 = vmatpush1.msra.mxu0 0.0
        %1704 = vmatprep.subr.mxu0 0.0
        %1705 = vmatpush1.msra.mxu0 0.0
        %1706 = vmatprep.subr.mxu0 0.0
        %1707 = vmatpush1.msra.mxu0 0.0
        %1708 = vmatprep.subr.mxu0 0.0
        %1709 = vmatpush1.msra.mxu0 0.0
        %1710 = vmatprep.subr.mxu0 0.0
        %1711 = vmatpush1.msra.mxu0 0.0
        %1712 = vmatprep.subr.mxu0 0.0
        %1713 = vmatpush1.msra.mxu0 0.0
        %1714 = vmatprep.subr.mxu0 0.0
        %1715 = vmatpush1.msra.mxu0 0.0
        %1716 = vmatprep.subr.mxu0 0.0
        %1717 = vmatpush1.msra.mxu0 0.0
        %1718 = vmatprep.subr.mxu0 0.0
        %1719 = vmatpush1.msra.mxu0 0.0
        %1720 = vmatprep.subr.mxu0 0.0
        %1721 = vmatpush1.msra.mxu0 0.0
        %1722 = vmatprep.subr.mxu0 0.0
        %1723 = vmatpush1.msra.mxu0 0.0
        %1724 = vmatprep.subr.mxu0 0.0
        %1725 = vmatpush1.msra.mxu0 0.0
        %1726 = vmatprep.subr.mxu0 0.0
        %1727 = vmatpush1.msra.mxu0 0.0
        %1728 = vmatprep.subr.mxu0 0.0
        %1729 = vmatpush1.msra.mxu0 0.0
        %1730 = vmatprep.mubr.f32.mxu0 0.0
        %1731 = vmatmul.mubr.f32.gmra.mrb[0].mxu0 %v1663
        %v1732 = vpop.f32.mrb[0].mxu0
        %v1733 = vadd.f32 0.0, %v1732
        %v1734 = vpop.f32.mrb[0].mxu0
        %1735 = vdwg.mxu0
        %1736 = vmatprep.subr.mxu0 0.0
        %1737 = vmatpush1.msra.mxu0 %v1478
        %1738 = vmatprep.subr.mxu0 0.0
        %1739 = vmatpush1.msra.mxu0 %v1479
        %1740 = vmatprep.subr.mxu0 0.0
        %1741 = vmatpush1.msra.mxu0 %v1480
        %1742 = vmatprep.subr.mxu0 0.0
        %1743 = vmatpush1.msra.mxu0 %v1481
        %1744 = vmatprep.subr.mxu0 0.0
        %1745 = vmatpush1.msra.mxu0 %v1482
        %1746 = vmatprep.subr.mxu0 0.0
        %1747 = vmatpush1.msra.mxu0 %v1483
        %1748 = vmatprep.subr.mxu0 0.0
        %1749 = vmatpush1.msra.mxu0 %v1484
        %1750 = vmatprep.subr.mxu0 0.0
        %1751 = vmatpush1.msra.mxu0 %v1485
        %1752 = vmatprep.subr.mxu0 0.0
        %1753 = vmatpush1.msra.mxu0 %v1486
        %1754 = vmatprep.subr.mxu0 0.0
        %1755 = vmatpush1.msra.mxu0 %v1487
        %1756 = vmatprep.subr.mxu0 0.0
        %1757 = vmatpush1.msra.mxu0 %v1488
        %1758 = vmatprep.subr.mxu0 0.0
        %1759 = vmatpush1.msra.mxu0 %v1489
        %1760 = vmatprep.subr.mxu0 0.0
        %1761 = vmatpush1.msra.mxu0 %v1490
        %1762 = vmatprep.subr.mxu0 0.0
        %1763 = vmatpush1.msra.mxu0 %v1491
        %1764 = vmatprep.subr.mxu0 0.0
        %1765 = vmatpush1.msra.mxu0 %v1492
        %1766 = vmatprep.subr.mxu0 0.0
        %1767 = vmatpush1.msra.mxu0 %v1493
        %1768 = vmatprep.subr.mxu0 0.0
        %1769 = vmatpush1.msra.mxu0 0.0
        %1770 = vmatprep.subr.mxu0 0.0
        %1771 = vmatpush1.msra.mxu0 0.0
        %1772 = vmatprep.subr.mxu0 0.0
        %1773 = vmatpush1.msra.mxu0 0.0
        %1774 = vmatprep.subr.mxu0 0.0
        %1775 = vmatpush1.msra.mxu0 0.0
        %1776 = vmatprep.subr.mxu0 0.0
        %1777 = vmatpush1.msra.mxu0 0.0
        %1778 = vmatprep.subr.mxu0 0.0
        %1779 = vmatpush1.msra.mxu0 0.0
        %1780 = vmatprep.subr.mxu0 0.0
        %1781 = vmatpush1.msra.mxu0 0.0
        %1782 = vmatprep.subr.mxu0 0.0
        %1783 = vmatpush1.msra.mxu0 0.0
        %1784 = vmatprep.subr.mxu0 0.0
        %1785 = vmatpush1.msra.mxu0 0.0
        %1786 = vmatprep.subr.mxu0 0.0
        %1787 = vmatpush1.msra.mxu0 0.0
        %1788 = vmatprep.subr.mxu0 0.0
        %1789 = vmatpush1.msra.mxu0 0.0
        %1790 = vmatprep.subr.mxu0 0.0
        %1791 = vmatpush1.msra.mxu0 0.0
        %1792 = vmatprep.subr.mxu0 0.0
        %1793 = vmatpush1.msra.mxu0 0.0
        %1794 = vmatprep.subr.mxu0 0.0
        %1795 = vmatpush1.msra.mxu0 0.0
        %1796 = vmatprep.subr.mxu0 0.0
        %1797 = vmatpush1.msra.mxu0 0.0
        %1798 = vmatprep.subr.mxu0 0.0
        %1799 = vmatpush1.msra.mxu0 0.0
        %1800 = vmatprep.mubr.f32.mxu0 0.0
        %1801 = vmatmul.mubr.f32.gmra.mrb[0].mxu0 %v1665
        %v1802 = vpop.f32.mrb[0].mxu0
        %v1803 = vadd.f32 0.0, %v1802
        %v1804 = vpop.f32.mrb[0].mxu0
        %1805 = vdwg.mxu0
        %v1806 = vlaneseq
        %v1807 = vand.u32 %v1806, 127
        %v1808 = vld [vmem:[%s4] sm:$0xff]
        %v1809 = vld [vmem:[%s4 + $0x8] sm:$0xff]
        %v1810 = vld [vmem:[%s4 + $0x10] sm:$0xff]
        %v1811 = vld [vmem:[%s4 + $0x18] sm:$0xff]
        %v1812 = vld [vmem:[%s4 + $0x20] sm:$0xff]
        %v1813 = vld [vmem:[%s4 + $0x28] sm:$0xff]
        %v1814 = vld [vmem:[%s4 + $0x30] sm:$0xff]
        %v1815 = vld [vmem:[%s4 + $0x38] sm:$0xff]
        %v1816 = vld [vmem:[%s4 + $0x40] sm:$0xff]
        %v1817 = vld [vmem:[%s4 + $0x48] sm:$0xff]
        %v1818 = vld [vmem:[%s4 + $0x50] sm:$0xff]
        %v1819 = vld [vmem:[%s4 + $0x58] sm:$0xff]
        %v1820 = vld [vmem:[%s4 + $0x60] sm:$0xff]
        %v1821 = vld [vmem:[%s4 + $0x68] sm:$0xff]
        %v1822 = vld [vmem:[%s4 + $0x70] sm:$0xff]
        %v1823 = vld [vmem:[%s4 + $0x78] sm:$0xff]
        %v1824 = vld [vmem:[%s4 + $0x80] sm:$0xff]
        %v1825 = vld [vmem:[%s4 + $0x88] sm:$0xff]
        %v1826 = vld [vmem:[%s4 + $0x90] sm:$0xff]
        %v1827 = vld [vmem:[%s4 + $0x98] sm:$0xff]
        %v1828 = vld [vmem:[%s4 + $0xa0] sm:$0xff]
        %v1829 = vld [vmem:[%s4 + $0xa8] sm:$0xff]
        %v1830 = vld [vmem:[%s4 + $0xb0] sm:$0xff]
        %v1831 = vld [vmem:[%s4 + $0xb8] sm:$0xff]
        %v1832 = vld [vmem:[%s4 + $0xc0] sm:$0xff]
        %v1833 = vld [vmem:[%s4 + $0xc8] sm:$0xff]
        %v1834 = vld [vmem:[%s4 + $0xd0] sm:$0xff]
        %v1835 = vld [vmem:[%s4 + $0xd8] sm:$0xff]
        %v1836 = vld [vmem:[%s4 + $0xe0] sm:$0xff]
        %v1837 = vld [vmem:[%s4 + $0xe8] sm:$0xff]
        %v1838 = vld [vmem:[%s4 + $0xf0] sm:$0xff]
        %v1839 = vld [vmem:[%s4 + $0xf8] sm:$0xff]
        %1840 = vset.pattern.permute.xlu0 0
        %1841 = vperm.xlu0 %1840, %v1808
        %v1842 = vpop.permute.xlu0 %1841
        %1843 = vset.pattern.permute.xlu0 0
        %1844 = vperm.xlu0 %1843, %v1809
        %v1845 = vpop.permute.xlu0 %1844
        %1846 = vset.pattern.permute.xlu0 0
        %1847 = vperm.xlu0 %1846, %v1810
        %v1848 = vpop.permute.xlu0 %1847
        %1849 = vset.pattern.permute.xlu0 0
        %1850 = vperm.xlu0 %1849, %v1811
        %v1851 = vpop.permute.xlu0 %1850
        %1852 = vset.pattern.permute.xlu0 0
        %1853 = vperm.xlu0 %1852, %v1812
        %v1854 = vpop.permute.xlu0 %1853
        %1855 = vset.pattern.permute.xlu0 0
        %1856 = vperm.xlu0 %1855, %v1813
        %v1857 = vpop.permute.xlu0 %1856
        %1858 = vset.pattern.permute.xlu0 0
        %1859 = vperm.xlu0 %1858, %v1814
        %v1860 = vpop.permute.xlu0 %1859
        %1861 = vset.pattern.permute.xlu0 0
        %1862 = vperm.xlu0 %1861, %v1815
        %v1863 = vpop.permute.xlu0 %1862
        %1864 = vset.pattern.permute.xlu0 0
        %1865 = vperm.xlu0 %1864, %v1816
        %v1866 = vpop.permute.xlu0 %1865
        %1867 = vset.pattern.permute.xlu0 0
        %1868 = vperm.xlu0 %1867, %v1817
        %v1869 = vpop.permute.xlu0 %1868
        %1870 = vset.pattern.permute.xlu0 0
        %1871 = vperm.xlu0 %1870, %v1818
        %v1872 = vpop.permute.xlu0 %1871
        %1873 = vset.pattern.permute.xlu0 0
        %1874 = vperm.xlu0 %1873, %v1819
        %v1875 = vpop.permute.xlu0 %1874
        %1876 = vset.pattern.permute.xlu0 0
        %1877 = vperm.xlu0 %1876, %v1820
        %v1878 = vpop.permute.xlu0 %1877
        %1879 = vset.pattern.permute.xlu0 0
        %1880 = vperm.xlu0 %1879, %v1821
        %v1881 = vpop.permute.xlu0 %1880
        %1882 = vset.pattern.permute.xlu0 0
        %1883 = vperm.xlu0 %1882, %v1822
        %v1884 = vpop.permute.xlu0 %1883
        %1885 = vset.pattern.permute.xlu0 0
        %1886 = vperm.xlu0 %1885, %v1823
        %v1887 = vpop.permute.xlu0 %1886
        %1888 = vset.pattern.permute.xlu0 0
        %1889 = vperm.xlu0 %1888, %v1824
        %v1890 = vpop.permute.xlu0 %1889
        %1891 = vset.pattern.permute.xlu0 0
        %1892 = vperm.xlu0 %1891, %v1825
        %v1893 = vpop.permute.xlu0 %1892
        %1894 = vset.pattern.permute.xlu0 0
        %1895 = vperm.xlu0 %1894, %v1826
        %v1896 = vpop.permute.xlu0 %1895
        %1897 = vset.pattern.permute.xlu0 0
        %1898 = vperm.xlu0 %1897, %v1827
        %v1899 = vpop.permute.xlu0 %1898
        %1900 = vset.pattern.permute.xlu0 0
        %1901 = vperm.xlu0 %1900, %v1828
        %v1902 = vpop.permute.xlu0 %1901
        %1903 = vset.pattern.permute.xlu0 0
        %1904 = vperm.xlu0 %1903, %v1829
        %v1905 = vpop.permute.xlu0 %1904
        %1906 = vset.pattern.permute.xlu0 0
        %1907 = vperm.xlu0 %1906, %v1830
        %v1908 = vpop.permute.xlu0 %1907
        %1909 = vset.pattern.permute.xlu0 0
        %1910 = vperm.xlu0 %1909, %v1831
        %v1911 = vpop.permute.xlu0 %1910
        %1912 = vset.pattern.permute.xlu0 0
        %1913 = vperm.xlu0 %1912, %v1832
        %v1914 = vpop.permute.xlu0 %1913
        %1915 = vset.pattern.permute.xlu0 0
        %1916 = vperm.xlu0 %1915, %v1833
        %v1917 = vpop.permute.xlu0 %1916
        %1918 = vset.pattern.permute.xlu0 0
        %1919 = vperm.xlu0 %1918, %v1834
        %v1920 = vpop.permute.xlu0 %1919
        %1921 = vset.pattern.permute.xlu0 0
        %1922 = vperm.xlu0 %1921, %v1835
        %v1923 = vpop.permute.xlu0 %1922
        %1924 = vset.pattern.permute.xlu0 0
        %1925 = vperm.xlu0 %1924, %v1836
        %v1926 = vpop.permute.xlu0 %1925
        %1927 = vset.pattern.permute.xlu0 0
        %1928 = vperm.xlu0 %1927, %v1837
        %v1929 = vpop.permute.xlu0 %1928
        %1930 = vset.pattern.permute.xlu0 0
        %1931 = vperm.xlu0 %1930, %v1838
        %v1932 = vpop.permute.xlu0 %1931
        %1933 = vset.pattern.permute.xlu0 0
        %1934 = vperm.xlu0 %1933, %v1839
        %v1935 = vpop.permute.xlu0 %1934
        %vm1936 = vcmp.eq.s32.totalorder %v1842, %v1807
        %vm1937 = vcmp.eq.s32.totalorder %v1845, %v1807
        %vm1938 = vcmp.eq.s32.totalorder %v1848, %v1807
        %vm1939 = vcmp.eq.s32.totalorder %v1851, %v1807
        %vm1940 = vcmp.eq.s32.totalorder %v1854, %v1807
        %vm1941 = vcmp.eq.s32.totalorder %v1857, %v1807
        %vm1942 = vcmp.eq.s32.totalorder %v1860, %v1807
        %vm1943 = vcmp.eq.s32.totalorder %v1863, %v1807
        %vm1944 = vcmp.eq.s32.totalorder %v1866, %v1807
        %vm1945 = vcmp.eq.s32.totalorder %v1869, %v1807
        %vm1946 = vcmp.eq.s32.totalorder %v1872, %v1807
        %vm1947 = vcmp.eq.s32.totalorder %v1875, %v1807
        %vm1948 = vcmp.eq.s32.totalorder %v1878, %v1807
        %vm1949 = vcmp.eq.s32.totalorder %v1881, %v1807
        %vm1950 = vcmp.eq.s32.totalorder %v1884, %v1807
        %vm1951 = vcmp.eq.s32.totalorder %v1887, %v1807
        %vm1952 = vcmp.eq.s32.totalorder %v1890, %v1807
        %vm1953 = vcmp.eq.s32.totalorder %v1893, %v1807
        %vm1954 = vcmp.eq.s32.totalorder %v1896, %v1807
        %vm1955 = vcmp.eq.s32.totalorder %v1899, %v1807
        %vm1956 = vcmp.eq.s32.totalorder %v1902, %v1807
        %vm1957 = vcmp.eq.s32.totalorder %v1905, %v1807
        %vm1958 = vcmp.eq.s32.totalorder %v1908, %v1807
        %vm1959 = vcmp.eq.s32.totalorder %v1911, %v1807
        %vm1960 = vcmp.eq.s32.totalorder %v1914, %v1807
        %vm1961 = vcmp.eq.s32.totalorder %v1917, %v1807
        %vm1962 = vcmp.eq.s32.totalorder %v1920, %v1807
        %vm1963 = vcmp.eq.s32.totalorder %v1923, %v1807
        %vm1964 = vcmp.eq.s32.totalorder %v1926, %v1807
        %vm1965 = vcmp.eq.s32.totalorder %v1929, %v1807
        %vm1966 = vcmp.eq.s32.totalorder %v1932, %v1807
        %vm1967 = vcmp.eq.s32.totalorder %v1935, %v1807
        %v1968 = vsel %vm1936, 1, 0
        %v1969 = vsel %vm1937, 1, 0
        %v1970 = vsel %vm1938, 1, 0
        %v1971 = vsel %vm1939, 1, 0
        %v1972 = vsel %vm1940, 1, 0
        %v1973 = vsel %vm1941, 1, 0
        %v1974 = vsel %vm1942, 1, 0
        %v1975 = vsel %vm1943, 1, 0
        %v1976 = vsel %vm1944, 1, 0
        %v1977 = vsel %vm1945, 1, 0
        %v1978 = vsel %vm1946, 1, 0
        %v1979 = vsel %vm1947, 1, 0
        %v1980 = vsel %vm1948, 1, 0
        %v1981 = vsel %vm1949, 1, 0
        %v1982 = vsel %vm1950, 1, 0
        %v1983 = vsel %vm1951, 1, 0
        %v1984 = vsel %vm1952, 1, 0
        %v1985 = vsel %vm1953, 1, 0
        %v1986 = vsel %vm1954, 1, 0
        %v1987 = vsel %vm1955, 1, 0
        %v1988 = vsel %vm1956, 1, 0
        %v1989 = vsel %vm1957, 1, 0
        %v1990 = vsel %vm1958, 1, 0
        %v1991 = vsel %vm1959, 1, 0
        %v1992 = vsel %vm1960, 1, 0
        %v1993 = vsel %vm1961, 1, 0
        %v1994 = vsel %vm1962, 1, 0
        %v1995 = vsel %vm1963, 1, 0
        %v1996 = vsel %vm1964, 1, 0
        %v1997 = vsel %vm1965, 1, 0
        %v1998 = vsel %vm1966, 1, 0
        %v1999 = vsel %vm1967, 1, 0
        %v2000 = vcvt.s32.f32 %v1968
        %v2001 = vcvt.s32.f32 %v1969
        %v2002 = vcvt.s32.f32 %v1970
        %v2003 = vcvt.s32.f32 %v1971
        %v2004 = vcvt.s32.f32 %v1972
        %v2005 = vcvt.s32.f32 %v1973
        %v2006 = vcvt.s32.f32 %v1974
        %v2007 = vcvt.s32.f32 %v1975
        %v2008 = vcvt.s32.f32 %v1976
        %v2009 = vcvt.s32.f32 %v1977
        %v2010 = vcvt.s32.f32 %v1978
        %v2011 = vcvt.s32.f32 %v1979
        %v2012 = vcvt.s32.f32 %v1980
        %v2013 = vcvt.s32.f32 %v1981
        %v2014 = vcvt.s32.f32 %v1982
        %v2015 = vcvt.s32.f32 %v1983
        %v2016 = vcvt.s32.f32 %v1984
        %v2017 = vcvt.s32.f32 %v1985
        %v2018 = vcvt.s32.f32 %v1986
        %v2019 = vcvt.s32.f32 %v1987
        %v2020 = vcvt.s32.f32 %v1988
        %v2021 = vcvt.s32.f32 %v1989
        %v2022 = vcvt.s32.f32 %v1990
        %v2023 = vcvt.s32.f32 %v1991
        %v2024 = vcvt.s32.f32 %v1992
        %v2025 = vcvt.s32.f32 %v1993
        %v2026 = vcvt.s32.f32 %v1994
        %v2027 = vcvt.s32.f32 %v1995
        %v2028 = vcvt.s32.f32 %v1996
        %v2029 = vcvt.s32.f32 %v1997
        %v2030 = vcvt.s32.f32 %v1998
        %v2031 = vcvt.s32.f32 %v1999
        %2032 = vmatprep.subr.mxu0 0.0
        %2033 = vmatpush1.msra.mxu0 %v2000
        %2034 = vmatprep.subr.mxu0 0.0
        %2035 = vmatpush1.msra.mxu0 %v2001
        %2036 = vmatprep.subr.mxu0 0.0
        %2037 = vmatpush1.msra.mxu0 %v2002
        %2038 = vmatprep.subr.mxu0 0.0
        %2039 = vmatpush1.msra.mxu0 %v2003
        %2040 = vmatprep.subr.mxu0 0.0
        %2041 = vmatpush1.msra.mxu0 %v2004
        %2042 = vmatprep.subr.mxu0 0.0
        %2043 = vmatpush1.msra.mxu0 %v2005
        %2044 = vmatprep.subr.mxu0 0.0
        %2045 = vmatpush1.msra.mxu0 %v2006
        %2046 = vmatprep.subr.mxu0 0.0
        %2047 = vmatpush1.msra.mxu0 %v2007
        %2048 = vmatprep.subr.mxu0 0.0
        %2049 = vmatpush1.msra.mxu0 %v2008
        %2050 = vmatprep.subr.mxu0 0.0
        %2051 = vmatpush1.msra.mxu0 %v2009
        %2052 = vmatprep.subr.mxu0 0.0
        %2053 = vmatpush1.msra.mxu0 %v2010
        %2054 = vmatprep.subr.mxu0 0.0
        %2055 = vmatpush1.msra.mxu0 %v2011
        %2056 = vmatprep.subr.mxu0 0.0
        %2057 = vmatpush1.msra.mxu0 %v2012
        %2058 = vmatprep.subr.mxu0 0.0
        %2059 = vmatpush1.msra.mxu0 %v2013
        %2060 = vmatprep.subr.mxu0 0.0
        %2061 = vmatpush1.msra.mxu0 %v2014
        %2062 = vmatprep.subr.mxu0 0.0
        %2063 = vmatpush1.msra.mxu0 %v2015
        %2064 = vmatprep.subr.mxu0 0.0
        %2065 = vmatpush1.msra.mxu0 0.0
        %2066 = vmatprep.subr.mxu0 0.0
        %2067 = vmatpush1.msra.mxu0 0.0
        %2068 = vmatprep.subr.mxu0 0.0
        %2069 = vmatpush1.msra.mxu0 0.0
        %2070 = vmatprep.subr.mxu0 0.0
        %2071 = vmatpush1.msra.mxu0 0.0
        %2072 = vmatprep.subr.mxu0 0.0
        %2073 = vmatpush1.msra.mxu0 0.0
        %2074 = vmatprep.subr.mxu0 0.0
        %2075 = vmatpush1.msra.mxu0 0.0
        %2076 = vmatprep.subr.mxu0 0.0
        %2077 = vmatpush1.msra.mxu0 0.0
        %2078 = vmatprep.subr.mxu0 0.0
        %2079 = vmatpush1.msra.mxu0 0.0
        %2080 = vmatprep.subr.mxu0 0.0
        %2081 = vmatpush1.msra.mxu0 0.0
        %2082 = vmatprep.subr.mxu0 0.0
        %2083 = vmatpush1.msra.mxu0 0.0
        %2084 = vmatprep.subr.mxu0 0.0
        %2085 = vmatpush1.msra.mxu0 0.0
        %2086 = vmatprep.subr.mxu0 0.0
        %2087 = vmatpush1.msra.mxu0 0.0
        %2088 = vmatprep.subr.mxu0 0.0
        %2089 = vmatpush1.msra.mxu0 0.0
        %2090 = vmatprep.subr.mxu0 0.0
        %2091 = vmatpush1.msra.mxu0 0.0
        %2092 = vmatprep.subr.mxu0 0.0
        %2093 = vmatpush1.msra.mxu0 0.0
        %2094 = vmatprep.subr.mxu0 0.0
        %2095 = vmatpush1.msra.mxu0 0.0
        %2096 = vmatprep.mubr.f32.mxu0 0.0
        %2097 = vmatmul.mubr.f32.gmra.mrb[0].mxu0 %v1663
        %v2098 = vpop.f32.mrb[0].mxu0
        %v2099 = vadd.f32 0.0, %v2098
        %v2100 = vpop.f32.mrb[0].mxu0
        %2101 = vdwg.mxu0
        %2102 = vmatprep.subr.mxu0 0.0
        %2103 = vmatpush1.msra.mxu0 %v2016
        %2104 = vmatprep.subr.mxu0 0.0
        %2105 = vmatpush1.msra.mxu0 %v2017
        %2106 = vmatprep.subr.mxu0 0.0
        %2107 = vmatpush1.msra.mxu0 %v2018
        %2108 = vmatprep.subr.mxu0 0.0
        %2109 = vmatpush1.msra.mxu0 %v2019
        %2110 = vmatprep.subr.mxu0 0.0
        %2111 = vmatpush1.msra.mxu0 %v2020
        %2112 = vmatprep.subr.mxu0 0.0
        %2113 = vmatpush1.msra.mxu0 %v2021
        %2114 = vmatprep.subr.mxu0 0.0
        %2115 = vmatpush1.msra.mxu0 %v2022
        %2116 = vmatprep.subr.mxu0 0.0
        %2117 = vmatpush1.msra.mxu0 %v2023
        %2118 = vmatprep.subr.mxu0 0.0
        %2119 = vmatpush1.msra.mxu0 %v2024
        %2120 = vmatprep.subr.mxu0 0.0
        %2121 = vmatpush1.msra.mxu0 %v2025
        %2122 = vmatprep.subr.mxu0 0.0
        %2123 = vmatpush1.msra.mxu0 %v2026
        %2124 = vmatprep.subr.mxu0 0.0
        %2125 = vmatpush1.msra.mxu0 %v2027
        %2126 = vmatprep.subr.mxu0 0.0
        %2127 = vmatpush1.msra.mxu0 %v2028
        %2128 = vmatprep.subr.mxu0 0.0
        %2129 = vmatpush1.msra.mxu0 %v2029
        %2130 = vmatprep.subr.mxu0 0.0
        %2131 = vmatpush1.msra.mxu0 %v2030
        %2132 = vmatprep.subr.mxu0 0.0
        %2133 = vmatpush1.msra.mxu0 %v2031
        %2134 = vmatprep.subr.mxu0 0.0
        %2135 = vmatpush1.msra.mxu0 0.0
        %2136 = vmatprep.subr.mxu0 0.0
        %2137 = vmatpush1.msra.mxu0 0.0
        %2138 = vmatprep.subr.mxu0 0.0
        %2139 = vmatpush1.msra.mxu0 0.0
        %2140 = vmatprep.subr.mxu0 0.0
        %2141 = vmatpush1.msra.mxu0 0.0
        %2142 = vmatprep.subr.mxu0 0.0
        %2143 = vmatpush1.msra.mxu0 0.0
        %2144 = vmatprep.subr.mxu0 0.0
        %2145 = vmatpush1.msra.mxu0 0.0
        %2146 = vmatprep.subr.mxu0 0.0
        %2147 = vmatpush1.msra.mxu0 0.0
        %2148 = vmatprep.subr.mxu0 0.0
        %2149 = vmatpush1.msra.mxu0 0.0
        %2150 = vmatprep.subr.mxu0 0.0
        %2151 = vmatpush1.msra.mxu0 0.0
        %2152 = vmatprep.subr.mxu0 0.0
        %2153 = vmatpush1.msra.mxu0 0.0
        %2154 = vmatprep.subr.mxu0 0.0
        %2155 = vmatpush1.msra.mxu0 0.0
        %2156 = vmatprep.subr.mxu0 0.0
        %2157 = vmatpush1.msra.mxu0 0.0
        %2158 = vmatprep.subr.mxu0 0.0
        %2159 = vmatpush1.msra.mxu0 0.0
        %2160 = vmatprep.subr.mxu0 0.0
        %2161 = vmatpush1.msra.mxu0 0.0
        %2162 = vmatprep.subr.mxu0 0.0
        %2163 = vmatpush1.msra.mxu0 0.0
        %2164 = vmatprep.subr.mxu0 0.0
        %2165 = vmatpush1.msra.mxu0 0.0
        %2166 = vmatprep.mubr.f32.mxu0 0.0
        %2167 = vmatmul.mubr.f32.gmra.mrb[0].mxu0 %v1665
        %v2168 = vpop.f32.mrb[0].mxu0
        %v2169 = vadd.f32 0.0, %v2168
        %v2170 = vpop.f32.mrb[0].mxu0
        %2171 = vdwg.mxu0
        // Predicated region
        $region137: #{tpu_custom_call.1} parent=111 // pred_check
          %p2172 = pneg %p828
        $region138: #{tpu_custom_call.1} parent=111 // pred_check_branch
          %2174 = sbr.rel (%p2172) target = $region140
        $region139: #{tpu_custom_call.1} parent=111 // pred_region
          %v2175 = vld [vmem:[%s21] sm:$0xff]
          %v2176 = vld [vmem:[%s21 + $0x8] sm:$0xff]
          %v2177 = vld [vmem:[%s21 + $0x10] sm:$0xff]
          %v2178 = vld [vmem:[%s21 + $0x18] sm:$0xff]
          %v2179 = vld [vmem:[%s21 + $0x20] sm:$0xff]
          %v2180 = vld [vmem:[%s21 + $0x28] sm:$0xff]
          %v2181 = vld [vmem:[%s21 + $0x30] sm:$0xff]
          %v2182 = vld [vmem:[%s21 + $0x38] sm:$0xff]
          %v2183 = vld [vmem:[%s21 + $0x40] sm:$0xff]
          %v2184 = vld [vmem:[%s21 + $0x48] sm:$0xff]
          %v2185 = vld [vmem:[%s21 + $0x50] sm:$0xff]
          %v2186 = vld [vmem:[%s21 + $0x58] sm:$0xff]
          %v2187 = vld [vmem:[%s21 + $0x60] sm:$0xff]
          %v2188 = vld [vmem:[%s21 + $0x68] sm:$0xff]
          %v2189 = vld [vmem:[%s21 + $0x70] sm:$0xff]
          %v2190 = vld [vmem:[%s21 + $0x78] sm:$0xff]
          %v2191 = vld [vmem:[%s22] sm:$0x1]
          %v2193 = vlaneseq
          %v2194 = vshrl.u32 %v2193, 7
          %v2195 = vsub.s32 0, %v2194
          %v2196 = vrot.slane %v2191, %v2195
          %2198 = vmatprep.subr.mxu0 0.0
          %2199 = vmatpush1.msra.mxu0 %v2175
          %2200 = vmatprep.subr.mxu0 0.0
          %2201 = vmatpush1.msra.mxu0 %v2176
          %2202 = vmatprep.subr.mxu0 0.0
          %2203 = vmatpush1.msra.mxu0 %v2177
          %2204 = vmatprep.subr.mxu0 0.0
          %2205 = vmatpush1.msra.mxu0 %v2178
          %2206 = vmatprep.subr.mxu0 0.0
          %2207 = vmatpush1.msra.mxu0 %v2179
          %2208 = vmatprep.subr.mxu0 0.0
          %2209 = vmatpush1.msra.mxu0 %v2180
          %2210 = vmatprep.subr.mxu0 0.0
          %2211 = vmatpush1.msra.mxu0 %v2181
          %2212 = vmatprep.subr.mxu0 0.0
          %2213 = vmatpush1.msra.mxu0 %v2182
          %2214 = vmatprep.subr.mxu0 0.0
          %2215 = vmatpush1.msra.mxu0 %v2183
          %2216 = vmatprep.subr.mxu0 0.0
          %2217 = vmatpush1.msra.mxu0 %v2184
          %2218 = vmatprep.subr.mxu0 0.0
          %2219 = vmatpush1.msra.mxu0 %v2185
          %2220 = vmatprep.subr.mxu0 0.0
          %2221 = vmatpush1.msra.mxu0 %v2186
          %2222 = vmatprep.subr.mxu0 0.0
          %2223 = vmatpush1.msra.mxu0 %v2187
          %2224 = vmatprep.subr.mxu0 0.0
          %2225 = vmatpush1.msra.mxu0 %v2188
          %2226 = vmatprep.subr.mxu0 0.0
          %2227 = vmatpush1.msra.mxu0 %v2189
          %2228 = vmatprep.subr.mxu0 0.0
          %2229 = vmatpush1.msra.mxu0 %v2190
          %2230 = vmatprep.subr.mxu0 0.0
          %2231 = vmatpush1.msra.mxu0 0.0
          %2232 = vmatprep.subr.mxu0 0.0
          %2233 = vmatpush1.msra.mxu0 0.0
          %2234 = vmatprep.subr.mxu0 0.0
          %2235 = vmatpush1.msra.mxu0 0.0
          %2236 = vmatprep.subr.mxu0 0.0
          %2237 = vmatpush1.msra.mxu0 0.0
          %2238 = vmatprep.subr.mxu0 0.0
          %2239 = vmatpush1.msra.mxu0 0.0
          %2240 = vmatprep.subr.mxu0 0.0
          %2241 = vmatpush1.msra.mxu0 0.0
          %2242 = vmatprep.subr.mxu0 0.0
          %2243 = vmatpush1.msra.mxu0 0.0
          %2244 = vmatprep.subr.mxu0 0.0
          %2245 = vmatpush1.msra.mxu0 0.0
          %2246 = vmatprep.subr.mxu0 0.0
          %2247 = vmatpush1.msra.mxu0 0.0
          %2248 = vmatprep.subr.mxu0 0.0
          %2249 = vmatpush1.msra.mxu0 0.0
          %2250 = vmatprep.subr.mxu0 0.0
          %2251 = vmatpush1.msra.mxu0 0.0
          %2252 = vmatprep.subr.mxu0 0.0
          %2253 = vmatpush1.msra.mxu0 0.0
          %2254 = vmatprep.subr.mxu0 0.0
          %2255 = vmatpush1.msra.mxu0 0.0
          %2256 = vmatprep.subr.mxu0 0.0
          %2257 = vmatpush1.msra.mxu0 0.0
          %2258 = vmatprep.subr.mxu0 0.0
          %2259 = vmatpush1.msra.mxu0 0.0
          %2260 = vmatprep.subr.mxu0 0.0
          %2261 = vmatpush1.msra.mxu0 0.0
          %2262 = vmatprep.mubr.f32.mxu0 0.0
          %2263 = vmatmul.mubr.f32.gmra.mrb[0].mxu0 %v1733
          %v2264 = vpop.f32.mrb[0].mxu0
          %v2265 = vadd.f32 %v2196, %v2264
          %v2266 = vpop.f32.mrb[0].mxu0
          %2267 = vmatprep.mubr.f32.mxu0 0.0
          %2268 = vmatmul.mubr.f32.gmra.mrb[0].mxu0 %v1803
          %v2269 = vpop.f32.mrb[0].mxu0
          %v2270 = vadd.f32 %v2196, %v2269
          %v2271 = vpop.f32.mrb[0].mxu0
          %2272 = vdwg.mxu0
          %vm2273 = vcmask 23552
          %2274 = vst.msk [vmem:[%s24] sm:$0xff] %vm2273, %v2265
          %2275 = vst.msk [vmem:[%s24 + $0x8] sm:$0xff] %vm2273, %v2270
        $region140: #{tpu_custom_call.1} parent=111 // pred_fallthru
          _
        %v2276 = vld [vmem:[%s5] sm:$0xff]
        %v2277 = vld [vmem:[%s5 + $0x8] sm:$0xff]
        %v2278 = vld [vmem:[%s5 + $0x10] sm:$0xff]
        %v2279 = vld [vmem:[%s5 + $0x18] sm:$0xff]
        %v2280 = vld [vmem:[%s5 + $0x20] sm:$0xff]
        %v2281 = vld [vmem:[%s5 + $0x28] sm:$0xff]
        %v2282 = vld [vmem:[%s5 + $0x30] sm:$0xff]
        %v2283 = vld [vmem:[%s5 + $0x38] sm:$0xff]
        %v2284 = vld [vmem:[%s5 + $0x40] sm:$0xff]
        %v2285 = vld [vmem:[%s5 + $0x48] sm:$0xff]
        %v2286 = vld [vmem:[%s5 + $0x50] sm:$0xff]
        %v2287 = vld [vmem:[%s5 + $0x58] sm:$0xff]
        %v2288 = vld [vmem:[%s5 + $0x60] sm:$0xff]
        %v2289 = vld [vmem:[%s5 + $0x68] sm:$0xff]
        %v2290 = vld [vmem:[%s5 + $0x70] sm:$0xff]
        %v2291 = vld [vmem:[%s5 + $0x78] sm:$0xff]
        %v2292 = vld [vmem:[%s6] sm:$0x1]
        %v2294 = vlaneseq
        %v2295 = vshrl.u32 %v2294, 7
        %v2296 = vsub.s32 0, %v2295
        %v2297 = vrot.slane %v2292, %v2296
        %2299 = vmatprep.subr.mxu0 0.0
        %2300 = vmatpush1.xpose.msra.mxu0 %v2276
        %2301 = vmatprep.subr.mxu0 0.0
        %2302 = vmatpush1.xpose.msra.mxu0 %v2277
        %2303 = vmatprep.subr.mxu0 0.0
        %2304 = vmatpush1.xpose.msra.mxu0 %v2278
        %2305 = vmatprep.subr.mxu0 0.0
        %2306 = vmatpush1.xpose.msra.mxu0 %v2279
        %2307 = vmatprep.subr.mxu0 0.0
        %2308 = vmatpush1.xpose.msra.mxu0 %v2280
        %2309 = vmatprep.subr.mxu0 0.0
        %2310 = vmatpush1.xpose.msra.mxu0 %v2281
        %2311 = vmatprep.subr.mxu0 0.0
        %2312 = vmatpush1.xpose.msra.mxu0 %v2282
        %2313 = vmatprep.subr.mxu0 0.0
        %2314 = vmatpush1.xpose.msra.mxu0 %v2283
        %2315 = vmatprep.subr.mxu0 0.0
        %2316 = vmatpush1.xpose.msra.mxu0 %v2284
        %2317 = vmatprep.subr.mxu0 0.0
        %2318 = vmatpush1.xpose.msra.mxu0 %v2285
        %2319 = vmatprep.subr.mxu0 0.0
        %2320 = vmatpush1.xpose.msra.mxu0 %v2286
        %2321 = vmatprep.subr.mxu0 0.0
        %2322 = vmatpush1.xpose.msra.mxu0 %v2287
        %2323 = vmatprep.subr.mxu0 0.0
        %2324 = vmatpush1.xpose.msra.mxu0 %v2288
        %2325 = vmatprep.subr.mxu0 0.0
        %2326 = vmatpush1.xpose.msra.mxu0 %v2289
        %2327 = vmatprep.subr.mxu0 0.0
        %2328 = vmatpush1.xpose.msra.mxu0 %v2290
        %2329 = vmatprep.subr.mxu0 0.0
        %2330 = vmatpush1.xpose.msra.mxu0 %v2291
        %2331 = vmatprep.subr.mxu0 0.0
        %2332 = vmatpush1.xpose.msra.mxu0 0.0
        %2333 = vmatprep.subr.mxu0 0.0
        %2334 = vmatpush1.xpose.msra.mxu0 0.0
        %2335 = vmatprep.subr.mxu0 0.0
        %2336 = vmatpush1.xpose.msra.mxu0 0.0
        %2337 = vmatprep.subr.mxu0 0.0
        %2338 = vmatpush1.xpose.msra.mxu0 0.0
        %2339 = vmatprep.subr.mxu0 0.0
        %2340 = vmatpush1.xpose.msra.mxu0 0.0
        %2341 = vmatprep.subr.mxu0 0.0
        %2342 = vmatpush1.xpose.msra.mxu0 0.0
        %2343 = vmatprep.subr.mxu0 0.0
        %2344 = vmatpush1.xpose.msra.mxu0 0.0
        %2345 = vmatprep.subr.mxu0 0.0
        %2346 = vmatpush1.xpose.msra.mxu0 0.0
        %2347 = vmatprep.subr.mxu0 0.0
        %2348 = vmatpush1.xpose.msra.mxu0 0.0
        %2349 = vmatprep.subr.mxu0 0.0
        %2350 = vmatpush1.xpose.msra.mxu0 0.0
        %2351 = vmatprep.subr.mxu0 0.0
        %2352 = vmatpush1.xpose.msra.mxu0 0.0
        %2353 = vmatprep.subr.mxu0 0.0
        %2354 = vmatpush1.xpose.msra.mxu0 0.0
        %2355 = vmatprep.subr.mxu0 0.0
        %2356 = vmatpush1.xpose.msra.mxu0 0.0
        %2357 = vmatprep.subr.mxu0 0.0
        %2358 = vmatpush1.xpose.msra.mxu0 0.0
        %2359 = vmatprep.subr.mxu0 0.0
        %2360 = vmatpush1.xpose.msra.mxu0 0.0
        %2361 = vmatprep.subr.mxu0 0.0
        %2362 = vmatpush1.xpose.msra.mxu0 0.0
        %2363 = vmatprep.mubr.f32.mxu0 0.0
        %2364 = vmatmul.mubr.f32.gmra.mrb[0].mxu0 %v1458
        %v2365 = vpop.f32.mrb[0].mxu0
        %v2366 = vadd.f32 %v2297, %v2365
        %v2367 = vpop.f32.mrb[0].mxu0
        %2368 = vmatprep.mubr.f32.mxu0 0.0
        %2369 = vmatmul.mubr.f32.gmra.mrb[0].mxu0 %v1459
        %v2370 = vpop.f32.mrb[0].mxu0
        %v2371 = vadd.f32 %v2297, %v2370
        %v2372 = vpop.f32.mrb[0].mxu0
        %2373 = vdwg.mxu0
        %2374 = vmax.xlane.f32.xlu0 %v2366
        %v2375 = vpop.xlane.xlu0 %2374
        %2376 = vmax.xlane.f32.xlu0 %v2371
        %v2377 = vpop.xlane.xlu0 %2376
        %v2378 = vsub.f32 %v2366, %v2375
        %v2379 = vsub.f32 %v2371, %v2377
        %v2380 = vmul.f32 %v2378, 1.442695
        %v2381 = vpow.pop %v2380
        %v2382 = vmul.f32 %v2379, 1.442695
        %v2383 = vpow.pop %v2382
        %2384 = vadd.xlane.f32.xlu0 %v2381
        %v2385 = vpop.xlane.xlu0 %2384
        %2386 = vadd.xlane.f32.xlu0 %v2383
        %v2387 = vpop.xlane.xlu0 %2386
        %v2388 = vrcp.pop %v2385
        %v2389 = vmul.f32 %v2381, %v2388
        %v2390 = vrcp.pop %v2387
        %v2391 = vmul.f32 %v2383, %v2390
        %v2392 = vld [vmem:[%s17] sm:$0xff]
        %v2393 = vld [vmem:[%s17 + $0x8] sm:$0xff]
        %v2394 = vld [vmem:[%s17 + $0x10] sm:$0xff]
        %v2395 = vld [vmem:[%s17 + $0x18] sm:$0xff]
        %v2396 = vld [vmem:[%s17 + $0x20] sm:$0xff]
        %v2397 = vld [vmem:[%s17 + $0x28] sm:$0xff]
        %v2398 = vld [vmem:[%s17 + $0x30] sm:$0xff]
        %v2399 = vld [vmem:[%s17 + $0x38] sm:$0xff]
        %v2400 = vld [vmem:[%s17 + $0x40] sm:$0xff]
        %v2401 = vld [vmem:[%s17 + $0x48] sm:$0xff]
        %v2402 = vld [vmem:[%s17 + $0x50] sm:$0xff]
        %v2403 = vld [vmem:[%s17 + $0x58] sm:$0xff]
        %v2404 = vld [vmem:[%s17 + $0x60] sm:$0xff]
        %v2405 = vld [vmem:[%s17 + $0x68] sm:$0xff]
        %v2406 = vld [vmem:[%s17 + $0x70] sm:$0xff]
        %v2407 = vld [vmem:[%s17 + $0x78] sm:$0xff]
        %v2408 = vld [vmem:[%s18] sm:$0xff]
        %v2409 = vld [vmem:[%s18 + $0x8] sm:$0xff]
        %v2410 = vld [vmem:[%s18 + $0x10] sm:$0xff]
        %v2411 = vld [vmem:[%s18 + $0x18] sm:$0xff]
        %v2412 = vld [vmem:[%s18 + $0x20] sm:$0xff]
        %v2413 = vld [vmem:[%s18 + $0x28] sm:$0xff]
        %v2414 = vld [vmem:[%s18 + $0x30] sm:$0xff]
        %v2415 = vld [vmem:[%s18 + $0x38] sm:$0xff]
        %v2416 = vld [vmem:[%s18 + $0x40] sm:$0xff]
        %v2417 = vld [vmem:[%s18 + $0x48] sm:$0xff]
        %v2418 = vld [vmem:[%s18 + $0x50] sm:$0xff]
        %v2419 = vld [vmem:[%s18 + $0x58] sm:$0xff]
        %v2420 = vld [vmem:[%s18 + $0x60] sm:$0xff]
        %v2421 = vld [vmem:[%s18 + $0x68] sm:$0xff]
        %v2422 = vld [vmem:[%s18 + $0x70] sm:$0xff]
        %v2423 = vld [vmem:[%s18 + $0x78] sm:$0xff]
        %2424 = vmatprep.subr.mxu0 0.0
        %2425 = vmatpush1.msra.mxu0 %v2408
        %2426 = vmatprep.subr.mxu0 0.0
        %2427 = vmatpush1.msra.mxu0 %v2409
        %2428 = vmatprep.subr.mxu0 0.0
        %2429 = vmatpush1.msra.mxu0 %v2410
        %2430 = vmatprep.subr.mxu0 0.0
        %2431 = vmatpush1.msra.mxu0 %v2411
        %2432 = vmatprep.subr.mxu0 0.0
        %2433 = vmatpush1.msra.mxu0 %v2412
        %2434 = vmatprep.subr.mxu0 0.0
        %2435 = vmatpush1.msra.mxu0 %v2413
        %2436 = vmatprep.subr.mxu0 0.0
        %2437 = vmatpush1.msra.mxu0 %v2414
        %2438 = vmatprep.subr.mxu0 0.0
        %2439 = vmatpush1.msra.mxu0 %v2415
        %2440 = vmatprep.subr.mxu0 0.0
        %2441 = vmatpush1.msra.mxu0 %v2416
        %2442 = vmatprep.subr.mxu0 0.0
        %2443 = vmatpush1.msra.mxu0 %v2417
        %2444 = vmatprep.subr.mxu0 0.0
        %2445 = vmatpush1.msra.mxu0 %v2418
        %2446 = vmatprep.subr.mxu0 0.0
        %2447 = vmatpush1.msra.mxu0 %v2419
        %2448 = vmatprep.subr.mxu0 0.0
        %2449 = vmatpush1.msra.mxu0 %v2420
        %2450 = vmatprep.subr.mxu0 0.0
        %2451 = vmatpush1.msra.mxu0 %v2421
        %2452 = vmatprep.subr.mxu0 0.0
        %2453 = vmatpush1.msra.mxu0 %v2422
        %2454 = vmatprep.subr.mxu0 0.0
        %2455 = vmatpush1.msra.mxu0 %v2423
        %2456 = vmatprep.subr.mxu0 0.0
        %2457 = vmatpush1.msra.mxu0 0.0
        %2458 = vmatprep.subr.mxu0 0.0
        %2459 = vmatpush1.msra.mxu0 0.0
        %2460 = vmatprep.subr.mxu0 0.0
        %2461 = vmatpush1.msra.mxu0 0.0
        %2462 = vmatprep.subr.mxu0 0.0
        %2463 = vmatpush1.msra.mxu0 0.0
        %2464 = vmatprep.subr.mxu0 0.0
        %2465 = vmatpush1.msra.mxu0 0.0
        %2466 = vmatprep.subr.mxu0 0.0
        %2467 = vmatpush1.msra.mxu0 0.0
        %2468 = vmatprep.subr.mxu0 0.0
        %2469 = vmatpush1.msra.mxu0 0.0
        %2470 = vmatprep.subr.mxu0 0.0
        %2471 = vmatpush1.msra.mxu0 0.0
        %2472 = vmatprep.subr.mxu0 0.0
        %2473 = vmatpush1.msra.mxu0 0.0
        %2474 = vmatprep.subr.mxu0 0.0
        %2475 = vmatpush1.msra.mxu0 0.0
        %2476 = vmatprep.subr.mxu0 0.0
        %2477 = vmatpush1.msra.mxu0 0.0
        %2478 = vmatprep.subr.mxu0 0.0
        %2479 = vmatpush1.msra.mxu0 0.0
        %2480 = vmatprep.subr.mxu0 0.0
        %2481 = vmatpush1.msra.mxu0 0.0
        %2482 = vmatprep.subr.mxu0 0.0
        %2483 = vmatpush1.msra.mxu0 0.0
        %2484 = vmatprep.subr.mxu0 0.0
        %2485 = vmatpush1.msra.mxu0 0.0
        %2486 = vmatprep.subr.mxu0 0.0
        %2487 = vmatpush1.msra.mxu0 0.0
        %2488 = vmatprep.mubr.f32.mxu0 0.0
        %2489 = vmatmul.mubr.f32.gmra.mrb[0].mxu0 %v1733
        %v2490 = vpop.f32.mrb[0].mxu0
        %v2491 = vadd.f32 0.0, %v2490
        %v2492 = vpop.f32.mrb[0].mxu0
        %2493 = vmatprep.mubr.f32.mxu0 0.0
        %2494 = vmatmul.mubr.f32.gmra.mrb[0].mxu0 %v1803
        %v2495 = vpop.f32.mrb[0].mxu0
        %v2496 = vadd.f32 0.0, %v2495
        %v2497 = vpop.f32.mrb[0].mxu0
        %2498 = vdwg.mxu0
        %2499 = vmatprep.subr.mxu0 0.0
        %2500 = vmatpush1.msra.mxu0 %v2392
        %2501 = vmatprep.subr.mxu0 0.0
        %2502 = vmatpush1.msra.mxu0 %v2393
        %2503 = vmatprep.subr.mxu0 0.0
        %2504 = vmatpush1.msra.mxu0 %v2394
        %2505 = vmatprep.subr.mxu0 0.0
        %2506 = vmatpush1.msra.mxu0 %v2395
        %2507 = vmatprep.subr.mxu0 0.0
        %2508 = vmatpush1.msra.mxu0 %v2396
        %2509 = vmatprep.subr.mxu0 0.0
        %2510 = vmatpush1.msra.mxu0 %v2397
        %2511 = vmatprep.subr.mxu0 0.0
        %2512 = vmatpush1.msra.mxu0 %v2398
        %2513 = vmatprep.subr.mxu0 0.0
        %2514 = vmatpush1.msra.mxu0 %v2399
        %2515 = vmatprep.subr.mxu0 0.0
        %2516 = vmatpush1.msra.mxu0 %v2400
        %2517 = vmatprep.subr.mxu0 0.0
        %2518 = vmatpush1.msra.mxu0 %v2401
        %2519 = vmatprep.subr.mxu0 0.0
        %2520 = vmatpush1.msra.mxu0 %v2402
        %2521 = vmatprep.subr.mxu0 0.0
        %2522 = vmatpush1.msra.mxu0 %v2403
        %2523 = vmatprep.subr.mxu0 0.0
        %2524 = vmatpush1.msra.mxu0 %v2404
        %2525 = vmatprep.subr.mxu0 0.0
        %2526 = vmatpush1.msra.mxu0 %v2405
        %2527 = vmatprep.subr.mxu0 0.0
        %2528 = vmatpush1.msra.mxu0 %v2406
        %2529 = vmatprep.subr.mxu0 0.0
        %2530 = vmatpush1.msra.mxu0 %v2407
        %2531 = vmatprep.subr.mxu0 0.0
        %2532 = vmatpush1.msra.mxu0 0.0
        %2533 = vmatprep.subr.mxu0 0.0
        %2534 = vmatpush1.msra.mxu0 0.0
        %2535 = vmatprep.subr.mxu0 0.0
        %2536 = vmatpush1.msra.mxu0 0.0
        %2537 = vmatprep.subr.mxu0 0.0
        %2538 = vmatpush1.msra.mxu0 0.0
        %2539 = vmatprep.subr.mxu0 0.0
        %2540 = vmatpush1.msra.mxu0 0.0
        %2541 = vmatprep.subr.mxu0 0.0
        %2542 = vmatpush1.msra.mxu0 0.0
        %2543 = vmatprep.subr.mxu0 0.0
        %2544 = vmatpush1.msra.mxu0 0.0
        %2545 = vmatprep.subr.mxu0 0.0
        %2546 = vmatpush1.msra.mxu0 0.0
        %2547 = vmatprep.subr.mxu0 0.0
        %2548 = vmatpush1.msra.mxu0 0.0
        %2549 = vmatprep.subr.mxu0 0.0
        %2550 = vmatpush1.msra.mxu0 0.0
        %2551 = vmatprep.subr.mxu0 0.0
        %2552 = vmatpush1.msra.mxu0 0.0
        %2553 = vmatprep.subr.mxu0 0.0
        %2554 = vmatpush1.msra.mxu0 0.0
        %2555 = vmatprep.subr.mxu0 0.0
        %2556 = vmatpush1.msra.mxu0 0.0
        %2557 = vmatprep.subr.mxu0 0.0
        %2558 = vmatpush1.msra.mxu0 0.0
        %2559 = vmatprep.subr.mxu0 0.0
        %2560 = vmatpush1.msra.mxu0 0.0
        %2561 = vmatprep.subr.mxu0 0.0
        %2562 = vmatpush1.msra.mxu0 0.0
        %2563 = vmatprep.mubr.f32.mxu0 0.0
        %2564 = vmatmul.mubr.f32.gmra.mrb[0].mxu0 %v1458
        %v2565 = vpop.f32.mrb[0].mxu0
        %v2566 = vadd.f32 %v2491, %v2565
        %v2567 = vpop.f32.mrb[0].mxu0
        %2568 = vmatprep.mubr.f32.mxu0 0.0
        %2569 = vmatmul.mubr.f32.gmra.mrb[0].mxu0 %v1459
        %v2570 = vpop.f32.mrb[0].mxu0
        %v2571 = vadd.f32 %v2496, %v2570
        %v2572 = vpop.f32.mrb[0].mxu0
        %2573 = vdwg.mxu0
        %v2574 = vld [vmem:[%s19] sm:$0xff]
        %v2575 = vld [vmem:[%s19 + $0x8] sm:$0xff]
        %v2576 = vld [vmem:[%s19 + $0x10] sm:$0xff]
        %v2577 = vld [vmem:[%s19 + $0x18] sm:$0xff]
        %v2578 = vld [vmem:[%s19 + $0x20] sm:$0xff]
        %v2579 = vld [vmem:[%s19 + $0x28] sm:$0xff]
        %v2580 = vld [vmem:[%s19 + $0x30] sm:$0xff]
        %v2581 = vld [vmem:[%s19 + $0x38] sm:$0xff]
        %v2582 = vld [vmem:[%s19 + $0x40] sm:$0xff]
        %v2583 = vld [vmem:[%s19 + $0x48] sm:$0xff]
        %v2584 = vld [vmem:[%s19 + $0x50] sm:$0xff]
        %v2585 = vld [vmem:[%s19 + $0x58] sm:$0xff]
        %v2586 = vld [vmem:[%s19 + $0x60] sm:$0xff]
        %v2587 = vld [vmem:[%s19 + $0x68] sm:$0xff]
        %v2588 = vld [vmem:[%s19 + $0x70] sm:$0xff]
        %v2589 = vld [vmem:[%s19 + $0x78] sm:$0xff]
        %2590 = vmatprep.subr.mxu0 0.0
        %2591 = vmatpush1.msra.mxu0 %v2574
        %2592 = vmatprep.subr.mxu0 0.0
        %2593 = vmatpush1.msra.mxu0 %v2575
        %2594 = vmatprep.subr.mxu0 0.0
        %2595 = vmatpush1.msra.mxu0 %v2576
        %2596 = vmatprep.subr.mxu0 0.0
        %2597 = vmatpush1.msra.mxu0 %v2577
        %2598 = vmatprep.subr.mxu0 0.0
        %2599 = vmatpush1.msra.mxu0 %v2578
        %2600 = vmatprep.subr.mxu0 0.0
        %2601 = vmatpush1.msra.mxu0 %v2579
        %2602 = vmatprep.subr.mxu0 0.0
        %2603 = vmatpush1.msra.mxu0 %v2580
        %2604 = vmatprep.subr.mxu0 0.0
        %2605 = vmatpush1.msra.mxu0 %v2581
        %2606 = vmatprep.subr.mxu0 0.0
        %2607 = vmatpush1.msra.mxu0 %v2582
        %2608 = vmatprep.subr.mxu0 0.0
        %2609 = vmatpush1.msra.mxu0 %v2583
        %2610 = vmatprep.subr.mxu0 0.0
        %2611 = vmatpush1.msra.mxu0 %v2584
        %2612 = vmatprep.subr.mxu0 0.0
        %2613 = vmatpush1.msra.mxu0 %v2585
        %2614 = vmatprep.subr.mxu0 0.0
        %2615 = vmatpush1.msra.mxu0 %v2586
        %2616 = vmatprep.subr.mxu0 0.0
        %2617 = vmatpush1.msra.mxu0 %v2587
        %2618 = vmatprep.subr.mxu0 0.0
        %2619 = vmatpush1.msra.mxu0 %v2588
        %2620 = vmatprep.subr.mxu0 0.0
        %2621 = vmatpush1.msra.mxu0 %v2589
        %2622 = vmatprep.subr.mxu0 0.0
        %2623 = vmatpush1.msra.mxu0 0.0
        %2624 = vmatprep.subr.mxu0 0.0
        %2625 = vmatpush1.msra.mxu0 0.0
        %2626 = vmatprep.subr.mxu0 0.0
        %2627 = vmatpush1.msra.mxu0 0.0
        %2628 = vmatprep.subr.mxu0 0.0
        %2629 = vmatpush1.msra.mxu0 0.0
        %2630 = vmatprep.subr.mxu0 0.0
        %2631 = vmatpush1.msra.mxu0 0.0
        %2632 = vmatprep.subr.mxu0 0.0
        %2633 = vmatpush1.msra.mxu0 0.0
        %2634 = vmatprep.subr.mxu0 0.0
        %2635 = vmatpush1.msra.mxu0 0.0
        %2636 = vmatprep.subr.mxu0 0.0
        %2637 = vmatpush1.msra.mxu0 0.0
        %2638 = vmatprep.subr.mxu0 0.0
        %2639 = vmatpush1.msra.mxu0 0.0
        %2640 = vmatprep.subr.mxu0 0.0
        %2641 = vmatpush1.msra.mxu0 0.0
        %2642 = vmatprep.subr.mxu0 0.0
        %2643 = vmatpush1.msra.mxu0 0.0
        %2644 = vmatprep.subr.mxu0 0.0
        %2645 = vmatpush1.msra.mxu0 0.0
        %2646 = vmatprep.subr.mxu0 0.0
        %2647 = vmatpush1.msra.mxu0 0.0
        %2648 = vmatprep.subr.mxu0 0.0
        %2649 = vmatpush1.msra.mxu0 0.0
        %2650 = vmatprep.subr.mxu0 0.0
        %2651 = vmatpush1.msra.mxu0 0.0
        %2652 = vmatprep.subr.mxu0 0.0
        %2653 = vmatpush1.msra.mxu0 0.0
        %2654 = vmatprep.mubr.f32.mxu0 0.0
        %2655 = vmatmul.mubr.f32.gmra.mrb[0].mxu0 %v840
        %v2656 = vpop.f32.mrb[0].mxu0
        %v2657 = vadd.f32 0.0, %v2656
        %v2658 = vpop.f32.mrb[0].mxu0
        %2659 = vmatprep.mubr.f32.mxu0 0.0
        %2660 = vmatmul.mubr.f32.gmra.mrb[0].mxu0 %v841
        %v2661 = vpop.f32.mrb[0].mxu0
        %v2662 = vadd.f32 0.0, %v2661
        %v2663 = vpop.f32.mrb[0].mxu0
        %2664 = vdwg.mxu0
        %v2665 = vadd.f32 %v2566, %v2657
        %v2666 = vadd.f32 %v2571, %v2662
        %v2667 = vld [vmem:[#allocation4] sm:$0x1]
        %v2669 = vlaneseq
        %v2670 = vshrl.u32 %v2669, 7
        %v2671 = vsub.s32 0, %v2670
        %v2672 = vrot.slane %v2667, %v2671
        %v2674 = vadd.f32 %v2665, %v2672
        %v2675 = vadd.f32 %v2666, %v2672
        %v2676 = vxor.u32 %v2674, 2147483648
        %v2677 = vxor.u32 %v2675, 2147483648
        %v2678 = vmul.f32 %v2676, 1.442695
        %v2679 = vpow.pop %v2678
        %v2680 = vmul.f32 %v2677, 1.442695
        %v2681 = vpow.pop %v2680
        %v2682 = vadd.f32 %v2679, 1.0
        %v2683 = vadd.f32 %v2681, 1.0
        %v2684 = vrcp.pop %v2682
        %v2685 = vmul.f32 1.0, %v2684
        %v2686 = vrcp.pop %v2683
        %v2687 = vmul.f32 1.0, %v2686
        %v2688 = vsub.f32 1.0, %v2685
        %v2689 = vsub.f32 1.0, %v2687
        %2691 = vset.pattern.permute.xlu0 0
        %2692 = vperm.xlu0 %2691, %v2688
        %v2693 = vpop.permute.xlu0 %2692
        %2696 = vset.pattern.permute.xlu0 0
        %2697 = vperm.xlu0 %2696, %v2689
        %v2698 = vpop.permute.xlu0 %2697
        %v2700 = vmul.f32 %v2693, %v2099
        %v2701 = vmul.f32 %v2698, %v2169
        %2703 = vset.pattern.permute.xlu0 0
        %2704 = vperm.xlu0 %2703, %v2685
        %v2705 = vpop.permute.xlu0 %2704
        %2708 = vset.pattern.permute.xlu0 0
        %2709 = vperm.xlu0 %2708, %v2687
        %v2710 = vpop.permute.xlu0 %2709
        %v2712 = vmul.f32 %v2705, %v2389
        %v2713 = vmul.f32 %v2710, %v2391
        %v2714 = vadd.f32 %v2700, %v2712
        %v2715 = vadd.f32 %v2701, %v2713
        %2716 = vst [vmem:[%s813] sm:$0xff] %v2714
        %2717 = vst [vmem:[%s813 + $0x8] sm:$0xff] %v2715
        %2718 = vmax.xlane.f32.xlu0 %v2714
        %v2719 = vpop.xlane.xlu0 %2718
        %2720 = vmax.xlane.f32.xlu0 %v2715
        %v2721 = vpop.xlane.xlu0 %2720
        %vm2722 = vcmp.eq.f32.partialorder %v2714, %v2719
        %vm2723 = vcmp.eq.f32.partialorder %v2715, %v2721
        %v2724 = vsel %vm2722, %v1807, 128
        %v2725 = vsel %vm2723, %v1807, 128
        %v2726 = vand.u32 %v2724, 65535
        %v2727 = vshra.s32 %v2724, 16
        %v2728 = vcvt.s32.f32 %v2726
        %v2729 = vcvt.s32.f32 %v2727
        %2730 = vmin.xlane.f32.xlu0 %v2729
        %v2731 = vpop.xlane.xlu0 %2730
        %vm2732 = vcmp.eq.f32.partialorder %v2729, %v2731
        %v2733 = vsel %vm2732, %v2728, inf
        %2734 = vmin.xlane.f32.xlu0 %v2733
        %v2735 = vpop.xlane.xlu0 %2734
        %v2736 = vcvt.f32.s32 %v2735
        %v2737 = vcvt.f32.s32 %v2731
        %v2738 = vshll.u32 %v2737, 16
        %v2739 = vadd.s32 %v2738, %v2736
        %v2740 = vand.u32 %v2725, 65535
        %v2741 = vshra.s32 %v2725, 16
        %v2742 = vcvt.s32.f32 %v2740
        %v2743 = vcvt.s32.f32 %v2741
        %2744 = vmin.xlane.f32.xlu0 %v2743
        %v2745 = vpop.xlane.xlu0 %2744
        %vm2746 = vcmp.eq.f32.partialorder %v2743, %v2745
        %v2747 = vsel %vm2746, %v2742, inf
        %2748 = vmin.xlane.f32.xlu0 %v2747
        %v2749 = vpop.xlane.xlu0 %2748
        %v2750 = vcvt.f32.s32 %v2749
        %v2751 = vcvt.f32.s32 %v2745
        %v2752 = vshll.u32 %v2751, 16
        %v2753 = vadd.s32 %v2752, %v2750
        %vm2754 = vcmask 7168
        %2755 = vst.msk [vmem:[%s827] sm:$0xff] %vm2754, %v2739
        %2756 = vst.msk [vmem:[%s827 + $0x8] sm:$0xff] %vm2754, %v2753
        %s2757 = sadd.s32 %s45, 1
        %p2758 = scmp.lt.s32.totalorder %s2757, 4
        // Predicated region
        $region141: #{tpu_custom_call.1} parent=111 // pred_check
          %p2759 = pneg %p2758
        $region142: #{tpu_custom_call.1} parent=111 // pred_check_branch
          %2761 = sbr.rel (%p2759) target = $region144
        $region143: #{tpu_custom_call.1} parent=111 // pred_region
          %vm2762 = vcmp.eq.s32.totalorder %v2739, %v1807
          %vm2763 = vcmp.eq.s32.totalorder %v2753, %v1807
          %v2764 = vsel %vm2762, 1, 0
          %v2765 = vsel %vm2763, 1, 0
          %v2766 = vcvt.s32.f32 %v2764
          %v2767 = vcvt.s32.f32 %v2765
          %v2768 = vld [vmem:[%s5] sm:$0xff]
          %v2769 = vld [vmem:[%s5 + $0x8] sm:$0xff]
          %v2770 = vld [vmem:[%s5 + $0x10] sm:$0xff]
          %v2771 = vld [vmem:[%s5 + $0x18] sm:$0xff]
          %v2772 = vld [vmem:[%s5 + $0x20] sm:$0xff]
          %v2773 = vld [vmem:[%s5 + $0x28] sm:$0xff]
          %v2774 = vld [vmem:[%s5 + $0x30] sm:$0xff]
          %v2775 = vld [vmem:[%s5 + $0x38] sm:$0xff]
          %v2776 = vld [vmem:[%s5 + $0x40] sm:$0xff]
          %v2777 = vld [vmem:[%s5 + $0x48] sm:$0xff]
          %v2778 = vld [vmem:[%s5 + $0x50] sm:$0xff]
          %v2779 = vld [vmem:[%s5 + $0x58] sm:$0xff]
          %v2780 = vld [vmem:[%s5 + $0x60] sm:$0xff]
          %v2781 = vld [vmem:[%s5 + $0x68] sm:$0xff]
          %v2782 = vld [vmem:[%s5 + $0x70] sm:$0xff]
          %v2783 = vld [vmem:[%s5 + $0x78] sm:$0xff]
          %2784 = vmatprep.subr.mxu0 0.0
          %2785 = vmatpush1.msra.mxu0 %v2768
          %2786 = vmatprep.subr.mxu0 0.0
          %2787 = vmatpush1.msra.mxu0 %v2769
          %2788 = vmatprep.subr.mxu0 0.0
          %2789 = vmatpush1.msra.mxu0 %v2770
          %2790 = vmatprep.subr.mxu0 0.0
          %2791 = vmatpush1.msra.mxu0 %v2771
          %2792 = vmatprep.subr.mxu0 0.0
          %2793 = vmatpush1.msra.mxu0 %v2772
          %2794 = vmatprep.subr.mxu0 0.0
          %2795 = vmatpush1.msra.mxu0 %v2773
          %2796 = vmatprep.subr.mxu0 0.0
          %2797 = vmatpush1.msra.mxu0 %v2774
          %2798 = vmatprep.subr.mxu0 0.0
          %2799 = vmatpush1.msra.mxu0 %v2775
          %2800 = vmatprep.subr.mxu0 0.0
          %2801 = vmatpush1.msra.mxu0 %v2776
          %2802 = vmatprep.subr.mxu0 0.0
          %2803 = vmatpush1.msra.mxu0 %v2777
          %2804 = vmatprep.subr.mxu0 0.0
          %2805 = vmatpush1.msra.mxu0 %v2778
          %2806 = vmatprep.subr.mxu0 0.0
          %2807 = vmatpush1.msra.mxu0 %v2779
          %2808 = vmatprep.subr.mxu0 0.0
          %2809 = vmatpush1.msra.mxu0 %v2780
          %2810 = vmatprep.subr.mxu0 0.0
          %2811 = vmatpush1.msra.mxu0 %v2781
          %2812 = vmatprep.subr.mxu0 0.0
          %2813 = vmatpush1.msra.mxu0 %v2782
          %2814 = vmatprep.subr.mxu0 0.0
          %2815 = vmatpush1.msra.mxu0 %v2783
          %2816 = vmatprep.subr.mxu0 0.0
          %2817 = vmatpush1.msra.mxu0 0.0
          %2818 = vmatprep.subr.mxu0 0.0
          %2819 = vmatpush1.msra.mxu0 0.0
          %2820 = vmatprep.subr.mxu0 0.0
          %2821 = vmatpush1.msra.mxu0 0.0
          %2822 = vmatprep.subr.mxu0 0.0
          %2823 = vmatpush1.msra.mxu0 0.0
          %2824 = vmatprep.subr.mxu0 0.0
          %2825 = vmatpush1.msra.mxu0 0.0
          %2826 = vmatprep.subr.mxu0 0.0
          %2827 = vmatpush1.msra.mxu0 0.0
          %2828 = vmatprep.subr.mxu0 0.0
          %2829 = vmatpush1.msra.mxu0 0.0
          %2830 = vmatprep.subr.mxu0 0.0
          %2831 = vmatpush1.msra.mxu0 0.0
          %2832 = vmatprep.subr.mxu0 0.0
          %2833 = vmatpush1.msra.mxu0 0.0
          %2834 = vmatprep.subr.mxu0 0.0
          %2835 = vmatpush1.msra.mxu0 0.0
          %2836 = vmatprep.subr.mxu0 0.0
          %2837 = vmatpush1.msra.mxu0 0.0
          %2838 = vmatprep.subr.mxu0 0.0
          %2839 = vmatpush1.msra.mxu0 0.0
          %2840 = vmatprep.subr.mxu0 0.0
          %2841 = vmatpush1.msra.mxu0 0.0
          %2842 = vmatprep.subr.mxu0 0.0
          %2843 = vmatpush1.msra.mxu0 0.0
          %2844 = vmatprep.subr.mxu0 0.0
          %2845 = vmatpush1.msra.mxu0 0.0
          %2846 = vmatprep.subr.mxu0 0.0
          %2847 = vmatpush1.msra.mxu0 0.0
          %2848 = vmatprep.mubr.f32.mxu0 0.0
          %2849 = vmatmul.mubr.f32.gmra.mrb[0].mxu0 %v2766
          %v2850 = vpop.f32.mrb[0].mxu0
          %v2851 = vadd.f32 0.0, %v2850
          %v2852 = vpop.f32.mrb[0].mxu0
          %2853 = vmatprep.mubr.f32.mxu0 0.0
          %2854 = vmatmul.mubr.f32.gmra.mrb[0].mxu0 %v2767
          %v2855 = vpop.f32.mrb[0].mxu0
          %v2856 = vadd.f32 0.0, %v2855
          %v2857 = vpop.f32.mrb[0].mxu0
          %2858 = vdwg.mxu0
          %2859 = vst [vmem:[#allocation3] sm:$0xff] %v2851
          %2860 = vst [vmem:[#allocation3 + $0x8] sm:$0xff] %v2856
        $region144: #{tpu_custom_call.1} parent=111 // pred_fallthru
          _
        %s2861 = sand.u32 %s536, 1
        %s2862 = scalar_lea.sflag [#allocation7], %s2861
        %s2863 = sand.u32 %s536, 1
        %s2864 = smul.addr %s2863, 16
        %s2865 = scalar_lea.vmem [#allocation14], %s2864
        %p2866 = scmp.lt.s32.totalorder %s45, 3
        %s2867 = scalar_select %p2866, %s45, 3
        %s2868 = smul.addr %s2867, 2
        %s2869 = smul.addr %s2868, 8
        %s2870 = scalar_lea.vmem %s25, %s2869
        // Predicated region
        $region145: #{tpu_custom_call.1} parent=111 // pred_check
          %p2871 = pneg %p546
        $region146: #{tpu_custom_call.1} parent=111 // pred_check_branch
          %2873 = sbr.rel (%p2871) target = $region148
        $region147: #{tpu_custom_call.1} parent=111 // pred_region
          %s2875 = ssub.s32 256, 256
          %2876 = vsyncadd %s2862, %s2875
          %s2877 = smul.addr %s45, 2
          %s2878 = smul.addr %s2877, 128
          %s2879 = scalar_lea.hbm %s23, %s2878
          %s2880 = sshll.u32 %s2865, 4
          %s2881 = int_to_ptr.vmem [resolvable:$true] %s2880
          %2886 = dma.vmem_to_hbm [thread:$0]  %s2881, 256, %s2879, %s2862, 128, 128, 8
        $region148: #{tpu_custom_call.1} parent=111 // pred_fallthru
          _
        // Predicated region
        $region149: #{tpu_custom_call.1} parent=111 // pred_check
          %p2887 = pneg %p567
        $region150: #{tpu_custom_call.1} parent=111 // pred_check_branch
          %2889 = sbr.rel (%p2887) target = $region152
        $region151: #{tpu_custom_call.1} parent=111 // pred_region
          _
        $region152: #{tpu_custom_call.1} parent=111 // pred_fallthru
          _
        // Predicated region
        $region153: #{tpu_custom_call.1} parent=111 // pred_check
          %p2890 = pneg %p593
        $region154: #{tpu_custom_call.1} parent=111 // pred_check_branch
          %2892 = sbr.rel (%p2890) target = $region156
        $region155: #{tpu_custom_call.1} parent=111 // pred_region
          _
        $region156: #{tpu_custom_call.1} parent=111 // pred_fallthru
          _
        // Predicated region
        $region157: #{tpu_custom_call.1} parent=111 // pred_check
          %p2893 = pneg %p567
        $region158: #{tpu_custom_call.1} parent=111 // pred_check_branch
          %2895 = sbr.rel (%p2893) target = $region160
        $region159: #{tpu_custom_call.1} parent=111 // pred_region
          _
        $region160: #{tpu_custom_call.1} parent=111 // pred_fallthru
          _
      $region112: #{tpu_custom_call.1} parent=5 // pred_fallthru
        _
      %p2896 = scmp.le.s32.totalorder 2, %s40
      // Predicated region
      $region161: #{tpu_custom_call.1} parent=5 // pred_check
        %p2897 = pneg %p2896
      $region162: #{tpu_custom_call.1} parent=5 // pred_check_branch
        %2899 = sbr.rel (%p2897) target = $region164
      $region163: #{tpu_custom_call.1} parent=5 // pred_region
        %s2900 = ssub.s32 %s40, 2
        // Predicated region
        $region165: #{tpu_custom_call.1} parent=163 // pred_check
          %p2901 = pneg %p552
        $region166: #{tpu_custom_call.1} parent=163 // pred_check_branch
          %2903 = sbr.rel (%p2901) target = $region168
        $region167: #{tpu_custom_call.1} parent=163 // pred_region
          %s2904 = sand.u32 %s537, 1
          %s2905 = scalar_lea.sflag [#allocation7], %s2904
          %s2906 = sand.u32 %s537, 1
          %s2907 = smul.addr %s2906, 16
          %s2908 = scalar_lea.vmem [#allocation14], %s2907
          %2909 = dma.done %s2905, 256
        $region168: #{tpu_custom_call.1} parent=163 // pred_fallthru
          _
        // Predicated region
        $region169: #{tpu_custom_call.1} parent=163 // pred_check
          %p2910 = pneg %p599
        $region170: #{tpu_custom_call.1} parent=163 // pred_check_branch
          %2912 = sbr.rel (%p2910) target = $region172
        $region171: #{tpu_custom_call.1} parent=163 // pred_region
          %p2913 = scmp.lt.s32.totalorder %s46, 3
          %s2914 = scalar_select %p2913, %s46, 3
          %s2915 = smul.addr %s2914, 2
          %s2916 = smul.addr %s2915, 8
          %s2917 = scalar_lea.vmem %s25, %s2916
        $region172: #{tpu_custom_call.1} parent=163 // pred_fallthru
          _
      $region164: #{tpu_custom_call.1} parent=5 // pred_fallthru
        _
    $region6: #{tpu_custom_call.1} parent=1 // loop_footer
      %s44 = sadd.s32 1, %s40
    $region7: #{tpu_custom_call.1} parent=1 // loop_footer_branch
      %39 = sbr.rel target = $region3
    $region8: #{tpu_custom_call.1} parent=1 // loop_exit
      _
    %2918 = vsyncpa [#allocation6], 1
    %s2919 = scalar_lea.sflag [#allocation6], 1
    %2920 = vsyncpa %s2919, 1
    %2921 = vsyncpa [#allocation9], 1
    %2922 = vsyncpa [#allocation12], 1
    %2923 = vsyncpa [#allocation7], 1
    %s2924 = scalar_lea.sflag [#allocation7], 1
    %2925 = vsyncpa %s2924, 1

</llo_original>
